<compile_context>
chip_gen: v6e
topology: v6e:2x2x1
jax: 0.10.0
libtpu: 0.0.40
codegen_flags: <defaults>
</compile_context>

<pallas_src>
import math
from functools import partial

import jax
import jax.numpy as jnp
from jax import lax
from jax.experimental import pallas as pl
from jax.experimental.pallas import tpu as pltpu


# ----------------------------- in-kernel helpers -----------------------------

def _layer_norm(x, g, b, eps=1e-5):
    mu = jnp.mean(x, axis=-1, keepdims=True)
    var = jnp.mean(jnp.square(x - mu), axis=-1, keepdims=True)
    return (x - mu) * lax.rsqrt(var + eps) * g + b


def _mha(x_q, x_kv, wqkv_ref, bqkv_ref, wo_ref, bo_ref, *, num_heads,
         causal, self_attn):
    """Fused multi-head attention, fully in VMEM.

    x_q: (Sq, D) f32, x_kv: (Sk, D) f32
    wqkv_ref: (D, 3D) bf16, columns = [Wq | Wk | Wv] (per-head column blocks
              of width Dh inside each).  The 1/sqrt(Dh) score scale is folded
              into Wq at parameter-prep time.
    bqkv_ref: (1, 3D) f32
    wo_ref:   (D, D)  bf16, bo_ref: (1, D) f32
    """
    Sq, D = x_q.shape
    Sk = x_kv.shape[0]
    H = num_heads
    Dh = D // H

    xq_b = x_q.astype(jnp.bfloat16)
    if self_attn:
        # one wide matmul for Q, K, V of all heads
        qkv = jnp.dot(xq_b, wqkv_ref[...],
                      preferred_element_type=jnp.float32) + bqkv_ref[...]
        q, k, v = qkv[:, :D], qkv[:, D:2 * D], qkv[:, 2 * D:]
    else:
        q = jnp.dot(xq_b, wqkv_ref[:, :D],
                    preferred_element_type=jnp.float32) + bqkv_ref[:, :D]
        kv = jnp.dot(x_kv.astype(jnp.bfloat16), wqkv_ref[:, D:],
                     preferred_element_type=jnp.float32) + bqkv_ref[:, D:]
        k, v = kv[:, :D], kv[:, D:]

    if causal:
        row = lax.broadcasted_iota(jnp.int32, (Sq, Sk), 0)
        col = lax.broadcasted_iota(jnp.int32, (Sq, Sk), 1)
        allowed = col <= row

    # Heads are split only for the score / softmax / AV matmuls.
    # TODO(synk): at realistic S this needs a flash-style KV-tiled inner loop
    #             instead of the full (Sq, Sk) score matrix per head.
    head_outs = []
    for h in range(H):
        sl = slice(h * Dh, (h + 1) * Dh)
        qh = q[:, sl].astype(jnp.bfloat16)
        kh = k[:, sl].astype(jnp.bfloat16)
        vh = v[:, sl].astype(jnp.bfloat16)

        s = lax.dot_general(qh, kh, (((1,), (1,)), ((), ())),
                            preferred_element_type=jnp.float32)
        if causal:
            s = jnp.where(allowed, s, -1e30)
        s = s - jnp.max(s, axis=-1, keepdims=True)
        p = jnp.exp(s)
        p = p / jnp.sum(p, axis=-1, keepdims=True)          # exact softmax
        head_outs.append(jnp.dot(p.astype(jnp.bfloat16), vh,
                                 preferred_element_type=jnp.float32))

    o_cat = jnp.concatenate(head_outs, axis=-1)              # (Sq, D)
    return jnp.dot(o_cat.astype(jnp.bfloat16), wo_ref[...],
                   preferred_element_type=jnp.float32) + bo_ref[...]


def _ffn(x, w1_ref, c1_ref, w2_ref, c2_ref):
    h = jnp.dot(x.astype(jnp.bfloat16), w1_ref[...],
                preferred_element_type=jnp.float32) + c1_ref[...]
    h = jnp.maximum(h, 0.0)
    return jnp.dot(h.astype(jnp.bfloat16), w2_ref[...],
                   preferred_element_type=jnp.float32) + c2_ref[...]


# ----------------------------- fused layer kernels ---------------------------

def _encoder_layer_kernel(x_ref,
                          wqkv_ref, bqkv_ref, wo_ref, bo_ref,
                          g1_ref, b1_ref,
                          w1_ref, c1_ref, w2_ref, c2_ref,
                          g2_ref, b2_ref,
                          o_ref, *, num_heads):
    x = x_ref[0].astype(jnp.float32)                          # (S, D)
    attn = _mha(x, x, wqkv_ref, bqkv_ref, wo_ref, bo_ref,
                num_heads=num_heads, causal=False, self_attn=True)
    h1 = _layer_norm(x + attn, g1_ref[...], b1_ref[...])
    ff = _ffn(h1, w1_ref, c1_ref, w2_ref, c2_ref)
    o_ref[0] = _layer_norm(h1 + ff, g2_ref[...], b2_ref[...]).astype(o_ref.dtype)


def _decoder_layer_kernel(y_ref, enc_ref,
                          wsa_ref, bsa_ref, wso_ref, bso_ref, g1_ref, b1_ref,
                          wca_ref, bca_ref, wco_ref, bco_ref, g2_ref, b2_ref,
                          w1_ref, c1_ref, w2_ref, c2_ref, g3_ref, b3_ref,
                          o_ref, *, num_heads):
    y = y_ref[0].astype(jnp.float32)                          # (St, D)
    enc = enc_ref[0].astype(jnp.float32)                      # (Ss, D)

    sa = _mha(y, y, wsa_ref, bsa_ref, wso_ref, bso_ref,
              num_heads=num_heads, causal=True, self_attn=True)
    h1 = _layer_norm(y + sa, g1_ref[...], b1_ref[...])

    ca = _mha(h1, enc, wca_ref, bca_ref, wco_ref, bco_ref,
              num_heads=num_heads, causal=False, self_attn=False)
    h2 = _layer_norm(h1 + ca, g2_ref[...], b2_ref[...])

    ff = _ffn(h2, w1_ref, c1_ref, w2_ref, c2_ref)
    o_ref[0] = _layer_norm(h2 + ff, g3_ref[...], b3_ref[...]).astype(o_ref.dtype)


def _linear_kernel(x_ref, w_ref, b_ref, o_ref):
    o_ref[...] = (jnp.dot(x_ref[...].astype(jnp.bfloat16), w_ref[...],
                          preferred_element_type=jnp.float32)
                  + b_ref[...]).astype(o_ref.dtype)


# ----------------------------- kernel wrappers --------------------------------

_VMEM_LIMIT = 64 * 1024 * 1024


def _rep_spec(shape):
    # Weight spec: same block for every batch index.
    # TODO(synk): use pipeline_mode=pl.Buffered(1) here at real sizes (v7x VMEM).
    return pl.BlockSpec(shape, lambda b: (0,) * len(shape))


def encoder_layer(x, p, num_heads):
    B, S, D = x.shape
    attn, ffn = p["attn"], p["ffn"]
    F = ffn["w1"].shape[1]
    return pl.pallas_call(
        partial(_encoder_layer_kernel, num_heads=num_heads),
        out_shape=jax.ShapeDtypeStruct((B, S, D), jnp.float32),
        grid=(B,),
        in_specs=[
            pl.BlockSpec((1, S, D), lambda b: (b, 0, 0)),
            _rep_spec((D, 3 * D)), _rep_spec((1, 3 * D)),
            _rep_spec((D, D)), _rep_spec((1, D)),
            _rep_spec((1, D)), _rep_spec((1, D)),
            _rep_spec((D, F)), _rep_spec((1, F)),
            _rep_spec((F, D)), _rep_spec((1, D)),
            _rep_spec((1, D)), _rep_spec((1, D)),
        ],
        out_specs=pl.BlockSpec((1, S, D), lambda b: (b, 0, 0)),
        compiler_params=pltpu.CompilerParams(
            dimension_semantics=("parallel",),
            vmem_limit_bytes=_VMEM_LIMIT),
    )(x,
      attn["wqkv"], attn["bqkv"], attn["wo"], attn["bo"],
      p["ln1"]["g"], p["ln1"]["b"],
      ffn["w1"], ffn["c1"], ffn["w2"], ffn["c2"],
      p["ln2"]["g"], p["ln2"]["b"])


def decoder_layer(y, enc_out, p, num_heads):
    B, St, D = y.shape
    Ss = enc_out.shape[1]
    sa, ca, ffn = p["self_attn"], p["cross_attn"], p["ffn"]
    F = ffn["w1"].shape[1]
    return pl.pallas_call(
        partial(_decoder_layer_kernel, num_heads=num_heads),
        out_shape=jax.ShapeDtypeStruct((B, St, D), jnp.float32),
        grid=(B,),
        in_specs=[
            pl.BlockSpec((1, St, D), lambda b: (b, 0, 0)),
            pl.BlockSpec((1, Ss, D), lambda b: (b, 0, 0)),
            _rep_spec((D, 3 * D)), _rep_spec((1, 3 * D)),
            _rep_spec((D, D)), _rep_spec((1, D)),
            _rep_spec((1, D)), _rep_spec((1, D)),
            _rep_spec((D, 3 * D)), _rep_spec((1, 3 * D)),
            _rep_spec((D, D)), _rep_spec((1, D)),
            _rep_spec((1, D)), _rep_spec((1, D)),
            _rep_spec((D, F)), _rep_spec((1, F)),
            _rep_spec((F, D)), _rep_spec((1, D)),
            _rep_spec((1, D)), _rep_spec((1, D)),
        ],
        out_specs=pl.BlockSpec((1, St, D), lambda b: (b, 0, 0)),
        compiler_params=pltpu.CompilerParams(
            dimension_semantics=("parallel",),
            vmem_limit_bytes=_VMEM_LIMIT),
    )(y, enc_out,
      sa["wqkv"], sa["bqkv"], sa["wo"], sa["bo"],
      p["ln1"]["g"], p["ln1"]["b"],
      ca["wqkv"], ca["bqkv"], ca["wo"], ca["bo"],
      p["ln2"]["g"], p["ln2"]["b"],
      ffn["w1"], ffn["c1"], ffn["w2"], ffn["c2"],
      p["ln3"]["g"], p["ln3"]["b"])


def output_projection(y2d, w, b):
    """Tiled vocab projection: grid over (row tiles, vocab tiles)."""
    M, D = y2d.shape
    V = w.shape[1]
    TM = M if M <= 128 else 128
    TV = V if V <= 512 else 512
    return pl.pallas_call(
        _linear_kernel,
        out_shape=jax.ShapeDtypeStruct((M, V), jnp.float32),
        grid=(pl.cdiv(M, TM), pl.cdiv(V, TV)),
        in_specs=[
            pl.BlockSpec((TM, D), lambda i, j: (i, 0)),
            pl.BlockSpec((D, TV), lambda i, j: (0, j)),
            pl.BlockSpec((1, TV), lambda i, j: (0, j)),
        ],
        out_specs=pl.BlockSpec((TM, TV), lambda i, j: (i, j)),
        compiler_params=pltpu.CompilerParams(
            dimension_semantics=("parallel", "parallel"),
            vmem_limit_bytes=_VMEM_LIMIT),
    )(y2d, w, b)


# ----------------------------- model pieces -----------------------------------

def sinusoidal_pe(max_len, d):
    pos = jnp.arange(max_len, dtype=jnp.float32)[:, None]
    idx = jnp.arange(0, d, 2, dtype=jnp.float32)[None, :]
    angle = pos / jnp.power(10000.0, idx / d)
    pe = jnp.zeros((max_len, d), jnp.float32)
    pe = pe.at[:, 0::2].set(jnp.sin(angle))
    pe = pe.at[:, 1::2].set(jnp.cos(angle))
    return pe


def transformer_forward(params, src_ids, tgt_ids, cfg):
    D = cfg["embed_dim"]
    H = cfg["num_heads"]
    B, S_src = src_ids.shape
    _, S_tgt = tgt_ids.shape
    pe = params["pos_enc"]

    # ---- encoder ---- (embedding gather + PE stay as plain-JAX glue)
    x = jnp.take(params["enc_embed"], src_ids, axis=0) * math.sqrt(D) + pe[:S_src]
    for lp in params["enc_layers"]:
        x = encoder_layer(x, lp, H)
    enc_out = x

    # ---- decoder ----
    y = jnp.take(params["dec_embed"], tgt_ids, axis=0) * math.sqrt(D) + pe[:S_tgt]
    for lp in params["dec_layers"]:
        y = decoder_layer(y, enc_out, lp, H)

    # ---- output projection ----
    logits = output_projection(y.reshape(-1, D), params["out_w"], params["out_b"])
    return logits.reshape(B, S_tgt, cfg["tgt_vocab_size"])


# ----------------------------- param init -------------------------------------

def init_params(key, cfg):
    D, F, H = cfg["embed_dim"], cfg["ff_dim"], cfg["num_heads"]
    Dh = D // H
    keys = iter(jax.random.split(key, 256))

    def dense_w(din, dout):
        return jax.random.normal(next(keys), (din, dout), jnp.float32) * 0.02

    def attn_params():
        # Fold the 1/sqrt(Dh) attention scale into the Q projection weights.
        wq = dense_w(D, D) * (Dh ** -0.5)
        wk = dense_w(D, D)
        wv = dense_w(D, D)
        wo = dense_w(D, D)
        return {
            "wqkv": jnp.concatenate([wq, wk, wv], axis=1).astype(jnp.bfloat16),
            "bqkv": jnp.zeros((1, 3 * D), jnp.float32),
            "wo": wo.astype(jnp.bfloat16),
            "bo": jnp.zeros((1, D), jnp.float32),
        }

    def ffn_params():
        return {"w1": dense_w(D, F).astype(jnp.bfloat16),
                "c1": jnp.zeros((1, F), jnp.float32),
                "w2": dense_w(F, D).astype(jnp.bfloat16),
                "c2": jnp.zeros((1, D), jnp.float32)}

    def ln_params():
        return {"g": jnp.ones((1, D), jnp.float32), "b": jnp.zeros((1, D), jnp.float32)}

    params = {
        "enc_embed": jax.random.normal(next(keys), (cfg["src_vocab_size"], D)) * 0.02,
        "dec_embed": jax.random.normal(next(keys), (cfg["tgt_vocab_size"], D)) * 0.02,
        "pos_enc": sinusoidal_pe(cfg["max_seq_len"], D),
        "enc_layers": [
            {"attn": attn_params(), "ln1": ln_params(),
             "ffn": ffn_params(), "ln2": ln_params()}
            for _ in range(cfg["num_encoder_layers"])],
        "dec_layers": [
            {"self_attn": attn_params(), "ln1": ln_params(),
             "cross_attn": attn_params(), "ln2": ln_params(),
             "ffn": ffn_params(), "ln3": ln_params()}
            for _ in range(cfg["num_decoder_layers"])],
        "out_w": dense_w(D, cfg["tgt_vocab_size"]).astype(jnp.bfloat16),
        "out_b": jnp.zeros((1, cfg["tgt_vocab_size"]), jnp.float32),
    }
    return params


# ----------------------------- main --------------------------------------------

if __name__ == "__main__":
    cfg = dict(
        src_vocab_size=32,
        tgt_vocab_size=32,
        embed_dim=32,
        num_heads=4,
        ff_dim=64,
        num_encoder_layers=2,
        num_decoder_layers=2,
        max_seq_len=16,
    )
    key = jax.random.PRNGKey(0)
    k_param, k_src, k_tgt = jax.random.split(key, 3)
    params = init_params(k_param, cfg)

    B, S = 2, 8
    src_ids = jax.random.randint(k_src, (B, S), 0, cfg["src_vocab_size"], jnp.int32)
    tgt_ids = jax.random.randint(k_tgt, (B, S), 0, cfg["tgt_vocab_size"], jnp.int32)

    fwd = jax.jit(partial(transformer_forward, cfg=cfg))
    logits = fwd(params, src_ids, tgt_ids)
    jax.block_until_ready(logits)

    assert logits.shape == (B, S, cfg["tgt_vocab_size"])
    assert bool(jnp.all(jnp.isfinite(logits)))
    print("KERNEL_OK")
</pallas_src>

<mosaic_0001>
module attributes {stable_mosaic.version = 11 : i64} {
  func.func @_linear_kernel(%arg0: i32, %arg1: i32, %arg2: memref<16x32xf32, #tpu.memory_space<vmem>>, %arg3: memref<32x32xbf16, #tpu.memory_space<vmem>>, %arg4: memref<1x32xf32, #tpu.memory_space<vmem>>, %arg5: memref<16x32xf32, #tpu.memory_space<vmem>>) attributes {dimension_semantics = [#tpu.dimension_semantics<parallel>, #tpu.dimension_semantics<parallel>], iteration_bounds = array<i64: 1, 1>, scalar_prefetch = 0 : i64, scratch_operands = 0 : i64, tpu.core_type = #tpu.core_type<tc>, window_params = [{transform_indices = @transform_0, window_bounds = array<i64: 16, 32>}, {transform_indices = @transform_1, window_bounds = array<i64: 32, 32>}, {transform_indices = @transform_2, window_bounds = array<i64: 1, 32>}, {transform_indices = @transform_3, window_bounds = array<i64: 16, 32>}]} {
    %c0 = arith.constant 0 : index
    %c0_0 = arith.constant 0 : index
    %0 = vector.load %arg2[%c0, %c0_0] : memref<16x32xf32, #tpu.memory_space<vmem>>, vector<16x32xf32>
    %1 = arith.truncf %0 : vector<16x32xf32> to vector<16x32xbf16>
    %c0_1 = arith.constant 0 : index
    %c0_2 = arith.constant 0 : index
    %2 = vector.load %arg3[%c0_1, %c0_2] : memref<32x32xbf16, #tpu.memory_space<vmem>>, vector<32x32xbf16>
    %cst = arith.constant dense<0.000000e+00> : vector<16x32xf32>
    %3 = tpu.matmul %1, %2, %cst {dimension_numbers = #tpu.dot_dimension_numbers<[1], [0], [0], [1], [0, 0, 1, 1], [], []>} : vector<16x32xbf16>, vector<32x32xbf16>, vector<16x32xf32> -> vector<16x32xf32>
    %c0_3 = arith.constant 0 : index
    %c0_4 = arith.constant 0 : index
    %4 = vector.load %arg4[%c0_3, %c0_4] : memref<1x32xf32, #tpu.memory_space<vmem>>, vector<1x32xf32>
    %5 = vector.broadcast %4 : vector<1x32xf32> to vector<16x32xf32>
    %6 = arith.addf %3, %5 : vector<16x32xf32>
    %c0_5 = arith.constant 0 : index
    %c0_6 = arith.constant 0 : index
    %7 = vector.load %arg5[%c0_5, %c0_6] : memref<16x32xf32, #tpu.memory_space<vmem>>, vector<16x32xf32>
    tpu.vector_store %arg5[%c0_5, %c0_6], %6 {strides = array<i32>} : memref<16x32xf32, #tpu.memory_space<vmem>>, vector<16x32xf32>,
    return
  }
  func.func @transform_0(%arg0: i32, %arg1: i32) -> (i32, i32) {
    %c0_i32 = arith.constant 0 : i32
    %c0_i32_0 = arith.constant 0 : i32
    return %arg0, %c0_i32 : i32, i32
  }
  func.func @transform_1(%arg0: i32, %arg1: i32) -> (i32, i32) {
    %c0_i32 = arith.constant 0 : i32
    %c0_i32_0 = arith.constant 0 : i32
    return %c0_i32, %arg1 : i32, i32
  }
  func.func @transform_2(%arg0: i32, %arg1: i32) -> (i32, i32) {
    %c0_i32 = arith.constant 0 : i32
    %c0_i32_0 = arith.constant 0 : i32
    return %c0_i32, %arg1 : i32, i32
  }
  func.func @transform_3(%arg0: i32, %arg1: i32) -> (i32, i32) {
    %c0_i32 = arith.constant 0 : i32
    return %arg0, %arg1 : i32, i32
  }
}

module attributes {stable_mosaic.version = 11 : i64} {
  func.func @_encoder_layer_kernel(%arg0: i32, %arg1: memref<1x8x32xf32, #tpu.memory_space<vmem>>, %arg2: memref<32x96xbf16, #tpu.memory_space<vmem>>, %arg3: memref<1x96xf32, #tpu.memory_space<vmem>>, %arg4: memref<32x32xbf16, #tpu.memory_space<vmem>>, %arg5: memref<1x32xf32, #tpu.memory_space<vmem>>, %arg6: memref<1x32xf32, #tpu.memory_space<vmem>>, %arg7: memref<1x32xf32, #tpu.memory_space<vmem>>, %arg8: memref<32x64xbf16, #tpu.memory_space<vmem>>, %arg9: memref<1x64xf32, #tpu.memory_space<vmem>>, %arg10: memref<64x32xbf16, #tpu.memory_space<vmem>>, %arg11: memref<1x32xf32, #tpu.memory_space<vmem>>, %arg12: memref<1x32xf32, #tpu.memory_space<vmem>>, %arg13: memref<1x32xf32, #tpu.memory_space<vmem>>, %arg14: memref<1x8x32xf32, #tpu.memory_space<vmem>>) attributes {dimension_semantics = [#tpu.dimension_semantics<parallel>], iteration_bounds = array<i64: 2>, scalar_prefetch = 0 : i64, scratch_operands = 0 : i64, tpu.core_type = #tpu.core_type<tc>, window_params = [{transform_indices = @transform_0, window_bounds = array<i64: 1, 8, 32>}, {pipeline_mode = #tpu.pipeline_mode<synchronous>, transform_indices = @transform_1, window_bounds = array<i64: 32, 96>}, {pipeline_mode = #tpu.pipeline_mode<synchronous>, transform_indices = @transform_2, window_bounds = array<i64: 1, 96>}, {pipeline_mode = #tpu.pipeline_mode<synchronous>, transform_indices = @transform_3, window_bounds = array<i64: 32, 32>}, {pipeline_mode = #tpu.pipeline_mode<synchronous>, transform_indices = @transform_4, window_bounds = array<i64: 1, 32>}, {pipeline_mode = #tpu.pipeline_mode<synchronous>, transform_indices = @transform_5, window_bounds = array<i64: 1, 32>}, {pipeline_mode = #tpu.pipeline_mode<synchronous>, transform_indices = @transform_6, window_bounds = array<i64: 1, 32>}, {pipeline_mode = #tpu.pipeline_mode<synchronous>, transform_indices = @transform_7, window_bounds = array<i64: 32, 64>}, {pipeline_mode = #tpu.pipeline_mode<synchronous>, transform_indices = @transform_8, window_bounds = array<i64: 1, 64>}, {pipeline_mode = #tpu.pipeline_mode<synchronous>, transform_indices = @transform_9, window_bounds = array<i64: 64, 32>}, {pipeline_mode = #tpu.pipeline_mode<synchronous>, transform_indices = @transform_10, window_bounds = array<i64: 1, 32>}, {pipeline_mode = #tpu.pipeline_mode<synchronous>, transform_indices = @transform_11, window_bounds = array<i64: 1, 32>}, {pipeline_mode = #tpu.pipeline_mode<synchronous>, transform_indices = @transform_12, window_bounds = array<i64: 1, 32>}, {transform_indices = @transform_13, window_bounds = array<i64: 1, 8, 32>}]} {
    %c0 = arith.constant 0 : index
    %c0_0 = arith.constant 0 : index
    %c0_1 = arith.constant 0 : index
    %0 = vector.load %arg1[%c0, %c0_0, %c0_1] : memref<1x8x32xf32, #tpu.memory_space<vmem>>, vector<1x8x32xf32>
    %1 = vector.shape_cast %0 : vector<1x8x32xf32> to vector<8x32xf32>
    %2 = arith.truncf %1 : vector<8x32xf32> to vector<8x32xbf16>
    %c0_2 = arith.constant 0 : index
    %c0_3 = arith.constant 0 : index
    %3 = vector.load %arg2[%c0_2, %c0_3] : memref<32x96xbf16, #tpu.memory_space<vmem>>, vector<32x96xbf16>
    %cst = arith.constant dense<0.000000e+00> : vector<8x96xf32>
    %4 = tpu.matmul %2, %3, %cst {dimension_numbers = #tpu.dot_dimension_numbers<[1], [0], [0], [1], [0, 0, 1, 1], [], []>} : vector<8x32xbf16>, vector<32x96xbf16>, vector<8x96xf32> -> vector<8x96xf32>
    %c0_4 = arith.constant 0 : index
    %c0_5 = arith.constant 0 : index
    %5 = vector.load %arg3[%c0_4, %c0_5] : memref<1x96xf32, #tpu.memory_space<vmem>>, vector<1x96xf32>
    %6 = vector.broadcast %5 : vector<1x96xf32> to vector<8x96xf32>
    %7 = arith.addf %4, %6 : vector<8x96xf32>
    %8 = vector.extract_strided_slice %7 {offsets = [0, 0], sizes = [8, 32], strides = [1, 1]} : vector<8x96xf32> to vector<8x32xf32>
    %9 = vector.extract_strided_slice %7 {offsets = [0, 32], sizes = [8, 32], strides = [1, 1]} : vector<8x96xf32> to vector<8x32xf32>
    %10 = vector.extract_strided_slice %7 {offsets = [0, 64], sizes = [8, 32], strides = [1, 1]} : vector<8x96xf32> to vector<8x32xf32>
    %11 = vector.extract_strided_slice %8 {offsets = [0, 0], sizes = [8, 8], strides = [1, 1]} : vector<8x32xf32> to vector<8x8xf32>
    %12 = arith.truncf %11 : vector<8x8xf32> to vector<8x8xbf16>
    %13 = vector.extract_strided_slice %9 {offsets = [0, 0], sizes = [8, 8], strides = [1, 1]} : vector<8x32xf32> to vector<8x8xf32>
    %14 = arith.truncf %13 : vector<8x8xf32> to vector<8x8xbf16>
    %15 = vector.extract_strided_slice %10 {offsets = [0, 0], sizes = [8, 8], strides = [1, 1]} : vector<8x32xf32> to vector<8x8xf32>
    %16 = arith.truncf %15 : vector<8x8xf32> to vector<8x8xbf16>
    %cst_6 = arith.constant dense<0.000000e+00> : vector<8x8xf32>
    %17 = tpu.matmul %12, %14, %cst_6 {dimension_numbers = #tpu.dot_dimension_numbers<[1], [1], [0], [0], [0, 0, 1, 0], [], []>} : vector<8x8xbf16>, vector<8x8xbf16>, vector<8x8xf32> -> vector<8x8xf32>
    %cst_7 = arith.constant dense<0xFF800000> : vector<8xf32>
    %18 = vector.multi_reduction <maximumf>, %17, %cst_7 [1] : vector<8x8xf32> to vector<8xf32>
    %19 = vector.shape_cast %18 : vector<8xf32> to vector<8x1xf32>
    %20 = vector.broadcast %19 : vector<8x1xf32> to vector<8x8xf32>
    %21 = arith.subf %17, %20 : vector<8x8xf32>
    %22 = math.exp %21 : vector<8x8xf32>
    %cst_8 = arith.constant dense<0.000000e+00> : vector<8xf32>
    %23 = vector.multi_reduction <add>, %22, %cst_8 [1] : vector<8x8xf32> to vector<8xf32>
    %24 = vector.shape_cast %23 : vector<8xf32> to vector<8x1xf32>
    %25 = vector.broadcast %24 : vector<8x1xf32> to vector<8x8xf32>
    %26 = arith.divf %22, %25 : vector<8x8xf32>
    %27 = arith.truncf %26 : vector<8x8xf32> to vector<8x8xbf16>
    %cst_9 = arith.constant dense<0.000000e+00> : vector<8x8xf32>
    %28 = tpu.matmul %27, %16, %cst_9 {dimension_numbers = #tpu.dot_dimension_numbers<[1], [0], [0], [1], [0, 0, 1, 1], [], []>} : vector<8x8xbf16>, vector<8x8xbf16>, vector<8x8xf32> -> vector<8x8xf32>
    %29 = vector.extract_strided_slice %8 {offsets = [0, 8], sizes = [8, 8], strides = [1, 1]} : vector<8x32xf32> to vector<8x8xf32>
    %30 = arith.truncf %29 : vector<8x8xf32> to vector<8x8xbf16>
    %31 = vector.extract_strided_slice %9 {offsets = [0, 8], sizes = [8, 8], strides = [1, 1]} : vector<8x32xf32> to vector<8x8xf32>
    %32 = arith.truncf %31 : vector<8x8xf32> to vector<8x8xbf16>
    %33 = vector.extract_strided_slice %10 {offsets = [0, 8], sizes = [8, 8], strides = [1, 1]} : vector<8x32xf32> to vector<8x8xf32>
    %34 = arith.truncf %33 : vector<8x8xf32> to vector<8x8xbf16>
    %cst_10 = arith.constant dense<0.000000e+00> : vector<8x8xf32>
    %35 = tpu.matmul %30, %32, %cst_10 {dimension_numbers = #tpu.dot_dimension_numbers<[1], [1], [0], [0], [0, 0, 1, 0], [], []>} : vector<8x8xbf16>, vector<8x8xbf16>, vector<8x8xf32> -> vector<8x8xf32>
    %cst_11 = arith.constant dense<0xFF800000> : vector<8xf32>
    %36 = vector.multi_reduction <maximumf>, %35, %cst_11 [1] : vector<8x8xf32> to vector<8xf32>
    %37 = vector.shape_cast %36 : vector<8xf32> to vector<8x1xf32>
    %38 = vector.broadcast %37 : vector<8x1xf32> to vector<8x8xf32>
    %39 = arith.subf %35, %38 : vector<8x8xf32>
    %40 = math.exp %39 : vector<8x8xf32>
    %cst_12 = arith.constant dense<0.000000e+00> : vector<8xf32>
    %41 = vector.multi_reduction <add>, %40, %cst_12 [1] : vector<8x8xf32> to vector<8xf32>
    %42 = vector.shape_cast %41 : vector<8xf32> to vector<8x1xf32>
    %43 = vector.broadcast %42 : vector<8x1xf32> to vector<8x8xf32>
    %44 = arith.divf %40, %43 : vector<8x8xf32>
    %45 = arith.truncf %44 : vector<8x8xf32> to vector<8x8xbf16>
    %cst_13 = arith.constant dense<0.000000e+00> : vector<8x8xf32>
    %46 = tpu.matmul %45, %34, %cst_13 {dimension_numbers = #tpu.dot_dimension_numbers<[1], [0], [0], [1], [0, 0, 1, 1], [], []>} : vector<8x8xbf16>, vector<8x8xbf16>, vector<8x8xf32> -> vector<8x8xf32>
    %47 = vector.extract_strided_slice %8 {offsets = [0, 16], sizes = [8, 8], strides = [1, 1]} : vector<8x32xf32> to vector<8x8xf32>
    %48 = arith.truncf %47 : vector<8x8xf32> to vector<8x8xbf16>
    %49 = vector.extract_strided_slice %9 {offsets = [0, 16], sizes = [8, 8], strides = [1, 1]} : vector<8x32xf32> to vector<8x8xf32>
    %50 = arith.truncf %49 : vector<8x8xf32> to vector<8x8xbf16>
    %51 = vector.extract_strided_slice %10 {offsets = [0, 16], sizes = [8, 8], strides = [1, 1]} : vector<8x32xf32> to vector<8x8xf32>
    %52 = arith.truncf %51 : vector<8x8xf32> to vector<8x8xbf16>
    %cst_14 = arith.constant dense<0.000000e+00> : vector<8x8xf32>
    %53 = tpu.matmul %48, %50, %cst_14 {dimension_numbers = #tpu.dot_dimension_numbers<[1], [1], [0], [0], [0, 0, 1, 0], [], []>} : vector<8x8xbf16>, vector<8x8xbf16>, vector<8x8xf32> -> vector<8x8xf32>
    %cst_15 = arith.constant dense<0xFF800000> : vector<8xf32>
    %54 = vector.multi_reduction <maximumf>, %53, %cst_15 [1] : vector<8x8xf32> to vector<8xf32>
    %55 = vector.shape_cast %54 : vector<8xf32> to vector<8x1xf32>
    %56 = vector.broadcast %55 : vector<8x1xf32> to vector<8x8xf32>
    %57 = arith.subf %53, %56 : vector<8x8xf32>
    %58 = math.exp %57 : vector<8x8xf32>
    %cst_16 = arith.constant dense<0.000000e+00> : vector<8xf32>
    %59 = vector.multi_reduction <add>, %58, %cst_16 [1] : vector<8x8xf32> to vector<8xf32>
    %60 = vector.shape_cast %59 : vector<8xf32> to vector<8x1xf32>
    %61 = vector.broadcast %60 : vector<8x1xf32> to vector<8x8xf32>
    %62 = arith.divf %58, %61 : vector<8x8xf32>
    %63 = arith.truncf %62 : vector<8x8xf32> to vector<8x8xbf16>
    %cst_17 = arith.constant dense<0.000000e+00> : vector<8x8xf32>
    %64 = tpu.matmul %63, %52, %cst_17 {dimension_numbers = #tpu.dot_dimension_numbers<[1], [0], [0], [1], [0, 0, 1, 1], [], []>} : vector<8x8xbf16>, vector<8x8xbf16>, vector<8x8xf32> -> vector<8x8xf32>
    %65 = vector.extract_strided_slice %8 {offsets = [0, 24], sizes = [8, 8], strides = [1, 1]} : vector<8x32xf32> to vector<8x8xf32>
    %66 = arith.truncf %65 : vector<8x8xf32> to vector<8x8xbf16>
    %67 = vector.extract_strided_slice %9 {offsets = [0, 24], sizes = [8, 8], strides = [1, 1]} : vector<8x32xf32> to vector<8x8xf32>
    %68 = arith.truncf %67 : vector<8x8xf32> to vector<8x8xbf16>
    %69 = vector.extract_strided_slice %10 {offsets = [0, 24], sizes = [8, 8], strides = [1, 1]} : vector<8x32xf32> to vector<8x8xf32>
    %70 = arith.truncf %69 : vector<8x8xf32> to vector<8x8xbf16>
    %cst_18 = arith.constant dense<0.000000e+00> : vector<8x8xf32>
    %71 = tpu.matmul %66, %68, %cst_18 {dimension_numbers = #tpu.dot_dimension_numbers<[1], [1], [0], [0], [0, 0, 1, 0], [], []>} : vector<8x8xbf16>, vector<8x8xbf16>, vector<8x8xf32> -> vector<8x8xf32>
    %cst_19 = arith.constant dense<0xFF800000> : vector<8xf32>
    %72 = vector.multi_reduction <maximumf>, %71, %cst_19 [1] : vector<8x8xf32> to vector<8xf32>
    %73 = vector.shape_cast %72 : vector<8xf32> to vector<8x1xf32>
    %74 = vector.broadcast %73 : vector<8x1xf32> to vector<8x8xf32>
    %75 = arith.subf %71, %74 : vector<8x8xf32>
    %76 = math.exp %75 : vector<8x8xf32>
    %cst_20 = arith.constant dense<0.000000e+00> : vector<8xf32>
    %77 = vector.multi_reduction <add>, %76, %cst_20 [1] : vector<8x8xf32> to vector<8xf32>
    %78 = vector.shape_cast %77 : vector<8xf32> to vector<8x1xf32>
    %79 = vector.broadcast %78 : vector<8x1xf32> to vector<8x8xf32>
    %80 = arith.divf %76, %79 : vector<8x8xf32>
    %81 = arith.truncf %80 : vector<8x8xf32> to vector<8x8xbf16>
    %cst_21 = arith.constant dense<0.000000e+00> : vector<8x8xf32>
    %82 = tpu.matmul %81, %70, %cst_21 {dimension_numbers = #tpu.dot_dimension_numbers<[1], [0], [0], [1], [0, 0, 1, 1], [], []>} : vector<8x8xbf16>, vector<8x8xbf16>, vector<8x8xf32> -> vector<8x8xf32>
    %83 = tpu.concatenate %28, %46, %64, %82 in 1 : vector<8x8xf32>, vector<8x8xf32>, vector<8x8xf32>, vector<8x8xf32> -> vector<8x32xf32>
    %84 = arith.truncf %83 : vector<8x32xf32> to vector<8x32xbf16>
    %c0_22 = arith.constant 0 : index
    %c0_23 = arith.constant 0 : index
    %85 = vector.load %arg4[%c0_22, %c0_23] : memref<32x32xbf16, #tpu.memory_space<vmem>>, vector<32x32xbf16>
    %cst_24 = arith.constant dense<0.000000e+00> : vector<8x32xf32>
    %86 = tpu.matmul %84, %85, %cst_24 {dimension_numbers = #tpu.dot_dimension_numbers<[1], [0], [0], [1], [0, 0, 1, 1], [], []>} : vector<8x32xbf16>, vector<32x32xbf16>, vector<8x32xf32> -> vector<8x32xf32>
    %c0_25 = arith.constant 0 : index
    %c0_26 = arith.constant 0 : index
    %87 = vector.load %arg5[%c0_25, %c0_26] : memref<1x32xf32, #tpu.memory_space<vmem>>, vector<1x32xf32>
    %88 = vector.broadcast %87 : vector<1x32xf32> to vector<8x32xf32>
    %89 = arith.addf %86, %88 : vector<8x32xf32>
    %90 = arith.addf %1, %89 : vector<8x32xf32>
    %c0_27 = arith.constant 0 : index
    %c0_28 = arith.constant 0 : index
    %91 = vector.load %arg6[%c0_27, %c0_28] : memref<1x32xf32, #tpu.memory_space<vmem>>, vector<1x32xf32>
    %c0_29 = arith.constant 0 : index
    %c0_30 = arith.constant 0 : index
    %92 = vector.load %arg7[%c0_29, %c0_30] : memref<1x32xf32, #tpu.memory_space<vmem>>, vector<1x32xf32>
    %cst_31 = arith.constant dense<0.000000e+00> : vector<8xf32>
    %93 = vector.multi_reduction <add>, %90, %cst_31 [1] : vector<8x32xf32> to vector<8xf32>
    %94 = vector.shape_cast %93 : vector<8xf32> to vector<8x1xf32>
    %cst_32 = arith.constant 3.200000e+01 : f32
    %95 = vector.broadcast %cst_32 : f32 to vector<8x1xf32>
    %96 = arith.divf %94, %95 : vector<8x1xf32>
    %97 = vector.broadcast %96 : vector<8x1xf32> to vector<8x32xf32>
    %98 = arith.subf %90, %97 : vector<8x32xf32>
    %99 = arith.mulf %98, %98 : vector<8x32xf32>
    %cst_33 = arith.constant dense<0.000000e+00> : vector<8xf32>
    %100 = vector.multi_reduction <add>, %99, %cst_33 [1] : vector<8x32xf32> to vector<8xf32>
    %101 = vector.shape_cast %100 : vector<8xf32> to vector<8x1xf32>
    %cst_34 = arith.constant 3.200000e+01 : f32
    %102 = vector.broadcast %cst_34 : f32 to vector<8x1xf32>
    %103 = arith.divf %101, %102 : vector<8x1xf32>
    %104 = vector.broadcast %96 : vector<8x1xf32> to vector<8x32xf32>
    %105 = arith.subf %90, %104 : vector<8x32xf32>
    %cst_35 = arith.constant 9.99999974E-6 : f32
    %106 = vector.broadcast %cst_35 : f32 to vector<8x1xf32>
    %107 = arith.addf %103, %106 : vector<8x1xf32>
    %108 = math.rsqrt %107 : vector<8x1xf32>
    %109 = vector.broadcast %108 : vector<8x1xf32> to vector<8x32xf32>
    %110 = arith.mulf %105, %109 : vector<8x32xf32>
    %111 = vector.broadcast %91 : vector<1x32xf32> to vector<8x32xf32>
    %112 = arith.mulf %110, %111 : vector<8x32xf32>
    %113 = vector.broadcast %92 : vector<1x32xf32> to vector<8x32xf32>
    %114 = arith.addf %112, %113 : vector<8x32xf32>
    %115 = arith.truncf %114 : vector<8x32xf32> to vector<8x32xbf16>
    %c0_36 = arith.constant 0 : index
    %c0_37 = arith.constant 0 : index
    %116 = vector.load %arg8[%c0_36, %c0_37] : memref<32x64xbf16, #tpu.memory_space<vmem>>, vector<32x64xbf16>
    %cst_38 = arith.constant dense<0.000000e+00> : vector<8x64xf32>
    %117 = tpu.matmul %115, %116, %cst_38 {dimension_numbers = #tpu.dot_dimension_numbers<[1], [0], [0], [1], [0, 0, 1, 1], [], []>} : vector<8x32xbf16>, vector<32x64xbf16>, vector<8x64xf32> -> vector<8x64xf32>
    %c0_39 = arith.constant 0 : index
    %c0_40 = arith.constant 0 : index
    %118 = vector.load %arg9[%c0_39, %c0_40] : memref<1x64xf32, #tpu.memory_space<vmem>>, vector<1x64xf32>
    %119 = vector.broadcast %118 : vector<1x64xf32> to vector<8x64xf32>
    %120 = arith.addf %117, %119 : vector<8x64xf32>
    %cst_41 = arith.constant 0.000000e+00 : f32
    %121 = vector.broadcast %cst_41 : f32 to vector<8x64xf32>
    %122 = arith.maximumf %120, %121 : vector<8x64xf32>
    %123 = arith.truncf %122 : vector<8x64xf32> to vector<8x64xbf16>
    %c0_42 = arith.constant 0 : index
    %c0_43 = arith.constant 0 : index
    %124 = vector.load %arg10[%c0_42, %c0_43] : memref<64x32xbf16, #tpu.memory_space<vmem>>, vector<64x32xbf16>
    %cst_44 = arith.constant dense<0.000000e+00> : vector<8x32xf32>
    %125 = tpu.matmul %123, %124, %cst_44 {dimension_numbers = #tpu.dot_dimension_numbers<[1], [0], [0], [1], [0, 0, 1, 1], [], []>} : vector<8x64xbf16>, vector<64x32xbf16>, vector<8x32xf32> -> vector<8x32xf32>
    %c0_45 = arith.constant 0 : index
    %c0_46 = arith.constant 0 : index
    %126 = vector.load %arg11[%c0_45, %c0_46] : memref<1x32xf32, #tpu.memory_space<vmem>>, vector<1x32xf32>
    %127 = vector.broadcast %126 : vector<1x32xf32> to vector<8x32xf32>
    %128 = arith.addf %125, %127 : vector<8x32xf32>
    %129 = arith.addf %114, %128 : vector<8x32xf32>
    %c0_47 = arith.constant 0 : index
    %c0_48 = arith.constant 0 : index
    %130 = vector.load %arg12[%c0_47, %c0_48] : memref<1x32xf32, #tpu.memory_space<vmem>>, vector<1x32xf32>
    %c0_49 = arith.constant 0 : index
    %c0_50 = arith.constant 0 : index
    %131 = vector.load %arg13[%c0_49, %c0_50] : memref<1x32xf32, #tpu.memory_space<vmem>>, vector<1x32xf32>
    %cst_51 = arith.constant dense<0.000000e+00> : vector<8xf32>
    %132 = vector.multi_reduction <add>, %129, %cst_51 [1] : vector<8x32xf32> to vector<8xf32>
    %133 = vector.shape_cast %132 : vector<8xf32> to vector<8x1xf32>
    %cst_52 = arith.constant 3.200000e+01 : f32
    %134 = vector.broadcast %cst_52 : f32 to vector<8x1xf32>
    %135 = arith.divf %133, %134 : vector<8x1xf32>
    %136 = vector.broadcast %135 : vector<8x1xf32> to vector<8x32xf32>
    %137 = arith.subf %129, %136 : vector<8x32xf32>
    %138 = arith.mulf %137, %137 : vector<8x32xf32>
    %cst_53 = arith.constant dense<0.000000e+00> : vector<8xf32>
    %139 = vector.multi_reduction <add>, %138, %cst_53 [1] : vector<8x32xf32> to vector<8xf32>
    %140 = vector.shape_cast %139 : vector<8xf32> to vector<8x1xf32>
    %cst_54 = arith.constant 3.200000e+01 : f32
    %141 = vector.broadcast %cst_54 : f32 to vector<8x1xf32>
    %142 = arith.divf %140, %141 : vector<8x1xf32>
    %143 = vector.broadcast %135 : vector<8x1xf32> to vector<8x32xf32>
    %144 = arith.subf %129, %143 : vector<8x32xf32>
    %cst_55 = arith.constant 9.99999974E-6 : f32
    %145 = vector.broadcast %cst_55 : f32 to vector<8x1xf32>
    %146 = arith.addf %142, %145 : vector<8x1xf32>
    %147 = math.rsqrt %146 : vector<8x1xf32>
    %148 = vector.broadcast %147 : vector<8x1xf32> to vector<8x32xf32>
    %149 = arith.mulf %144, %148 : vector<8x32xf32>
    %150 = vector.broadcast %130 : vector<1x32xf32> to vector<8x32xf32>
    %151 = arith.mulf %149, %150 : vector<8x32xf32>
    %152 = vector.broadcast %131 : vector<1x32xf32> to vector<8x32xf32>
    %153 = arith.addf %151, %152 : vector<8x32xf32>
    %c0_56 = arith.constant 0 : index
    %c0_57 = arith.constant 0 : index
    %c0_58 = arith.constant 0 : index
    %154 = vector.load %arg14[%c0_56, %c0_57, %c0_58] : memref<1x8x32xf32, #tpu.memory_space<vmem>>, vector<1x8x32xf32>
    %155 = vector.shape_cast %154 : vector<1x8x32xf32> to vector<8x32xf32>
    %156 = vector.shape_cast %153 : vector<8x32xf32> to vector<1x8x32xf32>
    tpu.vector_store %arg14[%c0_56, %c0_57, %c0_58], %156 {strides = array<i32>} : memref<1x8x32xf32, #tpu.memory_space<vmem>>, vector<1x8x32xf32>,
    return
  }
  func.func @transform_0(%arg0: i32) -> (i32, i32, i32) {
    %c0_i32 = arith.constant 0 : i32
    %c0_i32_0 = arith.constant 0 : i32
    %c0_i32_1 = arith.constant 0 : i32
    return %arg0, %c0_i32, %c0_i32_0 : i32, i32, i32
  }
  func.func @transform_1(%arg0: i32) -> (i32, i32) {
    %c0_i32 = arith.constant 0 : i32
    %c0_i32_0 = arith.constant 0 : i32
    %c0_i32_1 = arith.constant 0 : i32
    return %c0_i32, %c0_i32_0 : i32, i32
  }
  func.func @transform_2(%arg0: i32) -> (i32, i32) {
    %c0_i32 = arith.constant 0 : i32
    %c0_i32_0 = arith.constant 0 : i32
    %c0_i32_1 = arith.constant 0 : i32
    return %c0_i32, %c0_i32_0 : i32, i32
  }
  func.func @transform_3(%arg0: i32) -> (i32, i32) {
    %c0_i32 = arith.constant 0 : i32
    %c0_i32_0 = arith.constant 0 : i32
    %c0_i32_1 = arith.constant 0 : i32
    return %c0_i32, %c0_i32_0 : i32, i32
  }
  func.func @transform_4(%arg0: i32) -> (i32, i32) {
    %c0_i32 = arith.constant 0 : i32
    %c0_i32_0 = arith.constant 0 : i32
    %c0_i32_1 = arith.constant 0 : i32
    return %c0_i32, %c0_i32_0 : i32, i32
  }
  func.func @transform_5(%arg0: i32) -> (i32, i32) {
    %c0_i32 = arith.constant 0 : i32
    %c0_i32_0 = arith.constant 0 : i32
    %c0_i32_1 = arith.constant 0 : i32
    return %c0_i32, %c0_i32_0 : i32, i32
  }
  func.func @transform_6(%arg0: i32) -> (i32, i32) {
    %c0_i32 = arith.constant 0 : i32
    %c0_i32_0 = arith.constant 0 : i32
    %c0_i32_1 = arith.constant 0 : i32
    return %c0_i32, %c0_i32_0 : i32, i32
  }
  func.func @transform_7(%arg0: i32) -> (i32, i32) {
    %c0_i32 = arith.constant 0 : i32
    %c0_i32_0 = arith.constant 0 : i32
    %c0_i32_1 = arith.constant 0 : i32
    return %c0_i32, %c0_i32_0 : i32, i32
  }
  func.func @transform_8(%arg0: i32) -> (i32, i32) {
    %c0_i32 = arith.constant 0 : i32
    %c0_i32_0 = arith.constant 0 : i32
    %c0_i32_1 = arith.constant 0 : i32
    return %c0_i32, %c0_i32_0 : i32, i32
  }
  func.func @transform_9(%arg0: i32) -> (i32, i32) {
    %c0_i32 = arith.constant 0 : i32
    %c0_i32_0 = arith.constant 0 : i32
    %c0_i32_1 = arith.constant 0 : i32
    return %c0_i32, %c0_i32_0 : i32, i32
  }
  func.func @transform_10(%arg0: i32) -> (i32, i32) {
    %c0_i32 = arith.constant 0 : i32
    %c0_i32_0 = arith.constant 0 : i32
    %c0_i32_1 = arith.constant 0 : i32
    return %c0_i32, %c0_i32_0 : i32, i32
  }
  func.func @transform_11(%arg0: i32) -> (i32, i32) {
    %c0_i32 = arith.constant 0 : i32
    %c0_i32_0 = arith.constant 0 : i32
    %c0_i32_1 = arith.constant 0 : i32
    return %c0_i32, %c0_i32_0 : i32, i32
  }
  func.func @transform_12(%arg0: i32) -> (i32, i32) {
    %c0_i32 = arith.constant 0 : i32
    %c0_i32_0 = arith.constant 0 : i32
    %c0_i32_1 = arith.constant 0 : i32
    return %c0_i32, %c0_i32_0 : i32, i32
  }
  func.func @transform_13(%arg0: i32) -> (i32, i32, i32) {
    %c0_i32 = arith.constant 0 : i32
    %c0_i32_0 = arith.constant 0 : i32
    %c0_i32_1 = arith.constant 0 : i32
    return %arg0, %c0_i32, %c0_i32_0 : i32, i32, i32
  }
}

module attributes {stable_mosaic.version = 11 : i64} {
  func.func @_decoder_layer_kernel(%arg0: i32, %arg1: memref<1x8x32xf32, #tpu.memory_space<vmem>>, %arg2: memref<1x8x32xf32, #tpu.memory_space<vmem>>, %arg3: memref<32x96xbf16, #tpu.memory_space<vmem>>, %arg4: memref<1x96xf32, #tpu.memory_space<vmem>>, %arg5: memref<32x32xbf16, #tpu.memory_space<vmem>>, %arg6: memref<1x32xf32, #tpu.memory_space<vmem>>, %arg7: memref<1x32xf32, #tpu.memory_space<vmem>>, %arg8: memref<1x32xf32, #tpu.memory_space<vmem>>, %arg9: memref<32x96xbf16, #tpu.memory_space<vmem>>, %arg10: memref<1x96xf32, #tpu.memory_space<vmem>>, %arg11: memref<32x32xbf16, #tpu.memory_space<vmem>>, %arg12: memref<1x32xf32, #tpu.memory_space<vmem>>, %arg13: memref<1x32xf32, #tpu.memory_space<vmem>>, %arg14: memref<1x32xf32, #tpu.memory_space<vmem>>, %arg15: memref<32x64xbf16, #tpu.memory_space<vmem>>, %arg16: memref<1x64xf32, #tpu.memory_space<vmem>>, %arg17: memref<64x32xbf16, #tpu.memory_space<vmem>>, %arg18: memref<1x32xf32, #tpu.memory_space<vmem>>, %arg19: memref<1x32xf32, #tpu.memory_space<vmem>>, %arg20: memref<1x32xf32, #tpu.memory_space<vmem>>, %arg21: memref<1x8x32xf32, #tpu.memory_space<vmem>>) attributes {dimension_semantics = [#tpu.dimension_semantics<parallel>], iteration_bounds = array<i64: 2>, scalar_prefetch = 0 : i64, scratch_operands = 0 : i64, tpu.core_type = #tpu.core_type<tc>, window_params = [{transform_indices = @transform_0, window_bounds = array<i64: 1, 8, 32>}, {transform_indices = @transform_1, window_bounds = array<i64: 1, 8, 32>}, {pipeline_mode = #tpu.pipeline_mode<synchronous>, transform_indices = @transform_2, window_bounds = array<i64: 32, 96>}, {pipeline_mode = #tpu.pipeline_mode<synchronous>, transform_indices = @transform_3, window_bounds = array<i64: 1, 96>}, {pipeline_mode = #tpu.pipeline_mode<synchronous>, transform_indices = @transform_4, window_bounds = array<i64: 32, 32>}, {pipeline_mode = #tpu.pipeline_mode<synchronous>, transform_indices = @transform_5, window_bounds = array<i64: 1, 32>}, {pipeline_mode = #tpu.pipeline_mode<synchronous>, transform_indices = @transform_6, window_bounds = array<i64: 1, 32>}, {pipeline_mode = #tpu.pipeline_mode<synchronous>, transform_indices = @transform_7, window_bounds = array<i64: 1, 32>}, {pipeline_mode = #tpu.pipeline_mode<synchronous>, transform_indices = @transform_8, window_bounds = array<i64: 32, 96>}, {pipeline_mode = #tpu.pipeline_mode<synchronous>, transform_indices = @transform_9, window_bounds = array<i64: 1, 96>}, {pipeline_mode = #tpu.pipeline_mode<synchronous>, transform_indices = @transform_10, window_bounds = array<i64: 32, 32>}, {pipeline_mode = #tpu.pipeline_mode<synchronous>, transform_indices = @transform_11, window_bounds = array<i64: 1, 32>}, {pipeline_mode = #tpu.pipeline_mode<synchronous>, transform_indices = @transform_12, window_bounds = array<i64: 1, 32>}, {pipeline_mode = #tpu.pipeline_mode<synchronous>, transform_indices = @transform_13, window_bounds = array<i64: 1, 32>}, {pipeline_mode = #tpu.pipeline_mode<synchronous>, transform_indices = @transform_14, window_bounds = array<i64: 32, 64>}, {pipeline_mode = #tpu.pipeline_mode<synchronous>, transform_indices = @transform_15, window_bounds = array<i64: 1, 64>}, {pipeline_mode = #tpu.pipeline_mode<synchronous>, transform_indices = @transform_16, window_bounds = array<i64: 64, 32>}, {pipeline_mode = #tpu.pipeline_mode<synchronous>, transform_indices = @transform_17, window_bounds = array<i64: 1, 32>}, {pipeline_mode = #tpu.pipeline_mode<synchronous>, transform_indices = @transform_18, window_bounds = array<i64: 1, 32>}, {pipeline_mode = #tpu.pipeline_mode<synchronous>, transform_indices = @transform_19, window_bounds = array<i64: 1, 32>}, {transform_indices = @transform_20, window_bounds = array<i64: 1, 8, 32>}]} {
    %c0 = arith.constant 0 : index
    %c0_0 = arith.constant 0 : index
    %c0_1 = arith.constant 0 : index
    %0 = vector.load %arg1[%c0, %c0_0, %c0_1] : memref<1x8x32xf32, #tpu.memory_space<vmem>>, vector<1x8x32xf32>
    %1 = vector.shape_cast %0 : vector<1x8x32xf32> to vector<8x32xf32>
    %c0_2 = arith.constant 0 : index
    %c0_3 = arith.constant 0 : index
    %c0_4 = arith.constant 0 : index
    %2 = vector.load %arg2[%c0_2, %c0_3, %c0_4] : memref<1x8x32xf32, #tpu.memory_space<vmem>>, vector<1x8x32xf32>
    %3 = vector.shape_cast %2 : vector<1x8x32xf32> to vector<8x32xf32>
    %4 = arith.truncf %1 : vector<8x32xf32> to vector<8x32xbf16>
    %c0_5 = arith.constant 0 : index
    %c0_6 = arith.constant 0 : index
    %5 = vector.load %arg3[%c0_5, %c0_6] : memref<32x96xbf16, #tpu.memory_space<vmem>>, vector<32x96xbf16>
    %cst = arith.constant dense<0.000000e+00> : vector<8x96xf32>
    %6 = tpu.matmul %4, %5, %cst {dimension_numbers = #tpu.dot_dimension_numbers<[1], [0], [0], [1], [0, 0, 1, 1], [], []>} : vector<8x32xbf16>, vector<32x96xbf16>, vector<8x96xf32> -> vector<8x96xf32>
    %c0_7 = arith.constant 0 : index
    %c0_8 = arith.constant 0 : index
    %7 = vector.load %arg4[%c0_7, %c0_8] : memref<1x96xf32, #tpu.memory_space<vmem>>, vector<1x96xf32>
    %8 = vector.broadcast %7 : vector<1x96xf32> to vector<8x96xf32>
    %9 = arith.addf %6, %8 : vector<8x96xf32>
    %10 = vector.extract_strided_slice %9 {offsets = [0, 0], sizes = [8, 32], strides = [1, 1]} : vector<8x96xf32> to vector<8x32xf32>
    %11 = vector.extract_strided_slice %9 {offsets = [0, 32], sizes = [8, 32], strides = [1, 1]} : vector<8x96xf32> to vector<8x32xf32>
    %12 = vector.extract_strided_slice %9 {offsets = [0, 64], sizes = [8, 32], strides = [1, 1]} : vector<8x96xf32> to vector<8x32xf32>
    %13 = tpu.iota {dimensions = array<i32: 0>} : vector<8x8xi32>
    %14 = tpu.iota {dimensions = array<i32: 1>} : vector<8x8xi32>
    %15 = arith.cmpi sle, %14, %13 : vector<8x8xi32>
    %16 = vector.extract_strided_slice %10 {offsets = [0, 0], sizes = [8, 8], strides = [1, 1]} : vector<8x32xf32> to vector<8x8xf32>
    %17 = arith.truncf %16 : vector<8x8xf32> to vector<8x8xbf16>
    %18 = vector.extract_strided_slice %11 {offsets = [0, 0], sizes = [8, 8], strides = [1, 1]} : vector<8x32xf32> to vector<8x8xf32>
    %19 = arith.truncf %18 : vector<8x8xf32> to vector<8x8xbf16>
    %20 = vector.extract_strided_slice %12 {offsets = [0, 0], sizes = [8, 8], strides = [1, 1]} : vector<8x32xf32> to vector<8x8xf32>
    %21 = arith.truncf %20 : vector<8x8xf32> to vector<8x8xbf16>
    %cst_9 = arith.constant dense<0.000000e+00> : vector<8x8xf32>
    %22 = tpu.matmul %17, %19, %cst_9 {dimension_numbers = #tpu.dot_dimension_numbers<[1], [1], [0], [0], [0, 0, 1, 0], [], []>} : vector<8x8xbf16>, vector<8x8xbf16>, vector<8x8xf32> -> vector<8x8xf32>
    %cst_10 = arith.constant -1.000000e+30 : f32
    %23 = vector.broadcast %cst_10 : f32 to vector<8x8xf32>
    %24 = arith.select %15, %22, %23 : vector<8x8xi1>, vector<8x8xf32>
    %cst_11 = arith.constant dense<0xFF800000> : vector<8xf32>
    %25 = vector.multi_reduction <maximumf>, %24, %cst_11 [1] : vector<8x8xf32> to vector<8xf32>
    %26 = vector.shape_cast %25 : vector<8xf32> to vector<8x1xf32>
    %27 = vector.broadcast %26 : vector<8x1xf32> to vector<8x8xf32>
    %28 = arith.subf %24, %27 : vector<8x8xf32>
    %29 = math.exp %28 : vector<8x8xf32>
    %cst_12 = arith.constant dense<0.000000e+00> : vector<8xf32>
    %30 = vector.multi_reduction <add>, %29, %cst_12 [1] : vector<8x8xf32> to vector<8xf32>
    %31 = vector.shape_cast %30 : vector<8xf32> to vector<8x1xf32>
    %32 = vector.broadcast %31 : vector<8x1xf32> to vector<8x8xf32>
    %33 = arith.divf %29, %32 : vector<8x8xf32>
    %34 = arith.truncf %33 : vector<8x8xf32> to vector<8x8xbf16>
    %cst_13 = arith.constant dense<0.000000e+00> : vector<8x8xf32>
    %35 = tpu.matmul %34, %21, %cst_13 {dimension_numbers = #tpu.dot_dimension_numbers<[1], [0], [0], [1], [0, 0, 1, 1], [], []>} : vector<8x8xbf16>, vector<8x8xbf16>, vector<8x8xf32> -> vector<8x8xf32>
    %36 = vector.extract_strided_slice %10 {offsets = [0, 8], sizes = [8, 8], strides = [1, 1]} : vector<8x32xf32> to vector<8x8xf32>
    %37 = arith.truncf %36 : vector<8x8xf32> to vector<8x8xbf16>
    %38 = vector.extract_strided_slice %11 {offsets = [0, 8], sizes = [8, 8], strides = [1, 1]} : vector<8x32xf32> to vector<8x8xf32>
    %39 = arith.truncf %38 : vector<8x8xf32> to vector<8x8xbf16>
    %40 = vector.extract_strided_slice %12 {offsets = [0, 8], sizes = [8, 8], strides = [1, 1]} : vector<8x32xf32> to vector<8x8xf32>
    %41 = arith.truncf %40 : vector<8x8xf32> to vector<8x8xbf16>
    %cst_14 = arith.constant dense<0.000000e+00> : vector<8x8xf32>
    %42 = tpu.matmul %37, %39, %cst_14 {dimension_numbers = #tpu.dot_dimension_numbers<[1], [1], [0], [0], [0, 0, 1, 0], [], []>} : vector<8x8xbf16>, vector<8x8xbf16>, vector<8x8xf32> -> vector<8x8xf32>
    %cst_15 = arith.constant -1.000000e+30 : f32
    %43 = vector.broadcast %cst_15 : f32 to vector<8x8xf32>
    %44 = arith.select %15, %42, %43 : vector<8x8xi1>, vector<8x8xf32>
    %cst_16 = arith.constant dense<0xFF800000> : vector<8xf32>
    %45 = vector.multi_reduction <maximumf>, %44, %cst_16 [1] : vector<8x8xf32> to vector<8xf32>
    %46 = vector.shape_cast %45 : vector<8xf32> to vector<8x1xf32>
    %47 = vector.broadcast %46 : vector<8x1xf32> to vector<8x8xf32>
    %48 = arith.subf %44, %47 : vector<8x8xf32>
    %49 = math.exp %48 : vector<8x8xf32>
    %cst_17 = arith.constant dense<0.000000e+00> : vector<8xf32>
    %50 = vector.multi_reduction <add>, %49, %cst_17 [1] : vector<8x8xf32> to vector<8xf32>
    %51 = vector.shape_cast %50 : vector<8xf32> to vector<8x1xf32>
    %52 = vector.broadcast %51 : vector<8x1xf32> to vector<8x8xf32>
    %53 = arith.divf %49, %52 : vector<8x8xf32>
    %54 = arith.truncf %53 : vector<8x8xf32> to vector<8x8xbf16>
    %cst_18 = arith.constant dense<0.000000e+00> : vector<8x8xf32>
    %55 = tpu.matmul %54, %41, %cst_18 {dimension_numbers = #tpu.dot_dimension_numbers<[1], [0], [0], [1], [0, 0, 1, 1], [], []>} : vector<8x8xbf16>, vector<8x8xbf16>, vector<8x8xf32> -> vector<8x8xf32>
    %56 = vector.extract_strided_slice %10 {offsets = [0, 16], sizes = [8, 8], strides = [1, 1]} : vector<8x32xf32> to vector<8x8xf32>
    %57 = arith.truncf %56 : vector<8x8xf32> to vector<8x8xbf16>
    %58 = vector.extract_strided_slice %11 {offsets = [0, 16], sizes = [8, 8], strides = [1, 1]} : vector<8x32xf32> to vector<8x8xf32>
    %59 = arith.truncf %58 : vector<8x8xf32> to vector<8x8xbf16>
    %60 = vector.extract_strided_slice %12 {offsets = [0, 16], sizes = [8, 8], strides = [1, 1]} : vector<8x32xf32> to vector<8x8xf32>
    %61 = arith.truncf %60 : vector<8x8xf32> to vector<8x8xbf16>
    %cst_19 = arith.constant dense<0.000000e+00> : vector<8x8xf32>
    %62 = tpu.matmul %57, %59, %cst_19 {dimension_numbers = #tpu.dot_dimension_numbers<[1], [1], [0], [0], [0, 0, 1, 0], [], []>} : vector<8x8xbf16>, vector<8x8xbf16>, vector<8x8xf32> -> vector<8x8xf32>
    %cst_20 = arith.constant -1.000000e+30 : f32
    %63 = vector.broadcast %cst_20 : f32 to vector<8x8xf32>
    %64 = arith.select %15, %62, %63 : vector<8x8xi1>, vector<8x8xf32>
    %cst_21 = arith.constant dense<0xFF800000> : vector<8xf32>
    %65 = vector.multi_reduction <maximumf>, %64, %cst_21 [1] : vector<8x8xf32> to vector<8xf32>
    %66 = vector.shape_cast %65 : vector<8xf32> to vector<8x1xf32>
    %67 = vector.broadcast %66 : vector<8x1xf32> to vector<8x8xf32>
    %68 = arith.subf %64, %67 : vector<8x8xf32>
    %69 = math.exp %68 : vector<8x8xf32>
    %cst_22 = arith.constant dense<0.000000e+00> : vector<8xf32>
    %70 = vector.multi_reduction <add>, %69, %cst_22 [1] : vector<8x8xf32> to vector<8xf32>
    %71 = vector.shape_cast %70 : vector<8xf32> to vector<8x1xf32>
    %72 = vector.broadcast %71 : vector<8x1xf32> to vector<8x8xf32>
    %73 = arith.divf %69, %72 : vector<8x8xf32>
    %74 = arith.truncf %73 : vector<8x8xf32> to vector<8x8xbf16>
    %cst_23 = arith.constant dense<0.000000e+00> : vector<8x8xf32>
    %75 = tpu.matmul %74, %61, %cst_23 {dimension_numbers = #tpu.dot_dimension_numbers<[1], [0], [0], [1], [0, 0, 1, 1], [], []>} : vector<8x8xbf16>, vector<8x8xbf16>, vector<8x8xf32> -> vector<8x8xf32>
    %76 = vector.extract_strided_slice %10 {offsets = [0, 24], sizes = [8, 8], strides = [1, 1]} : vector<8x32xf32> to vector<8x8xf32>
    %77 = arith.truncf %76 : vector<8x8xf32> to vector<8x8xbf16>
    %78 = vector.extract_strided_slice %11 {offsets = [0, 24], sizes = [8, 8], strides = [1, 1]} : vector<8x32xf32> to vector<8x8xf32>
    %79 = arith.truncf %78 : vector<8x8xf32> to vector<8x8xbf16>
    %80 = vector.extract_strided_slice %12 {offsets = [0, 24], sizes = [8, 8], strides = [1, 1]} : vector<8x32xf32> to vector<8x8xf32>
    %81 = arith.truncf %80 : vector<8x8xf32> to vector<8x8xbf16>
    %cst_24 = arith.constant dense<0.000000e+00> : vector<8x8xf32>
    %82 = tpu.matmul %77, %79, %cst_24 {dimension_numbers = #tpu.dot_dimension_numbers<[1], [1], [0], [0], [0, 0, 1, 0], [], []>} : vector<8x8xbf16>, vector<8x8xbf16>, vector<8x8xf32> -> vector<8x8xf32>
    %cst_25 = arith.constant -1.000000e+30 : f32
    %83 = vector.broadcast %cst_25 : f32 to vector<8x8xf32>
    %84 = arith.select %15, %82, %83 : vector<8x8xi1>, vector<8x8xf32>
    %cst_26 = arith.constant dense<0xFF800000> : vector<8xf32>
    %85 = vector.multi_reduction <maximumf>, %84, %cst_26 [1] : vector<8x8xf32> to vector<8xf32>
    %86 = vector.shape_cast %85 : vector<8xf32> to vector<8x1xf32>
    %87 = vector.broadcast %86 : vector<8x1xf32> to vector<8x8xf32>
    %88 = arith.subf %84, %87 : vector<8x8xf32>
    %89 = math.exp %88 : vector<8x8xf32>
    %cst_27 = arith.constant dense<0.000000e+00> : vector<8xf32>
    %90 = vector.multi_reduction <add>, %89, %cst_27 [1] : vector<8x8xf32> to vector<8xf32>
    %91 = vector.shape_cast %90 : vector<8xf32> to vector<8x1xf32>
    %92 = vector.broadcast %91 : vector<8x1xf32> to vector<8x8xf32>
    %93 = arith.divf %89, %92 : vector<8x8xf32>
    %94 = arith.truncf %93 : vector<8x8xf32> to vector<8x8xbf16>
    %cst_28 = arith.constant dense<0.000000e+00> : vector<8x8xf32>
    %95 = tpu.matmul %94, %81, %cst_28 {dimension_numbers = #tpu.dot_dimension_numbers<[1], [0], [0], [1], [0, 0, 1, 1], [], []>} : vector<8x8xbf16>, vector<8x8xbf16>, vector<8x8xf32> -> vector<8x8xf32>
    %96 = tpu.concatenate %35, %55, %75, %95 in 1 : vector<8x8xf32>, vector<8x8xf32>, vector<8x8xf32>, vector<8x8xf32> -> vector<8x32xf32>
    %97 = arith.truncf %96 : vector<8x32xf32> to vector<8x32xbf16>
    %c0_29 = arith.constant 0 : index
    %c0_30 = arith.constant 0 : index
    %98 = vector.load %arg5[%c0_29, %c0_30] : memref<32x32xbf16, #tpu.memory_space<vmem>>, vector<32x32xbf16>
    %cst_31 = arith.constant dense<0.000000e+00> : vector<8x32xf32>
    %99 = tpu.matmul %97, %98, %cst_31 {dimension_numbers = #tpu.dot_dimension_numbers<[1], [0], [0], [1], [0, 0, 1, 1], [], []>} : vector<8x32xbf16>, vector<32x32xbf16>, vector<8x32xf32> -> vector<8x32xf32>
    %c0_32 = arith.constant 0 : index
    %c0_33 = arith.constant 0 : index
    %100 = vector.load %arg6[%c0_32, %c0_33] : memref<1x32xf32, #tpu.memory_space<vmem>>, vector<1x32xf32>
    %101 = vector.broadcast %100 : vector<1x32xf32> to vector<8x32xf32>
    %102 = arith.addf %99, %101 : vector<8x32xf32>
    %103 = arith.addf %1, %102 : vector<8x32xf32>
    %c0_34 = arith.constant 0 : index
    %c0_35 = arith.constant 0 : index
    %104 = vector.load %arg7[%c0_34, %c0_35] : memref<1x32xf32, #tpu.memory_space<vmem>>, vector<1x32xf32>
    %c0_36 = arith.constant 0 : index
    %c0_37 = arith.constant 0 : index
    %105 = vector.load %arg8[%c0_36, %c0_37] : memref<1x32xf32, #tpu.memory_space<vmem>>, vector<1x32xf32>
    %cst_38 = arith.constant dense<0.000000e+00> : vector<8xf32>
    %106 = vector.multi_reduction <add>, %103, %cst_38 [1] : vector<8x32xf32> to vector<8xf32>
    %107 = vector.shape_cast %106 : vector<8xf32> to vector<8x1xf32>
    %cst_39 = arith.constant 3.200000e+01 : f32
    %108 = vector.broadcast %cst_39 : f32 to vector<8x1xf32>
    %109 = arith.divf %107, %108 : vector<8x1xf32>
    %110 = vector.broadcast %109 : vector<8x1xf32> to vector<8x32xf32>
    %111 = arith.subf %103, %110 : vector<8x32xf32>
    %112 = arith.mulf %111, %111 : vector<8x32xf32>
    %cst_40 = arith.constant dense<0.000000e+00> : vector<8xf32>
    %113 = vector.multi_reduction <add>, %112, %cst_40 [1] : vector<8x32xf32> to vector<8xf32>
    %114 = vector.shape_cast %113 : vector<8xf32> to vector<8x1xf32>
    %cst_41 = arith.constant 3.200000e+01 : f32
    %115 = vector.broadcast %cst_41 : f32 to vector<8x1xf32>
    %116 = arith.divf %114, %115 : vector<8x1xf32>
    %117 = vector.broadcast %109 : vector<8x1xf32> to vector<8x32xf32>
    %118 = arith.subf %103, %117 : vector<8x32xf32>
    %cst_42 = arith.constant 9.99999974E-6 : f32
    %119 = vector.broadcast %cst_42 : f32 to vector<8x1xf32>
    %120 = arith.addf %116, %119 : vector<8x1xf32>
    %121 = math.rsqrt %120 : vector<8x1xf32>
    %122 = vector.broadcast %121 : vector<8x1xf32> to vector<8x32xf32>
    %123 = arith.mulf %118, %122 : vector<8x32xf32>
    %124 = vector.broadcast %104 : vector<1x32xf32> to vector<8x32xf32>
    %125 = arith.mulf %123, %124 : vector<8x32xf32>
    %126 = vector.broadcast %105 : vector<1x32xf32> to vector<8x32xf32>
    %127 = arith.addf %125, %126 : vector<8x32xf32>
    %128 = arith.truncf %127 : vector<8x32xf32> to vector<8x32xbf16>
    %c0_43 = arith.constant 0 : index
    %c0_44 = arith.constant 0 : index
    %129 = vector.load %arg9[%c0_43, %c0_44] : memref<32x96xbf16, #tpu.memory_space<vmem>>, vector<32x32xbf16>
    %cst_45 = arith.constant dense<0.000000e+00> : vector<8x32xf32>
    %130 = tpu.matmul %128, %129, %cst_45 {dimension_numbers = #tpu.dot_dimension_numbers<[1], [0], [0], [1], [0, 0, 1, 1], [], []>} : vector<8x32xbf16>, vector<32x32xbf16>, vector<8x32xf32> -> vector<8x32xf32>
    %c0_46 = arith.constant 0 : index
    %c0_47 = arith.constant 0 : index
    %131 = vector.load %arg10[%c0_46, %c0_47] : memref<1x96xf32, #tpu.memory_space<vmem>>, vector<1x32xf32>
    %132 = vector.broadcast %131 : vector<1x32xf32> to vector<8x32xf32>
    %133 = arith.addf %130, %132 : vector<8x32xf32>
    %134 = arith.truncf %3 : vector<8x32xf32> to vector<8x32xbf16>
    %c0_48 = arith.constant 0 : index
    %c32 = arith.constant 32 : index
    %135 = vector.load %arg9[%c0_48, %c32] : memref<32x96xbf16, #tpu.memory_space<vmem>>, vector<32x64xbf16>
    %cst_49 = arith.constant dense<0.000000e+00> : vector<8x64xf32>
    %136 = tpu.matmul %134, %135, %cst_49 {dimension_numbers = #tpu.dot_dimension_numbers<[1], [0], [0], [1], [0, 0, 1, 1], [], []>} : vector<8x32xbf16>, vector<32x64xbf16>, vector<8x64xf32> -> vector<8x64xf32>
    %c0_50 = arith.constant 0 : index
    %c32_51 = arith.constant 32 : index
    %137 = vector.load %arg10[%c0_50, %c32_51] : memref<1x96xf32, #tpu.memory_space<vmem>>, vector<1x64xf32>
    %138 = vector.broadcast %137 : vector<1x64xf32> to vector<8x64xf32>
    %139 = arith.addf %136, %138 : vector<8x64xf32>
    %140 = vector.extract_strided_slice %139 {offsets = [0, 0], sizes = [8, 32], strides = [1, 1]} : vector<8x64xf32> to vector<8x32xf32>
    %141 = vector.extract_strided_slice %139 {offsets = [0, 32], sizes = [8, 32], strides = [1, 1]} : vector<8x64xf32> to vector<8x32xf32>
    %142 = vector.extract_strided_slice %133 {offsets = [0, 0], sizes = [8, 8], strides = [1, 1]} : vector<8x32xf32> to vector<8x8xf32>
    %143 = arith.truncf %142 : vector<8x8xf32> to vector<8x8xbf16>
    %144 = vector.extract_strided_slice %140 {offsets = [0, 0], sizes = [8, 8], strides = [1, 1]} : vector<8x32xf32> to vector<8x8xf32>
    %145 = arith.truncf %144 : vector<8x8xf32> to vector<8x8xbf16>
    %146 = vector.extract_strided_slice %141 {offsets = [0, 0], sizes = [8, 8], strides = [1, 1]} : vector<8x32xf32> to vector<8x8xf32>
    %147 = arith.truncf %146 : vector<8x8xf32> to vector<8x8xbf16>
    %cst_52 = arith.constant dense<0.000000e+00> : vector<8x8xf32>
    %148 = tpu.matmul %143, %145, %cst_52 {dimension_numbers = #tpu.dot_dimension_numbers<[1], [1], [0], [0], [0, 0, 1, 0], [], []>} : vector<8x8xbf16>, vector<8x8xbf16>, vector<8x8xf32> -> vector<8x8xf32>
    %cst_53 = arith.constant dense<0xFF800000> : vector<8xf32>
    %149 = vector.multi_reduction <maximumf>, %148, %cst_53 [1] : vector<8x8xf32> to vector<8xf32>
    %150 = vector.shape_cast %149 : vector<8xf32> to vector<8x1xf32>
    %151 = vector.broadcast %150 : vector<8x1xf32> to vector<8x8xf32>
    %152 = arith.subf %148, %151 : vector<8x8xf32>
    %153 = math.exp %152 : vector<8x8xf32>
    %cst_54 = arith.constant dense<0.000000e+00> : vector<8xf32>
    %154 = vector.multi_reduction <add>, %153, %cst_54 [1] : vector<8x8xf32> to vector<8xf32>
    %155 = vector.shape_cast %154 : vector<8xf32> to vector<8x1xf32>
    %156 = vector.broadcast %155 : vector<8x1xf32> to vector<8x8xf32>
    %157 = arith.divf %153, %156 : vector<8x8xf32>
    %158 = arith.truncf %157 : vector<8x8xf32> to vector<8x8xbf16>
    %cst_55 = arith.constant dense<0.000000e+00> : vector<8x8xf32>
    %159 = tpu.matmul %158, %147, %cst_55 {dimension_numbers = #tpu.dot_dimension_numbers<[1], [0], [0], [1], [0, 0, 1, 1], [], []>} : vector<8x8xbf16>, vector<8x8xbf16>, vector<8x8xf32> -> vector<8x8xf32>
    %160 = vector.extract_strided_slice %133 {offsets = [0, 8], sizes = [8, 8], strides = [1, 1]} : vector<8x32xf32> to vector<8x8xf32>
    %161 = arith.truncf %160 : vector<8x8xf32> to vector<8x8xbf16>
    %162 = vector.extract_strided_slice %140 {offsets = [0, 8], sizes = [8, 8], strides = [1, 1]} : vector<8x32xf32> to vector<8x8xf32>
    %163 = arith.truncf %162 : vector<8x8xf32> to vector<8x8xbf16>
    %164 = vector.extract_strided_slice %141 {offsets = [0, 8], sizes = [8, 8], strides = [1, 1]} : vector<8x32xf32> to vector<8x8xf32>
    %165 = arith.truncf %164 : vector<8x8xf32> to vector<8x8xbf16>
    %cst_56 = arith.constant dense<0.000000e+00> : vector<8x8xf32>
    %166 = tpu.matmul %161, %163, %cst_56 {dimension_numbers = #tpu.dot_dimension_numbers<[1], [1], [0], [0], [0, 0, 1, 0], [], []>} : vector<8x8xbf16>, vector<8x8xbf16>, vector<8x8xf32> -> vector<8x8xf32>
    %cst_57 = arith.constant dense<0xFF800000> : vector<8xf32>
    %167 = vector.multi_reduction <maximumf>, %166, %cst_57 [1] : vector<8x8xf32> to vector<8xf32>
    %168 = vector.shape_cast %167 : vector<8xf32> to vector<8x1xf32>
    %169 = vector.broadcast %168 : vector<8x1xf32> to vector<8x8xf32>
    %170 = arith.subf %166, %169 : vector<8x8xf32>
    %171 = math.exp %170 : vector<8x8xf32>
    %cst_58 = arith.constant dense<0.000000e+00> : vector<8xf32>
    %172 = vector.multi_reduction <add>, %171, %cst_58 [1] : vector<8x8xf32> to vector<8xf32>
    %173 = vector.shape_cast %172 : vector<8xf32> to vector<8x1xf32>
    %174 = vector.broadcast %173 : vector<8x1xf32> to vector<8x8xf32>
    %175 = arith.divf %171, %174 : vector<8x8xf32>
    %176 = arith.truncf %175 : vector<8x8xf32> to vector<8x8xbf16>
    %cst_59 = arith.constant dense<0.000000e+00> : vector<8x8xf32>
    %177 = tpu.matmul %176, %165, %cst_59 {dimension_numbers = #tpu.dot_dimension_numbers<[1], [0], [0], [1], [0, 0, 1, 1], [], []>} : vector<8x8xbf16>, vector<8x8xbf16>, vector<8x8xf32> -> vector<8x8xf32>
    %178 = vector.extract_strided_slice %133 {offsets = [0, 16], sizes = [8, 8], strides = [1, 1]} : vector<8x32xf32> to vector<8x8xf32>
    %179 = arith.truncf %178 : vector<8x8xf32> to vector<8x8xbf16>
    %180 = vector.extract_strided_slice %140 {offsets = [0, 16], sizes = [8, 8], strides = [1, 1]} : vector<8x32xf32> to vector<8x8xf32>
    %181 = arith.truncf %180 : vector<8x8xf32> to vector<8x8xbf16>
    %182 = vector.extract_strided_slice %141 {offsets = [0, 16], sizes = [8, 8], strides = [1, 1]} : vector<8x32xf32> to vector<8x8xf32>
    %183 = arith.truncf %182 : vector<8x8xf32> to vector<8x8xbf16>
    %cst_60 = arith.constant dense<0.000000e+00> : vector<8x8xf32>
    %184 = tpu.matmul %179, %181, %cst_60 {dimension_numbers = #tpu.dot_dimension_numbers<[1], [1], [0], [0], [0, 0, 1, 0], [], []>} : vector<8x8xbf16>, vector<8x8xbf16>, vector<8x8xf32> -> vector<8x8xf32>
    %cst_61 = arith.constant dense<0xFF800000> : vector<8xf32>
    %185 = vector.multi_reduction <maximumf>, %184, %cst_61 [1] : vector<8x8xf32> to vector<8xf32>
    %186 = vector.shape_cast %185 : vector<8xf32> to vector<8x1xf32>
    %187 = vector.broadcast %186 : vector<8x1xf32> to vector<8x8xf32>
    %188 = arith.subf %184, %187 : vector<8x8xf32>
    %189 = math.exp %188 : vector<8x8xf32>
    %cst_62 = arith.constant dense<0.000000e+00> : vector<8xf32>
    %190 = vector.multi_reduction <add>, %189, %cst_62 [1] : vector<8x8xf32> to vector<8xf32>
    %191 = vector.shape_cast %190 : vector<8xf32> to vector<8x1xf32>
    %192 = vector.broadcast %191 : vector<8x1xf32> to vector<8x8xf32>
    %193 = arith.divf %189, %192 : vector<8x8xf32>
    %194 = arith.truncf %193 : vector<8x8xf32> to vector<8x8xbf16>
    %cst_63 = arith.constant dense<0.000000e+00> : vector<8x8xf32>
    %195 = tpu.matmul %194, %183, %cst_63 {dimension_numbers = #tpu.dot_dimension_numbers<[1], [0], [0], [1], [0, 0, 1, 1], [], []>} : vector<8x8xbf16>, vector<8x8xbf16>, vector<8x8xf32> -> vector<8x8xf32>
    %196 = vector.extract_strided_slice %133 {offsets = [0, 24], sizes = [8, 8], strides = [1, 1]} : vector<8x32xf32> to vector<8x8xf32>
    %197 = arith.truncf %196 : vector<8x8xf32> to vector<8x8xbf16>
    %198 = vector.extract_strided_slice %140 {offsets = [0, 24], sizes = [8, 8], strides = [1, 1]} : vector<8x32xf32> to vector<8x8xf32>
    %199 = arith.truncf %198 : vector<8x8xf32> to vector<8x8xbf16>
    %200 = vector.extract_strided_slice %141 {offsets = [0, 24], sizes = [8, 8], strides = [1, 1]} : vector<8x32xf32> to vector<8x8xf32>
    %201 = arith.truncf %200 : vector<8x8xf32> to vector<8x8xbf16>
    %cst_64 = arith.constant dense<0.000000e+00> : vector<8x8xf32>
    %202 = tpu.matmul %197, %199, %cst_64 {dimension_numbers = #tpu.dot_dimension_numbers<[1], [1], [0], [0], [0, 0, 1, 0], [], []>} : vector<8x8xbf16>, vector<8x8xbf16>, vector<8x8xf32> -> vector<8x8xf32>
    %cst_65 = arith.constant dense<0xFF800000> : vector<8xf32>
    %203 = vector.multi_reduction <maximumf>, %202, %cst_65 [1] : vector<8x8xf32> to vector<8xf32>
    %204 = vector.shape_cast %203 : vector<8xf32> to vector<8x1xf32>
    %205 = vector.broadcast %204 : vector<8x1xf32> to vector<8x8xf32>
    %206 = arith.subf %202, %205 : vector<8x8xf32>
    %207 = math.exp %206 : vector<8x8xf32>
    %cst_66 = arith.constant dense<0.000000e+00> : vector<8xf32>
    %208 = vector.multi_reduction <add>, %207, %cst_66 [1] : vector<8x8xf32> to vector<8xf32>
    %209 = vector.shape_cast %208 : vector<8xf32> to vector<8x1xf32>
    %210 = vector.broadcast %209 : vector<8x1xf32> to vector<8x8xf32>
    %211 = arith.divf %207, %210 : vector<8x8xf32>
    %212 = arith.truncf %211 : vector<8x8xf32> to vector<8x8xbf16>
    %cst_67 = arith.constant dense<0.000000e+00> : vector<8x8xf32>
    %213 = tpu.matmul %212, %201, %cst_67 {dimension_numbers = #tpu.dot_dimension_numbers<[1], [0], [0], [1], [0, 0, 1, 1], [], []>} : vector<8x8xbf16>, vector<8x8xbf16>, vector<8x8xf32> -> vector<8x8xf32>
    %214 = tpu.concatenate %159, %177, %195, %213 in 1 : vector<8x8xf32>, vector<8x8xf32>, vector<8x8xf32>, vector<8x8xf32> -> vector<8x32xf32>
    %215 = arith.truncf %214 : vector<8x32xf32> to vector<8x32xbf16>
    %c0_68 = arith.constant 0 : index
    %c0_69 = arith.constant 0 : index
    %216 = vector.load %arg11[%c0_68, %c0_69] : memref<32x32xbf16, #tpu.memory_space<vmem>>, vector<32x32xbf16>
    %cst_70 = arith.constant dense<0.000000e+00> : vector<8x32xf32>
    %217 = tpu.matmul %215, %216, %cst_70 {dimension_numbers = #tpu.dot_dimension_numbers<[1], [0], [0], [1], [0, 0, 1, 1], [], []>} : vector<8x32xbf16>, vector<32x32xbf16>, vector<8x32xf32> -> vector<8x32xf32>
    %c0_71 = arith.constant 0 : index
    %c0_72 = arith.constant 0 : index
    %218 = vector.load %arg12[%c0_71, %c0_72] : memref<1x32xf32, #tpu.memory_space<vmem>>, vector<1x32xf32>
    %219 = vector.broadcast %218 : vector<1x32xf32> to vector<8x32xf32>
    %220 = arith.addf %217, %219 : vector<8x32xf32>
    %221 = arith.addf %127, %220 : vector<8x32xf32>
    %c0_73 = arith.constant 0 : index
    %c0_74 = arith.constant 0 : index
    %222 = vector.load %arg13[%c0_73, %c0_74] : memref<1x32xf32, #tpu.memory_space<vmem>>, vector<1x32xf32>
    %c0_75 = arith.constant 0 : index
    %c0_76 = arith.constant 0 : index
    %223 = vector.load %arg14[%c0_75, %c0_76] : memref<1x32xf32, #tpu.memory_space<vmem>>, vector<1x32xf32>
    %cst_77 = arith.constant dense<0.000000e+00> : vector<8xf32>
    %224 = vector.multi_reduction <add>, %221, %cst_77 [1] : vector<8x32xf32> to vector<8xf32>
    %225 = vector.shape_cast %224 : vector<8xf32> to vector<8x1xf32>
    %cst_78 = arith.constant 3.200000e+01 : f32
    %226 = vector.broadcast %cst_78 : f32 to vector<8x1xf32>
    %227 = arith.divf %225, %226 : vector<8x1xf32>
    %228 = vector.broadcast %227 : vector<8x1xf32> to vector<8x32xf32>
    %229 = arith.subf %221, %228 : vector<8x32xf32>
    %230 = arith.mulf %229, %229 : vector<8x32xf32>
    %cst_79 = arith.constant dense<0.000000e+00> : vector<8xf32>
    %231 = vector.multi_reduction <add>, %230, %cst_79 [1] : vector<8x32xf32> to vector<8xf32>
    %232 = vector.shape_cast %231 : vector<8xf32> to vector<8x1xf32>
    %cst_80 = arith.constant 3.200000e+01 : f32
    %233 = vector.broadcast %cst_80 : f32 to vector<8x1xf32>
    %234 = arith.divf %232, %233 : vector<8x1xf32>
    %235 = vector.broadcast %227 : vector<8x1xf32> to vector<8x32xf32>
    %236 = arith.subf %221, %235 : vector<8x32xf32>
    %cst_81 = arith.constant 9.99999974E-6 : f32
    %237 = vector.broadcast %cst_81 : f32 to vector<8x1xf32>
    %238 = arith.addf %234, %237 : vector<8x1xf32>
    %239 = math.rsqrt %238 : vector<8x1xf32>
    %240 = vector.broadcast %239 : vector<8x1xf32> to vector<8x32xf32>
    %241 = arith.mulf %236, %240 : vector<8x32xf32>
    %242 = vector.broadcast %222 : vector<1x32xf32> to vector<8x32xf32>
    %243 = arith.mulf %241, %242 : vector<8x32xf32>
    %244 = vector.broadcast %223 : vector<1x32xf32> to vector<8x32xf32>
    %245 = arith.addf %243, %244 : vector<8x32xf32>
    %246 = arith.truncf %245 : vector<8x32xf32> to vector<8x32xbf16>
    %c0_82 = arith.constant 0 : index
    %c0_83 = arith.constant 0 : index
    %247 = vector.load %arg15[%c0_82, %c0_83] : memref<32x64xbf16, #tpu.memory_space<vmem>>, vector<32x64xbf16>
    %cst_84 = arith.constant dense<0.000000e+00> : vector<8x64xf32>
    %248 = tpu.matmul %246, %247, %cst_84 {dimension_numbers = #tpu.dot_dimension_numbers<[1], [0], [0], [1], [0, 0, 1, 1], [], []>} : vector<8x32xbf16>, vector<32x64xbf16>, vector<8x64xf32> -> vector<8x64xf32>
    %c0_85 = arith.constant 0 : index
    %c0_86 = arith.constant 0 : index
    %249 = vector.load %arg16[%c0_85, %c0_86] : memref<1x64xf32, #tpu.memory_space<vmem>>, vector<1x64xf32>
    %250 = vector.broadcast %249 : vector<1x64xf32> to vector<8x64xf32>
    %251 = arith.addf %248, %250 : vector<8x64xf32>
    %cst_87 = arith.constant 0.000000e+00 : f32
    %252 = vector.broadcast %cst_87 : f32 to vector<8x64xf32>
    %253 = arith.maximumf %251, %252 : vector<8x64xf32>
    %254 = arith.truncf %253 : vector<8x64xf32> to vector<8x64xbf16>
    %c0_88 = arith.constant 0 : index
    %c0_89 = arith.constant 0 : index
    %255 = vector.load %arg17[%c0_88, %c0_89] : memref<64x32xbf16, #tpu.memory_space<vmem>>, vector<64x32xbf16>
    %cst_90 = arith.constant dense<0.000000e+00> : vector<8x32xf32>
    %256 = tpu.matmul %254, %255, %cst_90 {dimension_numbers = #tpu.dot_dimension_numbers<[1], [0], [0], [1], [0, 0, 1, 1], [], []>} : vector<8x64xbf16>, vector<64x32xbf16>, vector<8x32xf32> -> vector<8x32xf32>
    %c0_91 = arith.constant 0 : index
    %c0_92 = arith.constant 0 : index
    %257 = vector.load %arg18[%c0_91, %c0_92] : memref<1x32xf32, #tpu.memory_space<vmem>>, vector<1x32xf32>
    %258 = vector.broadcast %257 : vector<1x32xf32> to vector<8x32xf32>
    %259 = arith.addf %256, %258 : vector<8x32xf32>
    %260 = arith.addf %245, %259 : vector<8x32xf32>
    %c0_93 = arith.constant 0 : index
    %c0_94 = arith.constant 0 : index
    %261 = vector.load %arg19[%c0_93, %c0_94] : memref<1x32xf32, #tpu.memory_space<vmem>>, vector<1x32xf32>
    %c0_95 = arith.constant 0 : index
    %c0_96 = arith.constant 0 : index
    %262 = vector.load %arg20[%c0_95, %c0_96] : memref<1x32xf32, #tpu.memory_space<vmem>>, vector<1x32xf32>
    %cst_97 = arith.constant dense<0.000000e+00> : vector<8xf32>
    %263 = vector.multi_reduction <add>, %260, %cst_97 [1] : vector<8x32xf32> to vector<8xf32>
    %264 = vector.shape_cast %263 : vector<8xf32> to vector<8x1xf32>
    %cst_98 = arith.constant 3.200000e+01 : f32
    %265 = vector.broadcast %cst_98 : f32 to vector<8x1xf32>
    %266 = arith.divf %264, %265 : vector<8x1xf32>
    %267 = vector.broadcast %266 : vector<8x1xf32> to vector<8x32xf32>
    %268 = arith.subf %260, %267 : vector<8x32xf32>
    %269 = arith.mulf %268, %268 : vector<8x32xf32>
    %cst_99 = arith.constant dense<0.000000e+00> : vector<8xf32>
    %270 = vector.multi_reduction <add>, %269, %cst_99 [1] : vector<8x32xf32> to vector<8xf32>
    %271 = vector.shape_cast %270 : vector<8xf32> to vector<8x1xf32>
    %cst_100 = arith.constant 3.200000e+01 : f32
    %272 = vector.broadcast %cst_100 : f32 to vector<8x1xf32>
    %273 = arith.divf %271, %272 : vector<8x1xf32>
    %274 = vector.broadcast %266 : vector<8x1xf32> to vector<8x32xf32>
    %275 = arith.subf %260, %274 : vector<8x32xf32>
    %cst_101 = arith.constant 9.99999974E-6 : f32
    %276 = vector.broadcast %cst_101 : f32 to vector<8x1xf32>
    %277 = arith.addf %273, %276 : vector<8x1xf32>
    %278 = math.rsqrt %277 : vector<8x1xf32>
    %279 = vector.broadcast %278 : vector<8x1xf32> to vector<8x32xf32>
    %280 = arith.mulf %275, %279 : vector<8x32xf32>
    %281 = vector.broadcast %261 : vector<1x32xf32> to vector<8x32xf32>
    %282 = arith.mulf %280, %281 : vector<8x32xf32>
    %283 = vector.broadcast %262 : vector<1x32xf32> to vector<8x32xf32>
    %284 = arith.addf %282, %283 : vector<8x32xf32>
    %c0_102 = arith.constant 0 : index
    %c0_103 = arith.constant 0 : index
    %c0_104 = arith.constant 0 : index
    %285 = vector.load %arg21[%c0_102, %c0_103, %c0_104] : memref<1x8x32xf32, #tpu.memory_space<vmem>>, vector<1x8x32xf32>
    %286 = vector.shape_cast %285 : vector<1x8x32xf32> to vector<8x32xf32>
    %287 = vector.shape_cast %284 : vector<8x32xf32> to vector<1x8x32xf32>
    tpu.vector_store %arg21[%c0_102, %c0_103, %c0_104], %287 {strides = array<i32>} : memref<1x8x32xf32, #tpu.memory_space<vmem>>, vector<1x8x32xf32>,
    return
  }
  func.func @transform_0(%arg0: i32) -> (i32, i32, i32) {
    %c0_i32 = arith.constant 0 : i32
    %c0_i32_0 = arith.constant 0 : i32
    %c0_i32_1 = arith.constant 0 : i32
    return %arg0, %c0_i32, %c0_i32_0 : i32, i32, i32
  }
  func.func @transform_1(%arg0: i32) -> (i32, i32, i32) {
    %c0_i32 = arith.constant 0 : i32
    %c0_i32_0 = arith.constant 0 : i32
    %c0_i32_1 = arith.constant 0 : i32
    return %arg0, %c0_i32, %c0_i32_0 : i32, i32, i32
  }
  func.func @transform_2(%arg0: i32) -> (i32, i32) {
    %c0_i32 = arith.constant 0 : i32
    %c0_i32_0 = arith.constant 0 : i32
    %c0_i32_1 = arith.constant 0 : i32
    return %c0_i32, %c0_i32_0 : i32, i32
  }
  func.func @transform_3(%arg0: i32) -> (i32, i32) {
    %c0_i32 = arith.constant 0 : i32
    %c0_i32_0 = arith.constant 0 : i32
    %c0_i32_1 = arith.constant 0 : i32
    return %c0_i32, %c0_i32_0 : i32, i32
  }
  func.func @transform_4(%arg0: i32) -> (i32, i32) {
    %c0_i32 = arith.constant 0 : i32
    %c0_i32_0 = arith.constant 0 : i32
    %c0_i32_1 = arith.constant 0 : i32
    return %c0_i32, %c0_i32_0 : i32, i32
  }
  func.func @transform_5(%arg0: i32) -> (i32, i32) {
    %c0_i32 = arith.constant 0 : i32
    %c0_i32_0 = arith.constant 0 : i32
    %c0_i32_1 = arith.constant 0 : i32
    return %c0_i32, %c0_i32_0 : i32, i32
  }
  func.func @transform_6(%arg0: i32) -> (i32, i32) {
    %c0_i32 = arith.constant 0 : i32
    %c0_i32_0 = arith.constant 0 : i32
    %c0_i32_1 = arith.constant 0 : i32
    return %c0_i32, %c0_i32_0 : i32, i32
  }
  func.func @transform_7(%arg0: i32) -> (i32, i32) {
    %c0_i32 = arith.constant 0 : i32
    %c0_i32_0 = arith.constant 0 : i32
    %c0_i32_1 = arith.constant 0 : i32
    return %c0_i32, %c0_i32_0 : i32, i32
  }
  func.func @transform_8(%arg0: i32) -> (i32, i32) {
    %c0_i32 = arith.constant 0 : i32
    %c0_i32_0 = arith.constant 0 : i32
    %c0_i32_1 = arith.constant 0 : i32
    return %c0_i32, %c0_i32_0 : i32, i32
  }
  func.func @transform_9(%arg0: i32) -> (i32, i32) {
    %c0_i32 = arith.constant 0 : i32
    %c0_i32_0 = arith.constant 0 : i32
    %c0_i32_1 = arith.constant 0 : i32
    return %c0_i32, %c0_i32_0 : i32, i32
  }
  func.func @transform_10(%arg0: i32) -> (i32, i32) {
    %c0_i32 = arith.constant 0 : i32
    %c0_i32_0 = arith.constant 0 : i32
    %c0_i32_1 = arith.constant 0 : i32
    return %c0_i32, %c0_i32_0 : i32, i32
  }
  func.func @transform_11(%arg0: i32) -> (i32, i32) {
    %c0_i32 = arith.constant 0 : i32
    %c0_i32_0 = arith.constant 0 : i32
    %c0_i32_1 = arith.constant 0 : i32
    return %c0_i32, %c0_i32_0 : i32, i32
  }
  func.func @transform_12(%arg0: i32) -> (i32, i32) {
    %c0_i32 = arith.constant 0 : i32
    %c0_i32_0 = arith.constant 0 : i32
    %c0_i32_1 = arith.constant 0 : i32
    return %c0_i32, %c0_i32_0 : i32, i32
  }
  func.func @transform_13(%arg0: i32) -> (i32, i32) {
    %c0_i32 = arith.constant 0 : i32
    %c0_i32_0 = arith.constant 0 : i32
    %c0_i32_1 = arith.constant 0 : i32
    return %c0_i32, %c0_i32_0 : i32, i32
  }
  func.func @transform_14(%arg0: i32) -> (i32, i32) {
    %c0_i32 = arith.constant 0 : i32
    %c0_i32_0 = arith.constant 0 : i32
    %c0_i32_1 = arith.constant 0 : i32
    return %c0_i32, %c0_i32_0 : i32, i32
  }
  func.func @transform_15(%arg0: i32) -> (i32, i32) {
    %c0_i32 = arith.constant 0 : i32
    %c0_i32_0 = arith.constant 0 : i32
    %c0_i32_1 = arith.constant 0 : i32
    return %c0_i32, %c0_i32_0 : i32, i32
  }
  func.func @transform_16(%arg0: i32) -> (i32, i32) {
    %c0_i32 = arith.constant 0 : i32
    %c0_i32_0 = arith.constant 0 : i32
    %c0_i32_1 = arith.constant 0 : i32
    return %c0_i32, %c0_i32_0 : i32, i32
  }
  func.func @transform_17(%arg0: i32) -> (i32, i32) {
    %c0_i32 = arith.constant 0 : i32
    %c0_i32_0 = arith.constant 0 : i32
    %c0_i32_1 = arith.constant 0 : i32
    return %c0_i32, %c0_i32_0 : i32, i32
  }
  func.func @transform_18(%arg0: i32) -> (i32, i32) {
    %c0_i32 = arith.constant 0 : i32
    %c0_i32_0 = arith.constant 0 : i32
    %c0_i32_1 = arith.constant 0 : i32
    return %c0_i32, %c0_i32_0 : i32, i32
  }
  func.func @transform_19(%arg0: i32) -> (i32, i32) {
    %c0_i32 = arith.constant 0 : i32
    %c0_i32_0 = arith.constant 0 : i32
    %c0_i32_1 = arith.constant 0 : i32
    return %c0_i32, %c0_i32_0 : i32, i32
  }
  func.func @transform_20(%arg0: i32) -> (i32, i32, i32) {
    %c0_i32 = arith.constant 0 : i32
    %c0_i32_0 = arith.constant 0 : i32
    %c0_i32_1 = arith.constant 0 : i32
    return %arg0, %c0_i32, %c0_i32_0 : i32, i32, i32
  }
}

</mosaic_0001>

<llo_original>
// kernel: transformer_forward.9
$region0: #{transformer_forward.9}
  #allocation0 [shape = 'u32[]', space=smem, size = 0x4, offset = 0x4, fixed_abs, tag = 'smem constant byte address 0x4 - core index']
  #allocation1 [shape = 'u32[144,128]{1,0:T(1,128)}', space=vmem, size = 0x12000, scoped, tag = 'internal scratch']
  %s0 = inlined_call_operand.vmem [shape: f32[16,32], index: 0, kind: input, shape index: {}]
  %s1 = inlined_call_operand.vmem [shape: bf16[32,32], index: 1, kind: input, shape index: {}]
  %s2 = inlined_call_operand.vmem [shape: f32[1,32], index: 2, kind: input, shape index: {}]
  %s3 = inlined_call_operand.hbm [shape: f32[16,32], index: 3, kind: output, shape index: {}]
  %s4 = sld [smem:[#allocation0]]
  $region22: #{transformer_forward.9} parent=0
    _
  %s6 = ssub.s32 1, %s4
  %s7 = scalar_select 0, %s6, %s4
  $region1: #{transformer_forward.9} parent=0
    #allocation2 [shape = 'u8[8192]{0}', space=vmem, size = 0x2000, scoped, tag = 'output window, operand 0, single buffered']
    #allocation3 [shape = 's32[1]{0}', space=sflag, size = 0x4, scoped, tag = 'scoped memory for transformer_forward.9']
    %8 = vsyncpa [#allocation3], 0
    // Predicated region
    $region2: #{transformer_forward.9} parent=1 // pred_check
      _
    $region3: #{transformer_forward.9} parent=1 // pred_check_branch
      %10 = sbr.rel (0) target = $region5
    $region4: #{transformer_forward.9} parent=1 // pred_region
      _
    $region5: #{transformer_forward.9} parent=1 // pred_fallthru
      _
    // Predicated region
    $region6: #{transformer_forward.9} parent=1 // pred_check
      _
    $region7: #{transformer_forward.9} parent=1 // pred_check_branch
      %12 = sbr.rel (0) target = $region9
    $region8: #{transformer_forward.9} parent=1 // pred_region
      _
    $region9: #{transformer_forward.9} parent=1 // pred_fallthru
      _
    // Predicated region
    $region10: #{transformer_forward.9} parent=1 // pred_check
      _
    $region11: #{transformer_forward.9} parent=1 // pred_check_branch
      %14 = sbr.rel (0) target = $region13
    $region12: #{transformer_forward.9} parent=1 // pred_region
      _
    $region13: #{transformer_forward.9} parent=1 // pred_fallthru
      _
    %v16 = vld [vmem:[%s0] sm:$0xff]
    %v17 = vld [vmem:[%s0 + $0x8] sm:$0xff]
    %v18 = vpack.c.bf16 %v17, %v16
    %v19 = vld [vmem:[%s1] sm:$0xf]
    %v20 = vld [vmem:[%s1 + $0x4] sm:$0xf]
    %v21 = vld [vmem:[%s1 + $0x8] sm:$0xf]
    %v22 = vld [vmem:[%s1 + $0xc] sm:$0xf]
    %v23 = vld [vmem:[%s2] sm:$0x1]
    %v25 = vlaneseq
    %v26 = vshrl.u32 %v25, 7
    %v27 = vsub.s32 0, %v26
    %v28 = vrot.slane %v23, %v27
    %v34 = vunpack.c.l.b16 %v19
    %v35 = vunpack.c.l.b16 %v20
    %v36 = vunpack.c.l.b16 %v21
    %v37 = vunpack.c.l.b16 %v22
    %v38 = vpack.c.b16 %v35, %v34
    %v39 = vpack.c.b16 %v37, %v36
    %vm42 = vcmask 261120
    %v44 = vsel %vm42, %v18, 0
    %46 = vmatprep.subr.bf16.mxu0 0
    %47 = vmatpush1.bf16.msra.mxu0 0
    %48 = vmatprep.subr.bf16.mxu0 0
    %49 = vmatpush1.bf16.msra.mxu0 0
    %50 = vmatprep.subr.bf16.mxu0 0
    %51 = vmatpush1.bf16.msra.mxu0 0
    %52 = vmatprep.subr.bf16.mxu0 0
    %53 = vmatpush1.bf16.msra.mxu0 0
    %54 = vmatprep.subr.bf16.mxu0 0
    %55 = vmatpush1.bf16.msra.mxu0 0
    %56 = vmatprep.subr.bf16.mxu0 0
    %57 = vmatpush1.bf16.msra.mxu0 0
    %58 = vmatprep.subr.bf16.mxu0 0
    %59 = vmatpush1.bf16.msra.mxu0 %v39
    %60 = vmatprep.subr.bf16.mxu0 0
    %61 = vmatpush1.bf16.msra.mxu0 %v38
    %62 = vmatprep.subr.bf16.mxu0 0
    %63 = vmatpush2.bf16.msra.mxu0 0
    %64 = vmatprep.subr.bf16.mxu0 0
    %65 = vmatpush2.bf16.msra.mxu0 0
    %66 = vmatprep.subr.bf16.mxu0 0
    %67 = vmatpush2.bf16.msra.mxu0 0
    %68 = vmatprep.subr.bf16.mxu0 0
    %69 = vmatpush2.bf16.msra.mxu0 0
    %70 = vmatprep.subr.bf16.mxu0 0
    %71 = vmatpush2.bf16.msra.mxu0 0
    %72 = vmatprep.subr.bf16.mxu0 0
    %73 = vmatpush2.bf16.msra.mxu0 0
    %74 = vmatprep.subr.bf16.mxu0 0
    %75 = vmatpush2.bf16.msra.mxu0 0
    %76 = vmatprep.subr.bf16.mxu0 0
    %77 = vmatpush2.bf16.msra.mxu0 0
    %78 = vmatprep.mubr.bf16.mxu0 0
    %79 = vmatmul.mubr.bf16.gmra.mxu0 %v44
    %v80 = vpop.f32.mrf.mxu0
    %v81 = vadd.f32 %v28, %v80
    %v82 = vpop.f32.mrf.mxu0
    %v83 = vpop.f32.mrf.mxu0
    %v84 = vadd.f32 %v28, %v83
    %v85 = vpop.f32.mrf.mxu0
    %86 = vdwg.mxu0
    %87 = vst.msk [vmem:[#allocation2] sm:$0xff] %vm42, %v81
    %88 = vst.msk [vmem:[#allocation2 + $0x8] sm:$0xff] %vm42, %v84
    // Predicated region
    $region14: #{transformer_forward.9} parent=1 // pred_check
      _
    $region15: #{transformer_forward.9} parent=1 // pred_check_branch
      %90 = sbr.rel (0) target = $region17
    $region16: #{transformer_forward.9} parent=1 // pred_region
      %s92 = ssub.s32 256, 256
      %93 = vsyncadd [#allocation3], %s92
      %s94 = sshll.u32 [#allocation2], 4
      %s95 = int_to_ptr.vmem [resolvable:$true] %s94
      %100 = dma.vmem_to_hbm [thread:$0]  %s95, 256, %s3, [#allocation3], 128, 128, 8
    $region17: #{transformer_forward.9} parent=1 // pred_fallthru
      _
    // Predicated region
    $region18: #{transformer_forward.9} parent=1 // pred_check
      _
    $region19: #{transformer_forward.9} parent=1 // pred_check_branch
      %102 = sbr.rel (0) target = $region21
    $region20: #{transformer_forward.9} parent=1 // pred_region
      %103 = dma.done [#allocation3], 256
    $region21: #{transformer_forward.9} parent=1 // pred_fallthru
      _
    %104 = vsyncpa [#allocation3], 1

// kernel: transformer_forward.5
$region0: #{transformer_forward.5}
  #allocation0 [shape = 'u32[]', space=smem, size = 0x4, offset = 0x4, fixed_abs, tag = 'smem constant byte address 0x4 - core index']
  #allocation1 [shape = 'u32[144,128]{1,0:T(1,128)}', space=vmem, size = 0x12000, scoped, tag = 'internal scratch']
  %s0 = inlined_call_operand.vmem [shape: f32[2,8,32], index: 0, kind: input, shape index: {}]
  %s1 = inlined_call_operand.vmem [shape: bf16[32,96], index: 1, kind: input, shape index: {}]
  %s2 = inlined_call_operand.vmem [shape: f32[1,96], index: 2, kind: input, shape index: {}]
  %s3 = inlined_call_operand.vmem [shape: bf16[32,32], index: 3, kind: input, shape index: {}]
  %s4 = inlined_call_operand.vmem [shape: f32[1,32], index: 4, kind: input, shape index: {}]
  %s5 = inlined_call_operand.vmem [shape: f32[1,32], index: 5, kind: input, shape index: {}]
  %s6 = inlined_call_operand.vmem [shape: f32[1,32], index: 6, kind: input, shape index: {}]
  %s7 = inlined_call_operand.vmem [shape: bf16[32,64], index: 7, kind: input, shape index: {}]
  %s8 = inlined_call_operand.vmem [shape: f32[1,64], index: 8, kind: input, shape index: {}]
  %s9 = inlined_call_operand.vmem [shape: bf16[64,32], index: 9, kind: input, shape index: {}]
  %s10 = inlined_call_operand.vmem [shape: f32[1,32], index: 10, kind: input, shape index: {}]
  %s11 = inlined_call_operand.vmem [shape: f32[1,32], index: 11, kind: input, shape index: {}]
  %s12 = inlined_call_operand.vmem [shape: f32[1,32], index: 12, kind: input, shape index: {}]
  %s13 = inlined_call_operand.vmem [shape: f32[2,8,32], index: 13, kind: output, shape index: {}]
  %s14 = sld [smem:[#allocation0]]
  $region85: #{transformer_forward.5} parent=0
    _
  %s16 = ssub.s32 1, %s14
  %s17 = scalar_select 0, %s16, %s14
  loop: start=0, step=1, limit=4
  $region2: #{transformer_forward.5} parent=0 // loop_pre_header
    _
  $region3: #{transformer_forward.5} parent=0 // loop_header
    %s19 = sphi 0, %s23
    %p20 = scmp.ge.s32.totalorder %s19, 4
    %s29 = sphi 0, %s31
    %s32 = sphi 0, %s29
    %s33 = sphi 0, %s32
    %s49 = sphi 0, %s33
    %s53 = sphi 0, %s53
    %s55 = sphi 0, %s53
    %s56 = sphi 0, %s55
    %s70 = sphi 0, %s56
    %s74 = sphi 0, %s74
    %s76 = sphi 0, %s74
    %s77 = sphi 0, %s76
    %s91 = sphi 0, %s77
    %s95 = sphi 0, %s95
    %s97 = sphi 0, %s95
    %s98 = sphi 0, %s97
    %s112 = sphi 0, %s98
    %s116 = sphi 0, %s116
    %s118 = sphi 0, %s116
    %s119 = sphi 0, %s118
    %s133 = sphi 0, %s119
    %s137 = sphi 0, %s137
    %s139 = sphi 0, %s137
    %s140 = sphi 0, %s139
    %s154 = sphi 0, %s140
    %s158 = sphi 0, %s158
    %s160 = sphi 0, %s158
    %s161 = sphi 0, %s160
    %s175 = sphi 0, %s161
    %s179 = sphi 0, %s179
    %s181 = sphi 0, %s179
    %s182 = sphi 0, %s181
    %s196 = sphi 0, %s182
    %s200 = sphi 0, %s200
    %s202 = sphi 0, %s200
    %s203 = sphi 0, %s202
    %s217 = sphi 0, %s203
    %s221 = sphi 0, %s221
    %s223 = sphi 0, %s221
    %s224 = sphi 0, %s223
    %s238 = sphi 0, %s224
    %s242 = sphi 0, %s242
    %s244 = sphi 0, %s242
    %s245 = sphi 0, %s244
    %s259 = sphi 0, %s245
    %s263 = sphi 0, %s263
    %s265 = sphi 0, %s263
    %s266 = sphi 0, %s265
    %s280 = sphi 0, %s266
    %s284 = sphi 0, %s284
    %s286 = sphi 0, %s284
    %s287 = sphi 0, %s286
    %s301 = sphi 0, %s287
    %s307 = sphi 0, %s309
    %s310 = sphi 0, %s307
    %s311 = sphi 0, %s310
    %s327 = sphi 0, %s311
  $region4: #{transformer_forward.5} parent=0 // loop_header_branch
    %22 = sbr.rel (%p20) target = $region8
  $region5: #{transformer_forward.5} parent=0 // loop_body
    %s24 = ssub.s32 %s19, 1
    %s25 = ssub.s32 %s19, 2
    %s26 = sadd.s32 %s19, 1
    %s27 = ssub.s32 %s19, %s26
    %p28 = scmp.eq.s32.totalorder %s27, 0
    %s30 = sadd.s32 %s29, 1
    %s31 = scalar_select %p28, %s29, %s30
    %p34 = pneg %p28
    %p35 = scmp.eq.s32.totalorder %s19, 1
    %p36 = por %p34, %p35
    %p37 = scmp.ne.s32.totalorder %s29, %s32
    %p38 = scmp.eq.s32.totalorder %s19, 0
    %p39 = por %p37, %p38
    %p40 = scmp.ne.s32.totalorder %s29, %s32
    %p41 = scmp.eq.s32.totalorder %s24, 1
    %p42 = por %p40, %p41
    %p43 = scmp.ne.s32.totalorder %s32, %s33
    %p44 = scmp.eq.s32.totalorder %s24, 0
    %p45 = por %p43, %p44
    %p46 = scmp.ne.s32.totalorder %s32, %s33
    %p47 = scmp.eq.s32.totalorder %s25, 1
    %p48 = por %p46, %p47
    %p50 = scmp.ne.s32.totalorder %s33, %s49
    %p51 = scmp.eq.s32.totalorder %s25, 0
    %p52 = por %p50, %p51
    %s54 = sadd.s32 %s53, 1
    %p57 = scmp.eq.s32.totalorder %s19, 1
    %p58 = scmp.ne.s32.totalorder %s53, %s55
    %p59 = scmp.eq.s32.totalorder %s19, 0
    %p60 = por %p58, %p59
    %p61 = scmp.ne.s32.totalorder %s53, %s55
    %p62 = scmp.eq.s32.totalorder %s24, 1
    %p63 = por %p61, %p62
    %p64 = scmp.ne.s32.totalorder %s55, %s56
    %p65 = scmp.eq.s32.totalorder %s24, 0
    %p66 = por %p64, %p65
    %p67 = scmp.ne.s32.totalorder %s55, %s56
    %p68 = scmp.eq.s32.totalorder %s25, 1
    %p69 = por %p67, %p68
    %p71 = scmp.ne.s32.totalorder %s56, %s70
    %p72 = scmp.eq.s32.totalorder %s25, 0
    %p73 = por %p71, %p72
    %s75 = sadd.s32 %s74, 1
    %p78 = scmp.eq.s32.totalorder %s19, 1
    %p79 = scmp.ne.s32.totalorder %s74, %s76
    %p80 = scmp.eq.s32.totalorder %s19, 0
    %p81 = por %p79, %p80
    %p82 = scmp.ne.s32.totalorder %s74, %s76
    %p83 = scmp.eq.s32.totalorder %s24, 1
    %p84 = por %p82, %p83
    %p85 = scmp.ne.s32.totalorder %s76, %s77
    %p86 = scmp.eq.s32.totalorder %s24, 0
    %p87 = por %p85, %p86
    %p88 = scmp.ne.s32.totalorder %s76, %s77
    %p89 = scmp.eq.s32.totalorder %s25, 1
    %p90 = por %p88, %p89
    %p92 = scmp.ne.s32.totalorder %s77, %s91
    %p93 = scmp.eq.s32.totalorder %s25, 0
    %p94 = por %p92, %p93
    %s96 = sadd.s32 %s95, 1
    %p99 = scmp.eq.s32.totalorder %s19, 1
    %p100 = scmp.ne.s32.totalorder %s95, %s97
    %p101 = scmp.eq.s32.totalorder %s19, 0
    %p102 = por %p100, %p101
    %p103 = scmp.ne.s32.totalorder %s95, %s97
    %p104 = scmp.eq.s32.totalorder %s24, 1
    %p105 = por %p103, %p104
    %p106 = scmp.ne.s32.totalorder %s97, %s98
    %p107 = scmp.eq.s32.totalorder %s24, 0
    %p108 = por %p106, %p107
    %p109 = scmp.ne.s32.totalorder %s97, %s98
    %p110 = scmp.eq.s32.totalorder %s25, 1
    %p111 = por %p109, %p110
    %p113 = scmp.ne.s32.totalorder %s98, %s112
    %p114 = scmp.eq.s32.totalorder %s25, 0
    %p115 = por %p113, %p114
    %s117 = sadd.s32 %s116, 1
    %p120 = scmp.eq.s32.totalorder %s19, 1
    %p121 = scmp.ne.s32.totalorder %s116, %s118
    %p122 = scmp.eq.s32.totalorder %s19, 0
    %p123 = por %p121, %p122
    %p124 = scmp.ne.s32.totalorder %s116, %s118
    %p125 = scmp.eq.s32.totalorder %s24, 1
    %p126 = por %p124, %p125
    %p127 = scmp.ne.s32.totalorder %s118, %s119
    %p128 = scmp.eq.s32.totalorder %s24, 0
    %p129 = por %p127, %p128
    %p130 = scmp.ne.s32.totalorder %s118, %s119
    %p131 = scmp.eq.s32.totalorder %s25, 1
    %p132 = por %p130, %p131
    %p134 = scmp.ne.s32.totalorder %s119, %s133
    %p135 = scmp.eq.s32.totalorder %s25, 0
    %p136 = por %p134, %p135
    %s138 = sadd.s32 %s137, 1
    %p141 = scmp.eq.s32.totalorder %s19, 1
    %p142 = scmp.ne.s32.totalorder %s137, %s139
    %p143 = scmp.eq.s32.totalorder %s19, 0
    %p144 = por %p142, %p143
    %p145 = scmp.ne.s32.totalorder %s137, %s139
    %p146 = scmp.eq.s32.totalorder %s24, 1
    %p147 = por %p145, %p146
    %p148 = scmp.ne.s32.totalorder %s139, %s140
    %p149 = scmp.eq.s32.totalorder %s24, 0
    %p150 = por %p148, %p149
    %p151 = scmp.ne.s32.totalorder %s139, %s140
    %p152 = scmp.eq.s32.totalorder %s25, 1
    %p153 = por %p151, %p152
    %p155 = scmp.ne.s32.totalorder %s140, %s154
    %p156 = scmp.eq.s32.totalorder %s25, 0
    %p157 = por %p155, %p156
    %s159 = sadd.s32 %s158, 1
    %p162 = scmp.eq.s32.totalorder %s19, 1
    %p163 = scmp.ne.s32.totalorder %s158, %s160
    %p164 = scmp.eq.s32.totalorder %s19, 0
    %p165 = por %p163, %p164
    %p166 = scmp.ne.s32.totalorder %s158, %s160
    %p167 = scmp.eq.s32.totalorder %s24, 1
    %p168 = por %p166, %p167
    %p169 = scmp.ne.s32.totalorder %s160, %s161
    %p170 = scmp.eq.s32.totalorder %s24, 0
    %p171 = por %p169, %p170
    %p172 = scmp.ne.s32.totalorder %s160, %s161
    %p173 = scmp.eq.s32.totalorder %s25, 1
    %p174 = por %p172, %p173
    %p176 = scmp.ne.s32.totalorder %s161, %s175
    %p177 = scmp.eq.s32.totalorder %s25, 0
    %p178 = por %p176, %p177
    %s180 = sadd.s32 %s179, 1
    %p183 = scmp.eq.s32.totalorder %s19, 1
    %p184 = scmp.ne.s32.totalorder %s179, %s181
    %p185 = scmp.eq.s32.totalorder %s19, 0
    %p186 = por %p184, %p185
    %p187 = scmp.ne.s32.totalorder %s179, %s181
    %p188 = scmp.eq.s32.totalorder %s24, 1
    %p189 = por %p187, %p188
    %p190 = scmp.ne.s32.totalorder %s181, %s182
    %p191 = scmp.eq.s32.totalorder %s24, 0
    %p192 = por %p190, %p191
    %p193 = scmp.ne.s32.totalorder %s181, %s182
    %p194 = scmp.eq.s32.totalorder %s25, 1
    %p195 = por %p193, %p194
    %p197 = scmp.ne.s32.totalorder %s182, %s196
    %p198 = scmp.eq.s32.totalorder %s25, 0
    %p199 = por %p197, %p198
    %s201 = sadd.s32 %s200, 1
    %p204 = scmp.eq.s32.totalorder %s19, 1
    %p205 = scmp.ne.s32.totalorder %s200, %s202
    %p206 = scmp.eq.s32.totalorder %s19, 0
    %p207 = por %p205, %p206
    %p208 = scmp.ne.s32.totalorder %s200, %s202
    %p209 = scmp.eq.s32.totalorder %s24, 1
    %p210 = por %p208, %p209
    %p211 = scmp.ne.s32.totalorder %s202, %s203
    %p212 = scmp.eq.s32.totalorder %s24, 0
    %p213 = por %p211, %p212
    %p214 = scmp.ne.s32.totalorder %s202, %s203
    %p215 = scmp.eq.s32.totalorder %s25, 1
    %p216 = por %p214, %p215
    %p218 = scmp.ne.s32.totalorder %s203, %s217
    %p219 = scmp.eq.s32.totalorder %s25, 0
    %p220 = por %p218, %p219
    %s222 = sadd.s32 %s221, 1
    %p225 = scmp.eq.s32.totalorder %s19, 1
    %p226 = scmp.ne.s32.totalorder %s221, %s223
    %p227 = scmp.eq.s32.totalorder %s19, 0
    %p228 = por %p226, %p227
    %p229 = scmp.ne.s32.totalorder %s221, %s223
    %p230 = scmp.eq.s32.totalorder %s24, 1
    %p231 = por %p229, %p230
    %p232 = scmp.ne.s32.totalorder %s223, %s224
    %p233 = scmp.eq.s32.totalorder %s24, 0
    %p234 = por %p232, %p233
    %p235 = scmp.ne.s32.totalorder %s223, %s224
    %p236 = scmp.eq.s32.totalorder %s25, 1
    %p237 = por %p235, %p236
    %p239 = scmp.ne.s32.totalorder %s224, %s238
    %p240 = scmp.eq.s32.totalorder %s25, 0
    %p241 = por %p239, %p240
    %s243 = sadd.s32 %s242, 1
    %p246 = scmp.eq.s32.totalorder %s19, 1
    %p247 = scmp.ne.s32.totalorder %s242, %s244
    %p248 = scmp.eq.s32.totalorder %s19, 0
    %p249 = por %p247, %p248
    %p250 = scmp.ne.s32.totalorder %s242, %s244
    %p251 = scmp.eq.s32.totalorder %s24, 1
    %p252 = por %p250, %p251
    %p253 = scmp.ne.s32.totalorder %s244, %s245
    %p254 = scmp.eq.s32.totalorder %s24, 0
    %p255 = por %p253, %p254
    %p256 = scmp.ne.s32.totalorder %s244, %s245
    %p257 = scmp.eq.s32.totalorder %s25, 1
    %p258 = por %p256, %p257
    %p260 = scmp.ne.s32.totalorder %s245, %s259
    %p261 = scmp.eq.s32.totalorder %s25, 0
    %p262 = por %p260, %p261
    %s264 = sadd.s32 %s263, 1
    %p267 = scmp.eq.s32.totalorder %s19, 1
    %p268 = scmp.ne.s32.totalorder %s263, %s265
    %p269 = scmp.eq.s32.totalorder %s19, 0
    %p270 = por %p268, %p269
    %p271 = scmp.ne.s32.totalorder %s263, %s265
    %p272 = scmp.eq.s32.totalorder %s24, 1
    %p273 = por %p271, %p272
    %p274 = scmp.ne.s32.totalorder %s265, %s266
    %p275 = scmp.eq.s32.totalorder %s24, 0
    %p276 = por %p274, %p275
    %p277 = scmp.ne.s32.totalorder %s265, %s266
    %p278 = scmp.eq.s32.totalorder %s25, 1
    %p279 = por %p277, %p278
    %p281 = scmp.ne.s32.totalorder %s266, %s280
    %p282 = scmp.eq.s32.totalorder %s25, 0
    %p283 = por %p281, %p282
    %s285 = sadd.s32 %s284, 1
    %p288 = scmp.eq.s32.totalorder %s19, 1
    %p289 = scmp.ne.s32.totalorder %s284, %s286
    %p290 = scmp.eq.s32.totalorder %s19, 0
    %p291 = por %p289, %p290
    %p292 = scmp.ne.s32.totalorder %s284, %s286
    %p293 = scmp.eq.s32.totalorder %s24, 1
    %p294 = por %p292, %p293
    %p295 = scmp.ne.s32.totalorder %s286, %s287
    %p296 = scmp.eq.s32.totalorder %s24, 0
    %p297 = por %p295, %p296
    %p298 = scmp.ne.s32.totalorder %s286, %s287
    %p299 = scmp.eq.s32.totalorder %s25, 1
    %p300 = por %p298, %p299
    %p302 = scmp.ne.s32.totalorder %s287, %s301
    %p303 = scmp.eq.s32.totalorder %s25, 0
    %p304 = por %p302, %p303
    %s305 = ssub.s32 %s19, %s26
    %p306 = scmp.eq.s32.totalorder %s305, 0
    %s308 = sadd.s32 %s307, 1
    %s309 = scalar_select %p306, %s307, %s308
    %p312 = pneg %p306
    %p313 = scmp.eq.s32.totalorder %s19, 1
    %p314 = por %p312, %p313
    %p315 = scmp.ne.s32.totalorder %s307, %s310
    %p316 = scmp.eq.s32.totalorder %s19, 0
    %p317 = por %p315, %p316
    %p318 = scmp.ne.s32.totalorder %s307, %s310
    %p319 = scmp.eq.s32.totalorder %s24, 1
    %p320 = por %p318, %p319
    %p321 = scmp.ne.s32.totalorder %s310, %s311
    %p322 = scmp.eq.s32.totalorder %s24, 0
    %p323 = por %p321, %p322
    %p324 = scmp.ne.s32.totalorder %s310, %s311
    %p325 = scmp.eq.s32.totalorder %s25, 1
    %p326 = por %p324, %p325
    %p328 = scmp.ne.s32.totalorder %s311, %s327
    %p329 = scmp.eq.s32.totalorder %s25, 0
    %p330 = por %p328, %p329
    %p331 = scmp.le.s32.totalorder 1, %s19
    %p332 = scmp.lt.s32.totalorder %s19, 3
    %p333 = pnand %p331, %p332
    %p334 = pneg %p333
    // Predicated region
    $region9: #{transformer_forward.5} parent=5 // pred_check
      _
    $region10: #{transformer_forward.5} parent=5 // pred_check_branch
      %336 = sbr.rel (%p333) target = $region12
    $region11: #{transformer_forward.5} parent=5 // pred_region
      %s337 = ssub.s32 %s19, 1
      // Predicated region
      $region13: #{transformer_forward.5} parent=11 // pred_check
        %p338 = pneg %p66
      $region14: #{transformer_forward.5} parent=11 // pred_check_branch
        %340 = sbr.rel (%p338) target = $region16
      $region15: #{transformer_forward.5} parent=11 // pred_region
        _
      $region16: #{transformer_forward.5} parent=11 // pred_fallthru
        _
      // Predicated region
      $region17: #{transformer_forward.5} parent=11 // pred_check
        %p341 = pneg %p87
      $region18: #{transformer_forward.5} parent=11 // pred_check_branch
        %343 = sbr.rel (%p341) target = $region20
      $region19: #{transformer_forward.5} parent=11 // pred_region
        _
      $region20: #{transformer_forward.5} parent=11 // pred_fallthru
        _
      // Predicated region
      $region21: #{transformer_forward.5} parent=11 // pred_check
        %p344 = pneg %p108
      $region22: #{transformer_forward.5} parent=11 // pred_check_branch
        %346 = sbr.rel (%p344) target = $region24
      $region23: #{transformer_forward.5} parent=11 // pred_region
        _
      $region24: #{transformer_forward.5} parent=11 // pred_fallthru
        _
      // Predicated region
      $region25: #{transformer_forward.5} parent=11 // pred_check
        %p347 = pneg %p129
      $region26: #{transformer_forward.5} parent=11 // pred_check_branch
        %349 = sbr.rel (%p347) target = $region28
      $region27: #{transformer_forward.5} parent=11 // pred_region
        _
      $region28: #{transformer_forward.5} parent=11 // pred_fallthru
        _
      // Predicated region
      $region29: #{transformer_forward.5} parent=11 // pred_check
        %p350 = pneg %p150
      $region30: #{transformer_forward.5} parent=11 // pred_check_branch
        %352 = sbr.rel (%p350) target = $region32
      $region31: #{transformer_forward.5} parent=11 // pred_region
        _
      $region32: #{transformer_forward.5} parent=11 // pred_fallthru
        _
      // Predicated region
      $region33: #{transformer_forward.5} parent=11 // pred_check
        %p353 = pneg %p171
      $region34: #{transformer_forward.5} parent=11 // pred_check_branch
        %355 = sbr.rel (%p353) target = $region36
      $region35: #{transformer_forward.5} parent=11 // pred_region
        _
      $region36: #{transformer_forward.5} parent=11 // pred_fallthru
        _
      // Predicated region
      $region37: #{transformer_forward.5} parent=11 // pred_check
        %p356 = pneg %p192
      $region38: #{transformer_forward.5} parent=11 // pred_check_branch
        %358 = sbr.rel (%p356) target = $region40
      $region39: #{transformer_forward.5} parent=11 // pred_region
        _
      $region40: #{transformer_forward.5} parent=11 // pred_fallthru
        _
      // Predicated region
      $region41: #{transformer_forward.5} parent=11 // pred_check
        %p359 = pneg %p213
      $region42: #{transformer_forward.5} parent=11 // pred_check_branch
        %361 = sbr.rel (%p359) target = $region44
      $region43: #{transformer_forward.5} parent=11 // pred_region
        _
      $region44: #{transformer_forward.5} parent=11 // pred_fallthru
        _
      // Predicated region
      $region45: #{transformer_forward.5} parent=11 // pred_check
        %p362 = pneg %p234
      $region46: #{transformer_forward.5} parent=11 // pred_check_branch
        %364 = sbr.rel (%p362) target = $region48
      $region47: #{transformer_forward.5} parent=11 // pred_region
        _
      $region48: #{transformer_forward.5} parent=11 // pred_fallthru
        _
      // Predicated region
      $region49: #{transformer_forward.5} parent=11 // pred_check
        %p365 = pneg %p255
      $region50: #{transformer_forward.5} parent=11 // pred_check_branch
        %367 = sbr.rel (%p365) target = $region52
      $region51: #{transformer_forward.5} parent=11 // pred_region
        _
      $region52: #{transformer_forward.5} parent=11 // pred_fallthru
        _
      // Predicated region
      $region53: #{transformer_forward.5} parent=11 // pred_check
        %p368 = pneg %p276
      $region54: #{transformer_forward.5} parent=11 // pred_check_branch
        %370 = sbr.rel (%p368) target = $region56
      $region55: #{transformer_forward.5} parent=11 // pred_region
        _
      $region56: #{transformer_forward.5} parent=11 // pred_fallthru
        _
      // Predicated region
      $region57: #{transformer_forward.5} parent=11 // pred_check
        %p371 = pneg %p297
      $region58: #{transformer_forward.5} parent=11 // pred_check_branch
        %373 = sbr.rel (%p371) target = $region60
      $region59: #{transformer_forward.5} parent=11 // pred_region
        _
      $region60: #{transformer_forward.5} parent=11 // pred_fallthru
        _
    $region12: #{transformer_forward.5} parent=5 // pred_fallthru
      _
    %p374 = scmp.lt.s32.totalorder %s19, 2
    // Predicated region
    $region61: #{transformer_forward.5} parent=5 // pred_check
      %p375 = pneg %p374
    $region62: #{transformer_forward.5} parent=5 // pred_check_branch
      %377 = sbr.rel (%p375) target = $region64
    $region63: #{transformer_forward.5} parent=5 // pred_region
      // Predicated region
      $region65: #{transformer_forward.5} parent=63 // pred_check
        %p378 = pneg %p39
      $region66: #{transformer_forward.5} parent=63 // pred_check_branch
        %380 = sbr.rel (%p378) target = $region68
      $region67: #{transformer_forward.5} parent=63 // pred_region
        %p381 = scmp.lt.s32.totalorder %s19, 1
        %s382 = scalar_select %p381, %s19, 1
        %s383 = smul.addr %s382, 8
        %s384 = scalar_lea.vmem %s0, %s383
      $region68: #{transformer_forward.5} parent=63 // pred_fallthru
        _
    $region64: #{transformer_forward.5} parent=5 // pred_fallthru
      _
    %p385 = scmp.le.s32.totalorder 1, %s19
    %p386 = scmp.lt.s32.totalorder %s19, 3
    %p387 = pnand %p385, %p386
    %p388 = pneg %p387
    // Predicated region
    $region69: #{transformer_forward.5} parent=5 // pred_check
      _
    $region70: #{transformer_forward.5} parent=5 // pred_check_branch
      %390 = sbr.rel (%p387) target = $region72
    $region71: #{transformer_forward.5} parent=5 // pred_region
      %s391 = ssub.s32 %s19, 1
      %p392 = scmp.lt.s32.totalorder %s24, 1
      %s393 = scalar_select %p392, %s24, 1
      %s394 = smul.addr %s393, 8
      %s395 = scalar_lea.vmem %s0, %s394
      %p396 = pneg %p45
      %p397 = pneg %p42
      %p398 = pneg %p66
      %p399 = pneg %p63
      %p400 = pneg %p87
      %p401 = pneg %p84
      %p402 = pneg %p108
      %p403 = pneg %p105
      %p404 = pneg %p129
      %p405 = pneg %p126
      %p406 = pneg %p150
      %p407 = pneg %p147
      %p408 = pneg %p171
      %p409 = pneg %p168
      %p410 = pneg %p192
      %p411 = pneg %p189
      %p412 = pneg %p213
      %p413 = pneg %p210
      %p414 = pneg %p234
      %p415 = pneg %p231
      %p416 = pneg %p255
      %p417 = pneg %p252
      %p418 = pneg %p276
      %p419 = pneg %p273
      %p420 = pneg %p297
      %p421 = pneg %p294
      %p422 = pneg %p323
      %p423 = pneg %p320
      %p424 = scmp.lt.s32.totalorder %s24, 1
      %s425 = scalar_select %p424, %s24, 1
      %s426 = smul.addr %s425, 8
      %s427 = scalar_lea.vmem %s13, %s426
      %p428 = scmp.lt.s32.totalorder %s24, 1
      %s429 = scalar_select %p428, %s24, 1
      %s430 = smul.addr %s429, 8
      %s431 = scalar_lea.vmem %s0, %s430
      %p432 = scmp.lt.s32.totalorder %s24, 1
      %s433 = scalar_select %p432, %s24, 1
      %s434 = smul.addr %s433, 8
      %s435 = scalar_lea.vmem %s13, %s434
      %v437 = vld [vmem:[%s431] sm:$0xff]
      %v438 = vpack.c.bf16 %v437, %v437
      %v439 = vld [vmem:[%s1] sm:$0xf]
      %v440 = vld [vmem:[%s1 + $0x4] sm:$0xf]
      %v441 = vld [vmem:[%s1 + $0x8] sm:$0xf]
      %v442 = vld [vmem:[%s1 + $0xc] sm:$0xf]
      %v443 = vld [vmem:[%s2] sm:$0x1]
      %v445 = vlaneseq
      %v446 = vshrl.u32 %v445, 7
      %v447 = vsub.s32 0, %v446
      %v448 = vrot.slane %v443, %v447
      %v454 = vunpack.c.l.b16 %v439
      %v455 = vunpack.c.l.b16 %v440
      %v456 = vunpack.c.l.b16 %v441
      %v457 = vunpack.c.l.b16 %v442
      %v458 = vpack.c.b16 %v455, %v454
      %v459 = vpack.c.b16 %v457, %v456
      %vm462 = vcmask 261120
      %v464 = vsel %vm462, %v438, 0
      %466 = vmatprep.subr.bf16.mxu0 0
      %467 = vmatpush1.bf16.msra.mxu0 0
      %468 = vmatprep.subr.bf16.mxu0 0
      %469 = vmatpush1.bf16.msra.mxu0 0
      %470 = vmatprep.subr.bf16.mxu0 0
      %471 = vmatpush1.bf16.msra.mxu0 0
      %472 = vmatprep.subr.bf16.mxu0 0
      %473 = vmatpush1.bf16.msra.mxu0 0
      %474 = vmatprep.subr.bf16.mxu0 0
      %475 = vmatpush1.bf16.msra.mxu0 0
      %476 = vmatprep.subr.bf16.mxu0 0
      %477 = vmatpush1.bf16.msra.mxu0 0
      %478 = vmatprep.subr.bf16.mxu0 0
      %479 = vmatpush1.bf16.msra.mxu0 %v459
      %480 = vmatprep.subr.bf16.mxu0 0
      %481 = vmatpush1.bf16.msra.mxu0 %v458
      %482 = vmatprep.subr.bf16.mxu0 0
      %483 = vmatpush2.bf16.msra.mxu0 0
      %484 = vmatprep.subr.bf16.mxu0 0
      %485 = vmatpush2.bf16.msra.mxu0 0
      %486 = vmatprep.subr.bf16.mxu0 0
      %487 = vmatpush2.bf16.msra.mxu0 0
      %488 = vmatprep.subr.bf16.mxu0 0
      %489 = vmatpush2.bf16.msra.mxu0 0
      %490 = vmatprep.subr.bf16.mxu0 0
      %491 = vmatpush2.bf16.msra.mxu0 0
      %492 = vmatprep.subr.bf16.mxu0 0
      %493 = vmatpush2.bf16.msra.mxu0 0
      %494 = vmatprep.subr.bf16.mxu0 0
      %495 = vmatpush2.bf16.msra.mxu0 0
      %496 = vmatprep.subr.bf16.mxu0 0
      %497 = vmatpush2.bf16.msra.mxu0 0
      %498 = vmatprep.mubr.bf16.mxu0 0
      %499 = vmatmul.mubr.bf16.gmra.mxu0 %v464
      %v500 = vpop.f32.mrf.mxu0
      %v501 = vadd.f32 %v448, %v500
      %v502 = vpop.f32.mrf.mxu0
      %v503 = vpop.f32.mrf.mxu0
      %v504 = vpop.f32.mrf.mxu0
      %505 = vdwg.mxu0
      %v506 = vpack.c.bf16 %v501, %v501
      %508 = vrot.lane.b32.xlu0 %v506, 96
      %v509 = vpop.permute.xlu0 %508
      %vm510 = vcmask 64512
      %v512 = vsel %vm510, %v506, 0
      %v515 = vsel %vm510, %v509, 0
      %517 = vmatprep.subr.bf16.mxu0 0
      %518 = vmatpush1.bf16.xpose.msra.mxu0 0
      %519 = vmatprep.subr.bf16.mxu0 0
      %520 = vmatpush1.bf16.xpose.msra.mxu0 0
      %521 = vmatprep.subr.bf16.mxu0 0
      %522 = vmatpush1.bf16.xpose.msra.mxu0 0
      %523 = vmatprep.subr.bf16.mxu0 0
      %524 = vmatpush1.bf16.xpose.msra.mxu0 0
      %525 = vmatprep.subr.bf16.mxu0 0
      %526 = vmatpush1.bf16.xpose.msra.mxu0 0
      %527 = vmatprep.subr.bf16.mxu0 0
      %528 = vmatpush1.bf16.xpose.msra.mxu0 0
      %529 = vmatprep.subr.bf16.mxu0 0
      %530 = vmatpush1.bf16.xpose.msra.mxu0 0
      %531 = vmatprep.subr.bf16.mxu0 0
      %532 = vmatpush1.bf16.xpose.msra.mxu0 %v515
      %533 = vmatprep.subr.bf16.mxu0 0
      %534 = vmatpush2.bf16.xpose.msra.mxu0 0
      %535 = vmatprep.subr.bf16.mxu0 0
      %536 = vmatpush2.bf16.xpose.msra.mxu0 0
      %537 = vmatprep.subr.bf16.mxu0 0
      %538 = vmatpush2.bf16.xpose.msra.mxu0 0
      %539 = vmatprep.subr.bf16.mxu0 0
      %540 = vmatpush2.bf16.xpose.msra.mxu0 0
      %541 = vmatprep.subr.bf16.mxu0 0
      %542 = vmatpush2.bf16.xpose.msra.mxu0 0
      %543 = vmatprep.subr.bf16.mxu0 0
      %544 = vmatpush2.bf16.xpose.msra.mxu0 0
      %545 = vmatprep.subr.bf16.mxu0 0
      %546 = vmatpush2.bf16.xpose.msra.mxu0 0
      %547 = vmatprep.subr.bf16.mxu0 0
      %548 = vmatpush2.bf16.xpose.msra.mxu0 0
      %549 = vmatprep.mubr.bf16.mxu0 0
      %550 = vmatmul.mubr.bf16.gmra.mxu0 %v512
      %v551 = vpop.f32.mrf.mxu0
      %v552 = vadd.f32 0.0, %v551
      %v553 = vpop.f32.mrf.mxu0
      %v554 = vpop.f32.mrf.mxu0
      %v555 = vpop.f32.mrf.mxu0
      %556 = vdwg.mxu0
      %v557 = vsel %vm510, %v552, -inf
      %558 = vmax.xlane.f32.xlu0 %v557
      %v559 = vpop.xlane.xlu0 %558
      %v560 = vsub.f32 %v552, %v559
      %v561 = vmul.f32 %v560, 1.442695
      %v562 = vpow.pop %v561
      %v563 = vsel %vm510, %v562, 0.0
      %564 = vadd.xlane.f32.xlu0 %v563
      %v565 = vpop.xlane.xlu0 %564
      %v566 = vrcp.pop %v565
      %v567 = vmul.f32 %v562, %v566
      %v568 = vpack.c.bf16 %v567, %v567
      %569 = vrot.lane.b32.xlu0 %v506, 64
      %v570 = vpop.permute.xlu0 %569
      %v572 = vsel %vm510, %v568, 0
      %vm574 = vcmask 1043456
      %v576 = vsel %vm574, %v570, 0
      %578 = vmatprep.subr.bf16.mxu0 0
      %579 = vmatpush1.bf16.msra.mxu0 0
      %580 = vmatprep.subr.bf16.mxu0 0
      %581 = vmatpush1.bf16.msra.mxu0 0
      %582 = vmatprep.subr.bf16.mxu0 0
      %583 = vmatpush1.bf16.msra.mxu0 0
      %584 = vmatprep.subr.bf16.mxu0 0
      %585 = vmatpush1.bf16.msra.mxu0 0
      %586 = vmatprep.subr.bf16.mxu0 0
      %587 = vmatpush1.bf16.msra.mxu0 0
      %588 = vmatprep.subr.bf16.mxu0 0
      %589 = vmatpush1.bf16.msra.mxu0 0
      %590 = vmatprep.subr.bf16.mxu0 0
      %591 = vmatpush1.bf16.msra.mxu0 0
      %592 = vmatprep.subr.bf16.mxu0 0
      %593 = vmatpush1.bf16.msra.mxu0 %v576
      %594 = vmatprep.subr.bf16.mxu0 0
      %595 = vmatpush2.bf16.msra.mxu0 0
      %596 = vmatprep.subr.bf16.mxu0 0
      %597 = vmatpush2.bf16.msra.mxu0 0
      %598 = vmatprep.subr.bf16.mxu0 0
      %599 = vmatpush2.bf16.msra.mxu0 0
      %600 = vmatprep.subr.bf16.mxu0 0
      %601 = vmatpush2.bf16.msra.mxu0 0
      %602 = vmatprep.subr.bf16.mxu0 0
      %603 = vmatpush2.bf16.msra.mxu0 0
      %604 = vmatprep.subr.bf16.mxu0 0
      %605 = vmatpush2.bf16.msra.mxu0 0
      %606 = vmatprep.subr.bf16.mxu0 0
      %607 = vmatpush2.bf16.msra.mxu0 0
      %608 = vmatprep.subr.bf16.mxu0 0
      %609 = vmatpush2.bf16.msra.mxu0 0
      %610 = vmatprep.mubr.bf16.mxu0 0
      %611 = vmatmul.mubr.bf16.gmra.mxu0 %v572
      %v612 = vpop.f32.mrf.mxu0
      %v613 = vadd.f32 0.0, %v612
      %v614 = vpop.f32.mrf.mxu0
      %v615 = vpop.f32.mrf.mxu0
      %v616 = vpop.f32.mrf.mxu0
      %617 = vdwg.mxu0
      %618 = vrot.lane.b32.xlu0 %v506, 120
      %v619 = vpop.permute.xlu0 %618
      %620 = vrot.lane.b32.xlu0 %v506, 88
      %v621 = vpop.permute.xlu0 %620
      %v623 = vsel %vm510, %v619, 0
      %v626 = vsel %vm510, %v621, 0
      %628 = vmatprep.subr.bf16.mxu0 0
      %629 = vmatpush1.bf16.xpose.msra.mxu0 0
      %630 = vmatprep.subr.bf16.mxu0 0
      %631 = vmatpush1.bf16.xpose.msra.mxu0 0
      %632 = vmatprep.subr.bf16.mxu0 0
      %633 = vmatpush1.bf16.xpose.msra.mxu0 0
      %634 = vmatprep.subr.bf16.mxu0 0
      %635 = vmatpush1.bf16.xpose.msra.mxu0 0
      %636 = vmatprep.subr.bf16.mxu0 0
      %637 = vmatpush1.bf16.xpose.msra.mxu0 0
      %638 = vmatprep.subr.bf16.mxu0 0
      %639 = vmatpush1.bf16.xpose.msra.mxu0 0
      %640 = vmatprep.subr.bf16.mxu0 0
      %641 = vmatpush1.bf16.xpose.msra.mxu0 0
      %642 = vmatprep.subr.bf16.mxu0 0
      %643 = vmatpush1.bf16.xpose.msra.mxu0 %v626
      %644 = vmatprep.subr.bf16.mxu0 0
      %645 = vmatpush2.bf16.xpose.msra.mxu0 0
      %646 = vmatprep.subr.bf16.mxu0 0
      %647 = vmatpush2.bf16.xpose.msra.mxu0 0
      %648 = vmatprep.subr.bf16.mxu0 0
      %649 = vmatpush2.bf16.xpose.msra.mxu0 0
      %650 = vmatprep.subr.bf16.mxu0 0
      %651 = vmatpush2.bf16.xpose.msra.mxu0 0
      %652 = vmatprep.subr.bf16.mxu0 0
      %653 = vmatpush2.bf16.xpose.msra.mxu0 0
      %654 = vmatprep.subr.bf16.mxu0 0
      %655 = vmatpush2.bf16.xpose.msra.mxu0 0
      %656 = vmatprep.subr.bf16.mxu0 0
      %657 = vmatpush2.bf16.xpose.msra.mxu0 0
      %658 = vmatprep.subr.bf16.mxu0 0
      %659 = vmatpush2.bf16.xpose.msra.mxu0 0
      %660 = vmatprep.mubr.bf16.mxu0 0
      %661 = vmatmul.mubr.bf16.gmra.mxu0 %v623
      %v662 = vpop.f32.mrf.mxu0
      %v663 = vadd.f32 0.0, %v662
      %v664 = vpop.f32.mrf.mxu0
      %v665 = vpop.f32.mrf.mxu0
      %v666 = vpop.f32.mrf.mxu0
      %667 = vdwg.mxu0
      %v668 = vsel %vm510, %v663, -inf
      %669 = vmax.xlane.f32.xlu0 %v668
      %v670 = vpop.xlane.xlu0 %669
      %v671 = vsub.f32 %v663, %v670
      %v672 = vmul.f32 %v671, 1.442695
      %v673 = vpow.pop %v672
      %v674 = vsel %vm510, %v673, 0.0
      %675 = vadd.xlane.f32.xlu0 %v674
      %v676 = vpop.xlane.xlu0 %675
      %v677 = vrcp.pop %v676
      %v678 = vmul.f32 %v673, %v677
      %v679 = vpack.c.bf16 %v678, %v678
      %680 = vrot.lane.b32.xlu0 %v506, 56
      %v681 = vpop.permute.xlu0 %680
      %v683 = vsel %vm510, %v679, 0
      %v686 = vsel %vm574, %v681, 0
      %688 = vmatprep.subr.bf16.mxu0 0
      %689 = vmatpush1.bf16.msra.mxu0 0
      %690 = vmatprep.subr.bf16.mxu0 0
      %691 = vmatpush1.bf16.msra.mxu0 0
      %692 = vmatprep.subr.bf16.mxu0 0
      %693 = vmatpush1.bf16.msra.mxu0 0
      %694 = vmatprep.subr.bf16.mxu0 0
      %695 = vmatpush1.bf16.msra.mxu0 0
      %696 = vmatprep.subr.bf16.mxu0 0
      %697 = vmatpush1.bf16.msra.mxu0 0
      %698 = vmatprep.subr.bf16.mxu0 0
      %699 = vmatpush1.bf16.msra.mxu0 0
      %700 = vmatprep.subr.bf16.mxu0 0
      %701 = vmatpush1.bf16.msra.mxu0 0
      %702 = vmatprep.subr.bf16.mxu0 0
      %703 = vmatpush1.bf16.msra.mxu0 %v686
      %704 = vmatprep.subr.bf16.mxu0 0
      %705 = vmatpush2.bf16.msra.mxu0 0
      %706 = vmatprep.subr.bf16.mxu0 0
      %707 = vmatpush2.bf16.msra.mxu0 0
      %708 = vmatprep.subr.bf16.mxu0 0
      %709 = vmatpush2.bf16.msra.mxu0 0
      %710 = vmatprep.subr.bf16.mxu0 0
      %711 = vmatpush2.bf16.msra.mxu0 0
      %712 = vmatprep.subr.bf16.mxu0 0
      %713 = vmatpush2.bf16.msra.mxu0 0
      %714 = vmatprep.subr.bf16.mxu0 0
      %715 = vmatpush2.bf16.msra.mxu0 0
      %716 = vmatprep.subr.bf16.mxu0 0
      %717 = vmatpush2.bf16.msra.mxu0 0
      %718 = vmatprep.subr.bf16.mxu0 0
      %719 = vmatpush2.bf16.msra.mxu0 0
      %720 = vmatprep.mubr.bf16.mxu0 0
      %721 = vmatmul.mubr.bf16.gmra.mxu0 %v683
      %v722 = vpop.f32.mrf.mxu0
      %v723 = vadd.f32 0.0, %v722
      %v724 = vpop.f32.mrf.mxu0
      %v725 = vpop.f32.mrf.mxu0
      %v726 = vpop.f32.mrf.mxu0
      %727 = vdwg.mxu0
      %728 = vrot.lane.b32.xlu0 %v506, 112
      %v729 = vpop.permute.xlu0 %728
      %730 = vrot.lane.b32.xlu0 %v506, 80
      %v731 = vpop.permute.xlu0 %730
      %v733 = vsel %vm510, %v729, 0
      %v736 = vsel %vm510, %v731, 0
      %738 = vmatprep.subr.bf16.mxu0 0
      %739 = vmatpush1.bf16.xpose.msra.mxu0 0
      %740 = vmatprep.subr.bf16.mxu0 0
      %741 = vmatpush1.bf16.xpose.msra.mxu0 0
      %742 = vmatprep.subr.bf16.mxu0 0
      %743 = vmatpush1.bf16.xpose.msra.mxu0 0
      %744 = vmatprep.subr.bf16.mxu0 0
      %745 = vmatpush1.bf16.xpose.msra.mxu0 0
      %746 = vmatprep.subr.bf16.mxu0 0
      %747 = vmatpush1.bf16.xpose.msra.mxu0 0
      %748 = vmatprep.subr.bf16.mxu0 0
      %749 = vmatpush1.bf16.xpose.msra.mxu0 0
      %750 = vmatprep.subr.bf16.mxu0 0
      %751 = vmatpush1.bf16.xpose.msra.mxu0 0
      %752 = vmatprep.subr.bf16.mxu0 0
      %753 = vmatpush1.bf16.xpose.msra.mxu0 %v736
      %754 = vmatprep.subr.bf16.mxu0 0
      %755 = vmatpush2.bf16.xpose.msra.mxu0 0
      %756 = vmatprep.subr.bf16.mxu0 0
      %757 = vmatpush2.bf16.xpose.msra.mxu0 0
      %758 = vmatprep.subr.bf16.mxu0 0
      %759 = vmatpush2.bf16.xpose.msra.mxu0 0
      %760 = vmatprep.subr.bf16.mxu0 0
      %761 = vmatpush2.bf16.xpose.msra.mxu0 0
      %762 = vmatprep.subr.bf16.mxu0 0
      %763 = vmatpush2.bf16.xpose.msra.mxu0 0
      %764 = vmatprep.subr.bf16.mxu0 0
      %765 = vmatpush2.bf16.xpose.msra.mxu0 0
      %766 = vmatprep.subr.bf16.mxu0 0
      %767 = vmatpush2.bf16.xpose.msra.mxu0 0
      %768 = vmatprep.subr.bf16.mxu0 0
      %769 = vmatpush2.bf16.xpose.msra.mxu0 0
      %770 = vmatprep.mubr.bf16.mxu0 0
      %771 = vmatmul.mubr.bf16.gmra.mxu0 %v733
      %v772 = vpop.f32.mrf.mxu0
      %v773 = vadd.f32 0.0, %v772
      %v774 = vpop.f32.mrf.mxu0
      %v775 = vpop.f32.mrf.mxu0
      %v776 = vpop.f32.mrf.mxu0
      %777 = vdwg.mxu0
      %v778 = vsel %vm510, %v773, -inf
      %779 = vmax.xlane.f32.xlu0 %v778
      %v780 = vpop.xlane.xlu0 %779
      %v781 = vsub.f32 %v773, %v780
      %v782 = vmul.f32 %v781, 1.442695
      %v783 = vpow.pop %v782
      %v784 = vsel %vm510, %v783, 0.0
      %785 = vadd.xlane.f32.xlu0 %v784
      %v786 = vpop.xlane.xlu0 %785
      %v787 = vrcp.pop %v786
      %v788 = vmul.f32 %v783, %v787
      %v789 = vpack.c.bf16 %v788, %v788
      %790 = vrot.lane.b32.xlu0 %v506, 48
      %v791 = vpop.permute.xlu0 %790
      %v793 = vsel %vm510, %v789, 0
      %v796 = vsel %vm574, %v791, 0
      %798 = vmatprep.subr.bf16.mxu0 0
      %799 = vmatpush1.bf16.msra.mxu0 0
      %800 = vmatprep.subr.bf16.mxu0 0
      %801 = vmatpush1.bf16.msra.mxu0 0
      %802 = vmatprep.subr.bf16.mxu0 0
      %803 = vmatpush1.bf16.msra.mxu0 0
      %804 = vmatprep.subr.bf16.mxu0 0
      %805 = vmatpush1.bf16.msra.mxu0 0
      %806 = vmatprep.subr.bf16.mxu0 0
      %807 = vmatpush1.bf16.msra.mxu0 0
      %808 = vmatprep.subr.bf16.mxu0 0
      %809 = vmatpush1.bf16.msra.mxu0 0
      %810 = vmatprep.subr.bf16.mxu0 0
      %811 = vmatpush1.bf16.msra.mxu0 0
      %812 = vmatprep.subr.bf16.mxu0 0
      %813 = vmatpush1.bf16.msra.mxu0 %v796
      %814 = vmatprep.subr.bf16.mxu0 0
      %815 = vmatpush2.bf16.msra.mxu0 0
      %816 = vmatprep.subr.bf16.mxu0 0
      %817 = vmatpush2.bf16.msra.mxu0 0
      %818 = vmatprep.subr.bf16.mxu0 0
      %819 = vmatpush2.bf16.msra.mxu0 0
      %820 = vmatprep.subr.bf16.mxu0 0
      %821 = vmatpush2.bf16.msra.mxu0 0
      %822 = vmatprep.subr.bf16.mxu0 0
      %823 = vmatpush2.bf16.msra.mxu0 0
      %824 = vmatprep.subr.bf16.mxu0 0
      %825 = vmatpush2.bf16.msra.mxu0 0
      %826 = vmatprep.subr.bf16.mxu0 0
      %827 = vmatpush2.bf16.msra.mxu0 0
      %828 = vmatprep.subr.bf16.mxu0 0
      %829 = vmatpush2.bf16.msra.mxu0 0
      %830 = vmatprep.mubr.bf16.mxu0 0
      %831 = vmatmul.mubr.bf16.gmra.mxu0 %v793
      %v832 = vpop.f32.mrf.mxu0
      %v833 = vadd.f32 0.0, %v832
      %v834 = vpop.f32.mrf.mxu0
      %v835 = vpop.f32.mrf.mxu0
      %v836 = vpop.f32.mrf.mxu0
      %837 = vdwg.mxu0
      %838 = vrot.lane.b32.xlu0 %v506, 104
      %v839 = vpop.permute.xlu0 %838
      %840 = vrot.lane.b32.xlu0 %v506, 72
      %v841 = vpop.permute.xlu0 %840
      %v843 = vsel %vm510, %v839, 0
      %v846 = vsel %vm510, %v841, 0
      %848 = vmatprep.subr.bf16.mxu0 0
      %849 = vmatpush1.bf16.xpose.msra.mxu0 0
      %850 = vmatprep.subr.bf16.mxu0 0
      %851 = vmatpush1.bf16.xpose.msra.mxu0 0
      %852 = vmatprep.subr.bf16.mxu0 0
      %853 = vmatpush1.bf16.xpose.msra.mxu0 0
      %854 = vmatprep.subr.bf16.mxu0 0
      %855 = vmatpush1.bf16.xpose.msra.mxu0 0
      %856 = vmatprep.subr.bf16.mxu0 0
      %857 = vmatpush1.bf16.xpose.msra.mxu0 0
      %858 = vmatprep.subr.bf16.mxu0 0
      %859 = vmatpush1.bf16.xpose.msra.mxu0 0
      %860 = vmatprep.subr.bf16.mxu0 0
      %861 = vmatpush1.bf16.xpose.msra.mxu0 0
      %862 = vmatprep.subr.bf16.mxu0 0
      %863 = vmatpush1.bf16.xpose.msra.mxu0 %v846
      %864 = vmatprep.subr.bf16.mxu0 0
      %865 = vmatpush2.bf16.xpose.msra.mxu0 0
      %866 = vmatprep.subr.bf16.mxu0 0
      %867 = vmatpush2.bf16.xpose.msra.mxu0 0
      %868 = vmatprep.subr.bf16.mxu0 0
      %869 = vmatpush2.bf16.xpose.msra.mxu0 0
      %870 = vmatprep.subr.bf16.mxu0 0
      %871 = vmatpush2.bf16.xpose.msra.mxu0 0
      %872 = vmatprep.subr.bf16.mxu0 0
      %873 = vmatpush2.bf16.xpose.msra.mxu0 0
      %874 = vmatprep.subr.bf16.mxu0 0
      %875 = vmatpush2.bf16.xpose.msra.mxu0 0
      %876 = vmatprep.subr.bf16.mxu0 0
      %877 = vmatpush2.bf16.xpose.msra.mxu0 0
      %878 = vmatprep.subr.bf16.mxu0 0
      %879 = vmatpush2.bf16.xpose.msra.mxu0 0
      %880 = vmatprep.mubr.bf16.mxu0 0
      %881 = vmatmul.mubr.bf16.gmra.mxu0 %v843
      %v882 = vpop.f32.mrf.mxu0
      %v883 = vadd.f32 0.0, %v882
      %v884 = vpop.f32.mrf.mxu0
      %v885 = vpop.f32.mrf.mxu0
      %v886 = vpop.f32.mrf.mxu0
      %887 = vdwg.mxu0
      %v888 = vsel %vm510, %v883, -inf
      %889 = vmax.xlane.f32.xlu0 %v888
      %v890 = vpop.xlane.xlu0 %889
      %v891 = vsub.f32 %v883, %v890
      %v892 = vmul.f32 %v891, 1.442695
      %v893 = vpow.pop %v892
      %v894 = vsel %vm510, %v893, 0.0
      %895 = vadd.xlane.f32.xlu0 %v894
      %v896 = vpop.xlane.xlu0 %895
      %v897 = vrcp.pop %v896
      %v898 = vmul.f32 %v893, %v897
      %v899 = vpack.c.bf16 %v898, %v898
      %900 = vrot.lane.b32.xlu0 %v506, 40
      %v901 = vpop.permute.xlu0 %900
      %v903 = vsel %vm510, %v899, 0
      %v906 = vsel %vm574, %v901, 0
      %908 = vmatprep.subr.bf16.mxu0 0
      %909 = vmatpush1.bf16.msra.mxu0 0
      %910 = vmatprep.subr.bf16.mxu0 0
      %911 = vmatpush1.bf16.msra.mxu0 0
      %912 = vmatprep.subr.bf16.mxu0 0
      %913 = vmatpush1.bf16.msra.mxu0 0
      %914 = vmatprep.subr.bf16.mxu0 0
      %915 = vmatpush1.bf16.msra.mxu0 0
      %916 = vmatprep.subr.bf16.mxu0 0
      %917 = vmatpush1.bf16.msra.mxu0 0
      %918 = vmatprep.subr.bf16.mxu0 0
      %919 = vmatpush1.bf16.msra.mxu0 0
      %920 = vmatprep.subr.bf16.mxu0 0
      %921 = vmatpush1.bf16.msra.mxu0 0
      %922 = vmatprep.subr.bf16.mxu0 0
      %923 = vmatpush1.bf16.msra.mxu0 %v906
      %924 = vmatprep.subr.bf16.mxu0 0
      %925 = vmatpush2.bf16.msra.mxu0 0
      %926 = vmatprep.subr.bf16.mxu0 0
      %927 = vmatpush2.bf16.msra.mxu0 0
      %928 = vmatprep.subr.bf16.mxu0 0
      %929 = vmatpush2.bf16.msra.mxu0 0
      %930 = vmatprep.subr.bf16.mxu0 0
      %931 = vmatpush2.bf16.msra.mxu0 0
      %932 = vmatprep.subr.bf16.mxu0 0
      %933 = vmatpush2.bf16.msra.mxu0 0
      %934 = vmatprep.subr.bf16.mxu0 0
      %935 = vmatpush2.bf16.msra.mxu0 0
      %936 = vmatprep.subr.bf16.mxu0 0
      %937 = vmatpush2.bf16.msra.mxu0 0
      %938 = vmatprep.subr.bf16.mxu0 0
      %939 = vmatpush2.bf16.msra.mxu0 0
      %940 = vmatprep.mubr.bf16.mxu0 0
      %941 = vmatmul.mubr.bf16.gmra.mxu0 %v903
      %v942 = vpop.f32.mrf.mxu0
      %v943 = vadd.f32 0.0, %v942
      %v944 = vpop.f32.mrf.mxu0
      %v945 = vpop.f32.mrf.mxu0
      %v946 = vpop.f32.mrf.mxu0
      %947 = vdwg.mxu0
      %949 = vrot.lane.b32.xlu0 %v723, 8
      %v950 = vpop.permute.xlu0 %949
      %953 = vrot.lane.b32.xlu0 %v833, 16
      %v954 = vpop.permute.xlu0 %953
      %957 = vrot.lane.b32.xlu0 %v943, 24
      %v958 = vpop.permute.xlu0 %957
      %v960 = vsel %vm510, %v613, %v950
      %vm961 = vcmask 130048
      %v962 = vsel %vm961, %v960, %v954
      %vm963 = vcmask 195584
      %v964 = vsel %vm963, %v962, %v958
      %v965 = vpack.c.bf16 %v964, %v964
      %v966 = vld [vmem:[%s3] sm:$0xf]
      %v967 = vld [vmem:[%s3 + $0x4] sm:$0xf]
      %v968 = vld [vmem:[%s3 + $0x8] sm:$0xf]
      %v969 = vld [vmem:[%s3 + $0xc] sm:$0xf]
      %v970 = vld [vmem:[%s4] sm:$0x1]
      %v972 = vlaneseq
      %v973 = vshrl.u32 %v972, 7
      %v974 = vsub.s32 0, %v973
      %v975 = vrot.slane %v970, %v974
      %v981 = vunpack.c.l.b16 %v966
      %v982 = vunpack.c.l.b16 %v967
      %v983 = vunpack.c.l.b16 %v968
      %v984 = vunpack.c.l.b16 %v969
      %v985 = vpack.c.b16 %v982, %v981
      %v986 = vpack.c.b16 %v984, %v983
      %v990 = vsel %vm462, %v965, 0
      %992 = vmatprep.subr.bf16.mxu0 0
      %993 = vmatpush1.bf16.msra.mxu0 0
      %994 = vmatprep.subr.bf16.mxu0 0
      %995 = vmatpush1.bf16.msra.mxu0 0
      %996 = vmatprep.subr.bf16.mxu0 0
      %997 = vmatpush1.bf16.msra.mxu0 0
      %998 = vmatprep.subr.bf16.mxu0 0
      %999 = vmatpush1.bf16.msra.mxu0 0
      %1000 = vmatprep.subr.bf16.mxu0 0
      %1001 = vmatpush1.bf16.msra.mxu0 0
      %1002 = vmatprep.subr.bf16.mxu0 0
      %1003 = vmatpush1.bf16.msra.mxu0 0
      %1004 = vmatprep.subr.bf16.mxu0 0
      %1005 = vmatpush1.bf16.msra.mxu0 %v986
      %1006 = vmatprep.subr.bf16.mxu0 0
      %1007 = vmatpush1.bf16.msra.mxu0 %v985
      %1008 = vmatprep.subr.bf16.mxu0 0
      %1009 = vmatpush2.bf16.msra.mxu0 0
      %1010 = vmatprep.subr.bf16.mxu0 0
      %1011 = vmatpush2.bf16.msra.mxu0 0
      %1012 = vmatprep.subr.bf16.mxu0 0
      %1013 = vmatpush2.bf16.msra.mxu0 0
      %1014 = vmatprep.subr.bf16.mxu0 0
      %1015 = vmatpush2.bf16.msra.mxu0 0
      %1016 = vmatprep.subr.bf16.mxu0 0
      %1017 = vmatpush2.bf16.msra.mxu0 0
      %1018 = vmatprep.subr.bf16.mxu0 0
      %1019 = vmatpush2.bf16.msra.mxu0 0
      %1020 = vmatprep.subr.bf16.mxu0 0
      %1021 = vmatpush2.bf16.msra.mxu0 0
      %1022 = vmatprep.subr.bf16.mxu0 0
      %1023 = vmatpush2.bf16.msra.mxu0 0
      %1024 = vmatprep.mubr.bf16.mxu0 0
      %1025 = vmatmul.mubr.bf16.gmra.mxu0 %v990
      %v1026 = vpop.f32.mrf.mxu0
      %v1027 = vadd.f32 %v975, %v1026
      %v1028 = vpop.f32.mrf.mxu0
      %v1029 = vpop.f32.mrf.mxu0
      %v1030 = vpop.f32.mrf.mxu0
      %1031 = vdwg.mxu0
      %v1032 = vadd.f32 %v437, %v1027
      %v1033 = vld [vmem:[%s5] sm:$0x1]
      %v1034 = vld [vmem:[%s6] sm:$0x1]
      %v1035 = vsel %vm462, %v1032, 0.0
      %1036 = vadd.xlane.f32.xlu0 %v1035
      %v1037 = vpop.xlane.xlu0 %1036
      %v1038 = vrcp.pop 32.0
      %v1039 = vmul.f32 %v1037, %v1038
      %v1040 = vsub.f32 %v1032, %v1039
      %v1041 = vmul.f32 %v1040, %v1040
      %v1042 = vsel %vm462, %v1041, 0.0
      %1043 = vadd.xlane.f32.xlu0 %v1042
      %v1044 = vpop.xlane.xlu0 %1043
      %v1045 = vmul.f32 %v1044, %v1038
      %v1046 = vadd.f32 %v1045, 1e-05
      %v1047 = vrsqrt.pop %v1046
      %v1048 = vmul.f32 %v1040, %v1047
      %v1050 = vlaneseq
      %v1051 = vshrl.u32 %v1050, 7
      %v1052 = vsub.s32 0, %v1051
      %v1053 = vrot.slane %v1033, %v1052
      %v1055 = vmul.f32 %v1048, %v1053
      %v1057 = vlaneseq
      %v1058 = vshrl.u32 %v1057, 7
      %v1059 = vsub.s32 0, %v1058
      %v1060 = vrot.slane %v1034, %v1059
      %v1062 = vadd.f32 %v1055, %v1060
      %v1063 = vpack.c.bf16 %v1062, %v1062
      %v1064 = vld [vmem:[%s7] sm:$0xf]
      %v1065 = vld [vmem:[%s7 + $0x4] sm:$0xf]
      %v1066 = vld [vmem:[%s7 + $0x8] sm:$0xf]
      %v1067 = vld [vmem:[%s7 + $0xc] sm:$0xf]
      %v1068 = vld [vmem:[%s8] sm:$0x1]
      %v1070 = vlaneseq
      %v1071 = vshrl.u32 %v1070, 7
      %v1072 = vsub.s32 0, %v1071
      %v1073 = vrot.slane %v1068, %v1072
      %v1079 = vunpack.c.l.b16 %v1064
      %v1080 = vunpack.c.l.b16 %v1065
      %v1081 = vunpack.c.l.b16 %v1066
      %v1082 = vunpack.c.l.b16 %v1067
      %v1083 = vpack.c.b16 %v1080, %v1079
      %v1084 = vpack.c.b16 %v1082, %v1081
      %v1088 = vsel %vm462, %v1063, 0
      %1090 = vmatprep.subr.bf16.mxu0 0
      %1091 = vmatpush1.bf16.msra.mxu0 0
      %1092 = vmatprep.subr.bf16.mxu0 0
      %1093 = vmatpush1.bf16.msra.mxu0 0
      %1094 = vmatprep.subr.bf16.mxu0 0
      %1095 = vmatpush1.bf16.msra.mxu0 0
      %1096 = vmatprep.subr.bf16.mxu0 0
      %1097 = vmatpush1.bf16.msra.mxu0 0
      %1098 = vmatprep.subr.bf16.mxu0 0
      %1099 = vmatpush1.bf16.msra.mxu0 0
      %1100 = vmatprep.subr.bf16.mxu0 0
      %1101 = vmatpush1.bf16.msra.mxu0 0
      %1102 = vmatprep.subr.bf16.mxu0 0
      %1103 = vmatpush1.bf16.msra.mxu0 %v1084
      %1104 = vmatprep.subr.bf16.mxu0 0
      %1105 = vmatpush1.bf16.msra.mxu0 %v1083
      %1106 = vmatprep.subr.bf16.mxu0 0
      %1107 = vmatpush2.bf16.msra.mxu0 0
      %1108 = vmatprep.subr.bf16.mxu0 0
      %1109 = vmatpush2.bf16.msra.mxu0 0
      %1110 = vmatprep.subr.bf16.mxu0 0
      %1111 = vmatpush2.bf16.msra.mxu0 0
      %1112 = vmatprep.subr.bf16.mxu0 0
      %1113 = vmatpush2.bf16.msra.mxu0 0
      %1114 = vmatprep.subr.bf16.mxu0 0
      %1115 = vmatpush2.bf16.msra.mxu0 0
      %1116 = vmatprep.subr.bf16.mxu0 0
      %1117 = vmatpush2.bf16.msra.mxu0 0
      %1118 = vmatprep.subr.bf16.mxu0 0
      %1119 = vmatpush2.bf16.msra.mxu0 0
      %1120 = vmatprep.subr.bf16.mxu0 0
      %1121 = vmatpush2.bf16.msra.mxu0 0
      %1122 = vmatprep.mubr.bf16.mxu0 0
      %1123 = vmatmul.mubr.bf16.gmra.mxu0 %v1088
      %v1124 = vpop.f32.mrf.mxu0
      %v1125 = vadd.f32 %v1073, %v1124
      %v1126 = vpop.f32.mrf.mxu0
      %v1127 = vpop.f32.mrf.mxu0
      %v1128 = vpop.f32.mrf.mxu0
      %1129 = vdwg.mxu0
      %v1130 = vmax.f32 %v1125, 0.0
      %v1131 = vpack.c.bf16 %v1130, %v1130
      %v1132 = vld [vmem:[%s9] sm:$0xf]
      %v1133 = vld [vmem:[%s9 + $0x4] sm:$0xf]
      %v1134 = vld [vmem:[%s9 + $0x8] sm:$0xf]
      %v1135 = vld [vmem:[%s9 + $0xc] sm:$0xf]
      %v1136 = vld [vmem:[%s9 + $0x10] sm:$0xf]
      %v1137 = vld [vmem:[%s9 + $0x14] sm:$0xf]
      %v1138 = vld [vmem:[%s9 + $0x18] sm:$0xf]
      %v1139 = vld [vmem:[%s9 + $0x1c] sm:$0xf]
      %v1140 = vld [vmem:[%s10] sm:$0x1]
      %v1142 = vlaneseq
      %v1143 = vshrl.u32 %v1142, 7
      %v1144 = vsub.s32 0, %v1143
      %v1145 = vrot.slane %v1140, %v1144
      %v1155 = vunpack.c.l.b16 %v1132
      %v1156 = vunpack.c.l.b16 %v1133
      %v1157 = vunpack.c.l.b16 %v1134
      %v1158 = vunpack.c.l.b16 %v1135
      %v1159 = vunpack.c.l.b16 %v1136
      %v1160 = vunpack.c.l.b16 %v1137
      %v1161 = vunpack.c.l.b16 %v1138
      %v1162 = vunpack.c.l.b16 %v1139
      %v1163 = vpack.c.b16 %v1156, %v1155
      %v1164 = vpack.c.b16 %v1158, %v1157
      %v1165 = vpack.c.b16 %v1160, %v1159
      %v1166 = vpack.c.b16 %v1162, %v1161
      %vm1171 = vcmask 523264
      %v1173 = vsel %vm1171, %v1131, 0
      %1175 = vmatprep.subr.bf16.mxu0 0
      %1176 = vmatpush1.bf16.msra.mxu0 0
      %1177 = vmatprep.subr.bf16.mxu0 0
      %1178 = vmatpush1.bf16.msra.mxu0 0
      %1179 = vmatprep.subr.bf16.mxu0 0
      %1180 = vmatpush1.bf16.msra.mxu0 0
      %1181 = vmatprep.subr.bf16.mxu0 0
      %1182 = vmatpush1.bf16.msra.mxu0 0
      %1183 = vmatprep.subr.bf16.mxu0 0
      %1184 = vmatpush1.bf16.msra.mxu0 %v1166
      %1185 = vmatprep.subr.bf16.mxu0 0
      %1186 = vmatpush1.bf16.msra.mxu0 %v1165
      %1187 = vmatprep.subr.bf16.mxu0 0
      %1188 = vmatpush1.bf16.msra.mxu0 %v1164
      %1189 = vmatprep.subr.bf16.mxu0 0
      %1190 = vmatpush1.bf16.msra.mxu0 %v1163
      %1191 = vmatprep.subr.bf16.mxu0 0
      %1192 = vmatpush2.bf16.msra.mxu0 0
      %1193 = vmatprep.subr.bf16.mxu0 0
      %1194 = vmatpush2.bf16.msra.mxu0 0
      %1195 = vmatprep.subr.bf16.mxu0 0
      %1196 = vmatpush2.bf16.msra.mxu0 0
      %1197 = vmatprep.subr.bf16.mxu0 0
      %1198 = vmatpush2.bf16.msra.mxu0 0
      %1199 = vmatprep.subr.bf16.mxu0 0
      %1200 = vmatpush2.bf16.msra.mxu0 0
      %1201 = vmatprep.subr.bf16.mxu0 0
      %1202 = vmatpush2.bf16.msra.mxu0 0
      %1203 = vmatprep.subr.bf16.mxu0 0
      %1204 = vmatpush2.bf16.msra.mxu0 0
      %1205 = vmatprep.subr.bf16.mxu0 0
      %1206 = vmatpush2.bf16.msra.mxu0 0
      %1207 = vmatprep.mubr.bf16.mxu0 0
      %1208 = vmatmul.mubr.bf16.gmra.mxu0 %v1173
      %v1209 = vpop.f32.mrf.mxu0
      %v1210 = vadd.f32 %v1145, %v1209
      %v1211 = vpop.f32.mrf.mxu0
      %v1212 = vpop.f32.mrf.mxu0
      %v1213 = vpop.f32.mrf.mxu0
      %1214 = vdwg.mxu0
      %v1215 = vadd.f32 %v1062, %v1210
      %v1216 = vld [vmem:[%s11] sm:$0x1]
      %v1217 = vld [vmem:[%s12] sm:$0x1]
      %v1218 = vsel %vm462, %v1215, 0.0
      %1219 = vadd.xlane.f32.xlu0 %v1218
      %v1220 = vpop.xlane.xlu0 %1219
      %v1221 = vmul.f32 %v1220, %v1038
      %v1222 = vsub.f32 %v1215, %v1221
      %v1223 = vmul.f32 %v1222, %v1222
      %v1224 = vsel %vm462, %v1223, 0.0
      %1225 = vadd.xlane.f32.xlu0 %v1224
      %v1226 = vpop.xlane.xlu0 %1225
      %v1227 = vmul.f32 %v1226, %v1038
      %v1228 = vadd.f32 %v1227, 1e-05
      %v1229 = vrsqrt.pop %v1228
      %v1230 = vmul.f32 %v1222, %v1229
      %v1232 = vlaneseq
      %v1233 = vshrl.u32 %v1232, 7
      %v1234 = vsub.s32 0, %v1233
      %v1235 = vrot.slane %v1216, %v1234
      %v1237 = vmul.f32 %v1230, %v1235
      %v1239 = vlaneseq
      %v1240 = vshrl.u32 %v1239, 7
      %v1241 = vsub.s32 0, %v1240
      %v1242 = vrot.slane %v1217, %v1241
      %v1244 = vadd.f32 %v1237, %v1242
      %1245 = vst.msk [vmem:[%s435] sm:$0xff] %vm462, %v1244
      %p1246 = scmp.lt.s32.totalorder %s24, 1
      %s1247 = scalar_select %p1246, %s24, 1
      %s1248 = smul.addr %s1247, 8
      %s1249 = scalar_lea.vmem %s13, %s1248
      // Predicated region
      $region73: #{transformer_forward.5} parent=71 // pred_check
        %p1250 = pneg %p320
      $region74: #{transformer_forward.5} parent=71 // pred_check_branch
        %1252 = sbr.rel (%p1250) target = $region76
      $region75: #{transformer_forward.5} parent=71 // pred_region
        _
      $region76: #{transformer_forward.5} parent=71 // pred_fallthru
        _
    $region72: #{transformer_forward.5} parent=5 // pred_fallthru
      _
    %p1253 = scmp.le.s32.totalorder 2, %s19
    // Predicated region
    $region77: #{transformer_forward.5} parent=5 // pred_check
      %p1254 = pneg %p1253
    $region78: #{transformer_forward.5} parent=5 // pred_check_branch
      %1256 = sbr.rel (%p1254) target = $region80
    $region79: #{transformer_forward.5} parent=5 // pred_region
      %s1257 = ssub.s32 %s19, 2
      // Predicated region
      $region81: #{transformer_forward.5} parent=79 // pred_check
        %p1258 = pneg %p326
      $region82: #{transformer_forward.5} parent=79 // pred_check_branch
        %1260 = sbr.rel (%p1258) target = $region84
      $region83: #{transformer_forward.5} parent=79 // pred_region
        %p1261 = scmp.lt.s32.totalorder %s25, 1
        %s1262 = scalar_select %p1261, %s25, 1
        %s1263 = smul.addr %s1262, 8
        %s1264 = scalar_lea.vmem %s13, %s1263
      $region84: #{transformer_forward.5} parent=79 // pred_fallthru
        _
    $region80: #{transformer_forward.5} parent=5 // pred_fallthru
      _
  $region6: #{transformer_forward.5} parent=0 // loop_footer
    %s23 = sadd.s32 1, %s19
  $region7: #{transformer_forward.5} parent=0 // loop_footer_branch
    %18 = sbr.rel target = $region3
  $region8: #{transformer_forward.5} parent=0 // loop_exit
    _

// kernel: transformer_forward.7
$region0: #{transformer_forward.7}
  #allocation0 [shape = 'u32[]', space=smem, size = 0x4, offset = 0x4, fixed_abs, tag = 'smem constant byte address 0x4 - core index']
  #allocation1 [shape = 'u32[144,128]{1,0:T(1,128)}', space=vmem, size = 0x12000, scoped, tag = 'internal scratch']
  %s0 = inlined_call_operand.vmem [shape: f32[2,8,32], index: 0, kind: input, shape index: {}]
  %s1 = inlined_call_operand.vmem [shape: f32[2,8,32], index: 1, kind: input, shape index: {}]
  %s2 = inlined_call_operand.vmem [shape: bf16[32,96], index: 2, kind: input, shape index: {}]
  %s3 = inlined_call_operand.vmem [shape: f32[1,96], index: 3, kind: input, shape index: {}]
  %s4 = inlined_call_operand.vmem [shape: bf16[32,32], index: 4, kind: input, shape index: {}]
  %s5 = inlined_call_operand.vmem [shape: f32[1,32], index: 5, kind: input, shape index: {}]
  %s6 = inlined_call_operand.vmem [shape: f32[1,32], index: 6, kind: input, shape index: {}]
  %s7 = inlined_call_operand.vmem [shape: f32[1,32], index: 7, kind: input, shape index: {}]
  %s8 = inlined_call_operand.vmem [shape: bf16[32,96], index: 8, kind: input, shape index: {}]
  %s9 = inlined_call_operand.vmem [shape: f32[1,96], index: 9, kind: input, shape index: {}]
  %s10 = inlined_call_operand.vmem [shape: bf16[32,32], index: 10, kind: input, shape index: {}]
  %s11 = inlined_call_operand.vmem [shape: f32[1,32], index: 11, kind: input, shape index: {}]
  %s12 = inlined_call_operand.vmem [shape: f32[1,32], index: 12, kind: input, shape index: {}]
  %s13 = inlined_call_operand.vmem [shape: f32[1,32], index: 13, kind: input, shape index: {}]
  %s14 = inlined_call_operand.vmem [shape: bf16[32,64], index: 14, kind: input, shape index: {}]
  %s15 = inlined_call_operand.vmem [shape: f32[1,64], index: 15, kind: input, shape index: {}]
  %s16 = inlined_call_operand.vmem [shape: bf16[64,32], index: 16, kind: input, shape index: {}]
  %s17 = inlined_call_operand.vmem [shape: f32[1,32], index: 17, kind: input, shape index: {}]
  %s18 = inlined_call_operand.vmem [shape: f32[1,32], index: 18, kind: input, shape index: {}]
  %s19 = inlined_call_operand.vmem [shape: f32[1,32], index: 19, kind: input, shape index: {}]
  %s20 = inlined_call_operand.vmem [shape: f32[2,8,32], index: 20, kind: output, shape index: {}]
  %s21 = sld [smem:[#allocation0]]
  $region113: #{transformer_forward.7} parent=0
    _
  %s23 = ssub.s32 1, %s21
  %s24 = scalar_select 0, %s23, %s21
  loop: start=0, step=1, limit=4
  $region2: #{transformer_forward.7} parent=0 // loop_pre_header
    _
  $region3: #{transformer_forward.7} parent=0 // loop_header
    %s26 = sphi 0, %s30
    %p27 = scmp.ge.s32.totalorder %s26, 4
    %s36 = sphi 0, %s38
    %s39 = sphi 0, %s36
    %s40 = sphi 0, %s39
    %s56 = sphi 0, %s40
    %s62 = sphi 0, %s64
    %s65 = sphi 0, %s62
    %s66 = sphi 0, %s65
    %s82 = sphi 0, %s66
    %s86 = sphi 0, %s86
    %s88 = sphi 0, %s86
    %s89 = sphi 0, %s88
    %s103 = sphi 0, %s89
    %s107 = sphi 0, %s107
    %s109 = sphi 0, %s107
    %s110 = sphi 0, %s109
    %s124 = sphi 0, %s110
    %s128 = sphi 0, %s128
    %s130 = sphi 0, %s128
    %s131 = sphi 0, %s130
    %s145 = sphi 0, %s131
    %s149 = sphi 0, %s149
    %s151 = sphi 0, %s149
    %s152 = sphi 0, %s151
    %s166 = sphi 0, %s152
    %s170 = sphi 0, %s170
    %s172 = sphi 0, %s170
    %s173 = sphi 0, %s172
    %s187 = sphi 0, %s173
    %s191 = sphi 0, %s191
    %s193 = sphi 0, %s191
    %s194 = sphi 0, %s193
    %s208 = sphi 0, %s194
    %s212 = sphi 0, %s212
    %s214 = sphi 0, %s212
    %s215 = sphi 0, %s214
    %s229 = sphi 0, %s215
    %s233 = sphi 0, %s233
    %s235 = sphi 0, %s233
    %s236 = sphi 0, %s235
    %s250 = sphi 0, %s236
    %s254 = sphi 0, %s254
    %s256 = sphi 0, %s254
    %s257 = sphi 0, %s256
    %s271 = sphi 0, %s257
    %s275 = sphi 0, %s275
    %s277 = sphi 0, %s275
    %s278 = sphi 0, %s277
    %s292 = sphi 0, %s278
    %s296 = sphi 0, %s296
    %s298 = sphi 0, %s296
    %s299 = sphi 0, %s298
    %s313 = sphi 0, %s299
    %s317 = sphi 0, %s317
    %s319 = sphi 0, %s317
    %s320 = sphi 0, %s319
    %s334 = sphi 0, %s320
    %s338 = sphi 0, %s338
    %s340 = sphi 0, %s338
    %s341 = sphi 0, %s340
    %s355 = sphi 0, %s341
    %s359 = sphi 0, %s359
    %s361 = sphi 0, %s359
    %s362 = sphi 0, %s361
    %s376 = sphi 0, %s362
    %s380 = sphi 0, %s380
    %s382 = sphi 0, %s380
    %s383 = sphi 0, %s382
    %s397 = sphi 0, %s383
    %s401 = sphi 0, %s401
    %s403 = sphi 0, %s401
    %s404 = sphi 0, %s403
    %s418 = sphi 0, %s404
    %s422 = sphi 0, %s422
    %s424 = sphi 0, %s422
    %s425 = sphi 0, %s424
    %s439 = sphi 0, %s425
    %s443 = sphi 0, %s443
    %s445 = sphi 0, %s443
    %s446 = sphi 0, %s445
    %s460 = sphi 0, %s446
    %s466 = sphi 0, %s468
    %s469 = sphi 0, %s466
    %s470 = sphi 0, %s469
    %s486 = sphi 0, %s470
  $region4: #{transformer_forward.7} parent=0 // loop_header_branch
    %29 = sbr.rel (%p27) target = $region8
  $region5: #{transformer_forward.7} parent=0 // loop_body
    %s31 = ssub.s32 %s26, 1
    %s32 = ssub.s32 %s26, 2
    %s33 = sadd.s32 %s26, 1
    %s34 = ssub.s32 %s26, %s33
    %p35 = scmp.eq.s32.totalorder %s34, 0
    %s37 = sadd.s32 %s36, 1
    %s38 = scalar_select %p35, %s36, %s37
    %p41 = pneg %p35
    %p42 = scmp.eq.s32.totalorder %s26, 1
    %p43 = por %p41, %p42
    %p44 = scmp.ne.s32.totalorder %s36, %s39
    %p45 = scmp.eq.s32.totalorder %s26, 0
    %p46 = por %p44, %p45
    %p47 = scmp.ne.s32.totalorder %s36, %s39
    %p48 = scmp.eq.s32.totalorder %s31, 1
    %p49 = por %p47, %p48
    %p50 = scmp.ne.s32.totalorder %s39, %s40
    %p51 = scmp.eq.s32.totalorder %s31, 0
    %p52 = por %p50, %p51
    %p53 = scmp.ne.s32.totalorder %s39, %s40
    %p54 = scmp.eq.s32.totalorder %s32, 1
    %p55 = por %p53, %p54
    %p57 = scmp.ne.s32.totalorder %s40, %s56
    %p58 = scmp.eq.s32.totalorder %s32, 0
    %p59 = por %p57, %p58
    %s60 = ssub.s32 %s26, %s33
    %p61 = scmp.eq.s32.totalorder %s60, 0
    %s63 = sadd.s32 %s62, 1
    %s64 = scalar_select %p61, %s62, %s63
    %p67 = pneg %p61
    %p68 = scmp.eq.s32.totalorder %s26, 1
    %p69 = por %p67, %p68
    %p70 = scmp.ne.s32.totalorder %s62, %s65
    %p71 = scmp.eq.s32.totalorder %s26, 0
    %p72 = por %p70, %p71
    %p73 = scmp.ne.s32.totalorder %s62, %s65
    %p74 = scmp.eq.s32.totalorder %s31, 1
    %p75 = por %p73, %p74
    %p76 = scmp.ne.s32.totalorder %s65, %s66
    %p77 = scmp.eq.s32.totalorder %s31, 0
    %p78 = por %p76, %p77
    %p79 = scmp.ne.s32.totalorder %s65, %s66
    %p80 = scmp.eq.s32.totalorder %s32, 1
    %p81 = por %p79, %p80
    %p83 = scmp.ne.s32.totalorder %s66, %s82
    %p84 = scmp.eq.s32.totalorder %s32, 0
    %p85 = por %p83, %p84
    %s87 = sadd.s32 %s86, 1
    %p90 = scmp.eq.s32.totalorder %s26, 1
    %p91 = scmp.ne.s32.totalorder %s86, %s88
    %p92 = scmp.eq.s32.totalorder %s26, 0
    %p93 = por %p91, %p92
    %p94 = scmp.ne.s32.totalorder %s86, %s88
    %p95 = scmp.eq.s32.totalorder %s31, 1
    %p96 = por %p94, %p95
    %p97 = scmp.ne.s32.totalorder %s88, %s89
    %p98 = scmp.eq.s32.totalorder %s31, 0
    %p99 = por %p97, %p98
    %p100 = scmp.ne.s32.totalorder %s88, %s89
    %p101 = scmp.eq.s32.totalorder %s32, 1
    %p102 = por %p100, %p101
    %p104 = scmp.ne.s32.totalorder %s89, %s103
    %p105 = scmp.eq.s32.totalorder %s32, 0
    %p106 = por %p104, %p105
    %s108 = sadd.s32 %s107, 1
    %p111 = scmp.eq.s32.totalorder %s26, 1
    %p112 = scmp.ne.s32.totalorder %s107, %s109
    %p113 = scmp.eq.s32.totalorder %s26, 0
    %p114 = por %p112, %p113
    %p115 = scmp.ne.s32.totalorder %s107, %s109
    %p116 = scmp.eq.s32.totalorder %s31, 1
    %p117 = por %p115, %p116
    %p118 = scmp.ne.s32.totalorder %s109, %s110
    %p119 = scmp.eq.s32.totalorder %s31, 0
    %p120 = por %p118, %p119
    %p121 = scmp.ne.s32.totalorder %s109, %s110
    %p122 = scmp.eq.s32.totalorder %s32, 1
    %p123 = por %p121, %p122
    %p125 = scmp.ne.s32.totalorder %s110, %s124
    %p126 = scmp.eq.s32.totalorder %s32, 0
    %p127 = por %p125, %p126
    %s129 = sadd.s32 %s128, 1
    %p132 = scmp.eq.s32.totalorder %s26, 1
    %p133 = scmp.ne.s32.totalorder %s128, %s130
    %p134 = scmp.eq.s32.totalorder %s26, 0
    %p135 = por %p133, %p134
    %p136 = scmp.ne.s32.totalorder %s128, %s130
    %p137 = scmp.eq.s32.totalorder %s31, 1
    %p138 = por %p136, %p137
    %p139 = scmp.ne.s32.totalorder %s130, %s131
    %p140 = scmp.eq.s32.totalorder %s31, 0
    %p141 = por %p139, %p140
    %p142 = scmp.ne.s32.totalorder %s130, %s131
    %p143 = scmp.eq.s32.totalorder %s32, 1
    %p144 = por %p142, %p143
    %p146 = scmp.ne.s32.totalorder %s131, %s145
    %p147 = scmp.eq.s32.totalorder %s32, 0
    %p148 = por %p146, %p147
    %s150 = sadd.s32 %s149, 1
    %p153 = scmp.eq.s32.totalorder %s26, 1
    %p154 = scmp.ne.s32.totalorder %s149, %s151
    %p155 = scmp.eq.s32.totalorder %s26, 0
    %p156 = por %p154, %p155
    %p157 = scmp.ne.s32.totalorder %s149, %s151
    %p158 = scmp.eq.s32.totalorder %s31, 1
    %p159 = por %p157, %p158
    %p160 = scmp.ne.s32.totalorder %s151, %s152
    %p161 = scmp.eq.s32.totalorder %s31, 0
    %p162 = por %p160, %p161
    %p163 = scmp.ne.s32.totalorder %s151, %s152
    %p164 = scmp.eq.s32.totalorder %s32, 1
    %p165 = por %p163, %p164
    %p167 = scmp.ne.s32.totalorder %s152, %s166
    %p168 = scmp.eq.s32.totalorder %s32, 0
    %p169 = por %p167, %p168
    %s171 = sadd.s32 %s170, 1
    %p174 = scmp.eq.s32.totalorder %s26, 1
    %p175 = scmp.ne.s32.totalorder %s170, %s172
    %p176 = scmp.eq.s32.totalorder %s26, 0
    %p177 = por %p175, %p176
    %p178 = scmp.ne.s32.totalorder %s170, %s172
    %p179 = scmp.eq.s32.totalorder %s31, 1
    %p180 = por %p178, %p179
    %p181 = scmp.ne.s32.totalorder %s172, %s173
    %p182 = scmp.eq.s32.totalorder %s31, 0
    %p183 = por %p181, %p182
    %p184 = scmp.ne.s32.totalorder %s172, %s173
    %p185 = scmp.eq.s32.totalorder %s32, 1
    %p186 = por %p184, %p185
    %p188 = scmp.ne.s32.totalorder %s173, %s187
    %p189 = scmp.eq.s32.totalorder %s32, 0
    %p190 = por %p188, %p189
    %s192 = sadd.s32 %s191, 1
    %p195 = scmp.eq.s32.totalorder %s26, 1
    %p196 = scmp.ne.s32.totalorder %s191, %s193
    %p197 = scmp.eq.s32.totalorder %s26, 0
    %p198 = por %p196, %p197
    %p199 = scmp.ne.s32.totalorder %s191, %s193
    %p200 = scmp.eq.s32.totalorder %s31, 1
    %p201 = por %p199, %p200
    %p202 = scmp.ne.s32.totalorder %s193, %s194
    %p203 = scmp.eq.s32.totalorder %s31, 0
    %p204 = por %p202, %p203
    %p205 = scmp.ne.s32.totalorder %s193, %s194
    %p206 = scmp.eq.s32.totalorder %s32, 1
    %p207 = por %p205, %p206
    %p209 = scmp.ne.s32.totalorder %s194, %s208
    %p210 = scmp.eq.s32.totalorder %s32, 0
    %p211 = por %p209, %p210
    %s213 = sadd.s32 %s212, 1
    %p216 = scmp.eq.s32.totalorder %s26, 1
    %p217 = scmp.ne.s32.totalorder %s212, %s214
    %p218 = scmp.eq.s32.totalorder %s26, 0
    %p219 = por %p217, %p218
    %p220 = scmp.ne.s32.totalorder %s212, %s214
    %p221 = scmp.eq.s32.totalorder %s31, 1
    %p222 = por %p220, %p221
    %p223 = scmp.ne.s32.totalorder %s214, %s215
    %p224 = scmp.eq.s32.totalorder %s31, 0
    %p225 = por %p223, %p224
    %p226 = scmp.ne.s32.totalorder %s214, %s215
    %p227 = scmp.eq.s32.totalorder %s32, 1
    %p228 = por %p226, %p227
    %p230 = scmp.ne.s32.totalorder %s215, %s229
    %p231 = scmp.eq.s32.totalorder %s32, 0
    %p232 = por %p230, %p231
    %s234 = sadd.s32 %s233, 1
    %p237 = scmp.eq.s32.totalorder %s26, 1
    %p238 = scmp.ne.s32.totalorder %s233, %s235
    %p239 = scmp.eq.s32.totalorder %s26, 0
    %p240 = por %p238, %p239
    %p241 = scmp.ne.s32.totalorder %s233, %s235
    %p242 = scmp.eq.s32.totalorder %s31, 1
    %p243 = por %p241, %p242
    %p244 = scmp.ne.s32.totalorder %s235, %s236
    %p245 = scmp.eq.s32.totalorder %s31, 0
    %p246 = por %p244, %p245
    %p247 = scmp.ne.s32.totalorder %s235, %s236
    %p248 = scmp.eq.s32.totalorder %s32, 1
    %p249 = por %p247, %p248
    %p251 = scmp.ne.s32.totalorder %s236, %s250
    %p252 = scmp.eq.s32.totalorder %s32, 0
    %p253 = por %p251, %p252
    %s255 = sadd.s32 %s254, 1
    %p258 = scmp.eq.s32.totalorder %s26, 1
    %p259 = scmp.ne.s32.totalorder %s254, %s256
    %p260 = scmp.eq.s32.totalorder %s26, 0
    %p261 = por %p259, %p260
    %p262 = scmp.ne.s32.totalorder %s254, %s256
    %p263 = scmp.eq.s32.totalorder %s31, 1
    %p264 = por %p262, %p263
    %p265 = scmp.ne.s32.totalorder %s256, %s257
    %p266 = scmp.eq.s32.totalorder %s31, 0
    %p267 = por %p265, %p266
    %p268 = scmp.ne.s32.totalorder %s256, %s257
    %p269 = scmp.eq.s32.totalorder %s32, 1
    %p270 = por %p268, %p269
    %p272 = scmp.ne.s32.totalorder %s257, %s271
    %p273 = scmp.eq.s32.totalorder %s32, 0
    %p274 = por %p272, %p273
    %s276 = sadd.s32 %s275, 1
    %p279 = scmp.eq.s32.totalorder %s26, 1
    %p280 = scmp.ne.s32.totalorder %s275, %s277
    %p281 = scmp.eq.s32.totalorder %s26, 0
    %p282 = por %p280, %p281
    %p283 = scmp.ne.s32.totalorder %s275, %s277
    %p284 = scmp.eq.s32.totalorder %s31, 1
    %p285 = por %p283, %p284
    %p286 = scmp.ne.s32.totalorder %s277, %s278
    %p287 = scmp.eq.s32.totalorder %s31, 0
    %p288 = por %p286, %p287
    %p289 = scmp.ne.s32.totalorder %s277, %s278
    %p290 = scmp.eq.s32.totalorder %s32, 1
    %p291 = por %p289, %p290
    %p293 = scmp.ne.s32.totalorder %s278, %s292
    %p294 = scmp.eq.s32.totalorder %s32, 0
    %p295 = por %p293, %p294
    %s297 = sadd.s32 %s296, 1
    %p300 = scmp.eq.s32.totalorder %s26, 1
    %p301 = scmp.ne.s32.totalorder %s296, %s298
    %p302 = scmp.eq.s32.totalorder %s26, 0
    %p303 = por %p301, %p302
    %p304 = scmp.ne.s32.totalorder %s296, %s298
    %p305 = scmp.eq.s32.totalorder %s31, 1
    %p306 = por %p304, %p305
    %p307 = scmp.ne.s32.totalorder %s298, %s299
    %p308 = scmp.eq.s32.totalorder %s31, 0
    %p309 = por %p307, %p308
    %p310 = scmp.ne.s32.totalorder %s298, %s299
    %p311 = scmp.eq.s32.totalorder %s32, 1
    %p312 = por %p310, %p311
    %p314 = scmp.ne.s32.totalorder %s299, %s313
    %p315 = scmp.eq.s32.totalorder %s32, 0
    %p316 = por %p314, %p315
    %s318 = sadd.s32 %s317, 1
    %p321 = scmp.eq.s32.totalorder %s26, 1
    %p322 = scmp.ne.s32.totalorder %s317, %s319
    %p323 = scmp.eq.s32.totalorder %s26, 0
    %p324 = por %p322, %p323
    %p325 = scmp.ne.s32.totalorder %s317, %s319
    %p326 = scmp.eq.s32.totalorder %s31, 1
    %p327 = por %p325, %p326
    %p328 = scmp.ne.s32.totalorder %s319, %s320
    %p329 = scmp.eq.s32.totalorder %s31, 0
    %p330 = por %p328, %p329
    %p331 = scmp.ne.s32.totalorder %s319, %s320
    %p332 = scmp.eq.s32.totalorder %s32, 1
    %p333 = por %p331, %p332
    %p335 = scmp.ne.s32.totalorder %s320, %s334
    %p336 = scmp.eq.s32.totalorder %s32, 0
    %p337 = por %p335, %p336
    %s339 = sadd.s32 %s338, 1
    %p342 = scmp.eq.s32.totalorder %s26, 1
    %p343 = scmp.ne.s32.totalorder %s338, %s340
    %p344 = scmp.eq.s32.totalorder %s26, 0
    %p345 = por %p343, %p344
    %p346 = scmp.ne.s32.totalorder %s338, %s340
    %p347 = scmp.eq.s32.totalorder %s31, 1
    %p348 = por %p346, %p347
    %p349 = scmp.ne.s32.totalorder %s340, %s341
    %p350 = scmp.eq.s32.totalorder %s31, 0
    %p351 = por %p349, %p350
    %p352 = scmp.ne.s32.totalorder %s340, %s341
    %p353 = scmp.eq.s32.totalorder %s32, 1
    %p354 = por %p352, %p353
    %p356 = scmp.ne.s32.totalorder %s341, %s355
    %p357 = scmp.eq.s32.totalorder %s32, 0
    %p358 = por %p356, %p357
    %s360 = sadd.s32 %s359, 1
    %p363 = scmp.eq.s32.totalorder %s26, 1
    %p364 = scmp.ne.s32.totalorder %s359, %s361
    %p365 = scmp.eq.s32.totalorder %s26, 0
    %p366 = por %p364, %p365
    %p367 = scmp.ne.s32.totalorder %s359, %s361
    %p368 = scmp.eq.s32.totalorder %s31, 1
    %p369 = por %p367, %p368
    %p370 = scmp.ne.s32.totalorder %s361, %s362
    %p371 = scmp.eq.s32.totalorder %s31, 0
    %p372 = por %p370, %p371
    %p373 = scmp.ne.s32.totalorder %s361, %s362
    %p374 = scmp.eq.s32.totalorder %s32, 1
    %p375 = por %p373, %p374
    %p377 = scmp.ne.s32.totalorder %s362, %s376
    %p378 = scmp.eq.s32.totalorder %s32, 0
    %p379 = por %p377, %p378
    %s381 = sadd.s32 %s380, 1
    %p384 = scmp.eq.s32.totalorder %s26, 1
    %p385 = scmp.ne.s32.totalorder %s380, %s382
    %p386 = scmp.eq.s32.totalorder %s26, 0
    %p387 = por %p385, %p386
    %p388 = scmp.ne.s32.totalorder %s380, %s382
    %p389 = scmp.eq.s32.totalorder %s31, 1
    %p390 = por %p388, %p389
    %p391 = scmp.ne.s32.totalorder %s382, %s383
    %p392 = scmp.eq.s32.totalorder %s31, 0
    %p393 = por %p391, %p392
    %p394 = scmp.ne.s32.totalorder %s382, %s383
    %p395 = scmp.eq.s32.totalorder %s32, 1
    %p396 = por %p394, %p395
    %p398 = scmp.ne.s32.totalorder %s383, %s397
    %p399 = scmp.eq.s32.totalorder %s32, 0
    %p400 = por %p398, %p399
    %s402 = sadd.s32 %s401, 1
    %p405 = scmp.eq.s32.totalorder %s26, 1
    %p406 = scmp.ne.s32.totalorder %s401, %s403
    %p407 = scmp.eq.s32.totalorder %s26, 0
    %p408 = por %p406, %p407
    %p409 = scmp.ne.s32.totalorder %s401, %s403
    %p410 = scmp.eq.s32.totalorder %s31, 1
    %p411 = por %p409, %p410
    %p412 = scmp.ne.s32.totalorder %s403, %s404
    %p413 = scmp.eq.s32.totalorder %s31, 0
    %p414 = por %p412, %p413
    %p415 = scmp.ne.s32.totalorder %s403, %s404
    %p416 = scmp.eq.s32.totalorder %s32, 1
    %p417 = por %p415, %p416
    %p419 = scmp.ne.s32.totalorder %s404, %s418
    %p420 = scmp.eq.s32.totalorder %s32, 0
    %p421 = por %p419, %p420
    %s423 = sadd.s32 %s422, 1
    %p426 = scmp.eq.s32.totalorder %s26, 1
    %p427 = scmp.ne.s32.totalorder %s422, %s424
    %p428 = scmp.eq.s32.totalorder %s26, 0
    %p429 = por %p427, %p428
    %p430 = scmp.ne.s32.totalorder %s422, %s424
    %p431 = scmp.eq.s32.totalorder %s31, 1
    %p432 = por %p430, %p431
    %p433 = scmp.ne.s32.totalorder %s424, %s425
    %p434 = scmp.eq.s32.totalorder %s31, 0
    %p435 = por %p433, %p434
    %p436 = scmp.ne.s32.totalorder %s424, %s425
    %p437 = scmp.eq.s32.totalorder %s32, 1
    %p438 = por %p436, %p437
    %p440 = scmp.ne.s32.totalorder %s425, %s439
    %p441 = scmp.eq.s32.totalorder %s32, 0
    %p442 = por %p440, %p441
    %s444 = sadd.s32 %s443, 1
    %p447 = scmp.eq.s32.totalorder %s26, 1
    %p448 = scmp.ne.s32.totalorder %s443, %s445
    %p449 = scmp.eq.s32.totalorder %s26, 0
    %p450 = por %p448, %p449
    %p451 = scmp.ne.s32.totalorder %s443, %s445
    %p452 = scmp.eq.s32.totalorder %s31, 1
    %p453 = por %p451, %p452
    %p454 = scmp.ne.s32.totalorder %s445, %s446
    %p455 = scmp.eq.s32.totalorder %s31, 0
    %p456 = por %p454, %p455
    %p457 = scmp.ne.s32.totalorder %s445, %s446
    %p458 = scmp.eq.s32.totalorder %s32, 1
    %p459 = por %p457, %p458
    %p461 = scmp.ne.s32.totalorder %s446, %s460
    %p462 = scmp.eq.s32.totalorder %s32, 0
    %p463 = por %p461, %p462
    %s464 = ssub.s32 %s26, %s33
    %p465 = scmp.eq.s32.totalorder %s464, 0
    %s467 = sadd.s32 %s466, 1
    %s468 = scalar_select %p465, %s466, %s467
    %p471 = pneg %p465
    %p472 = scmp.eq.s32.totalorder %s26, 1
    %p473 = por %p471, %p472
    %p474 = scmp.ne.s32.totalorder %s466, %s469
    %p475 = scmp.eq.s32.totalorder %s26, 0
    %p476 = por %p474, %p475
    %p477 = scmp.ne.s32.totalorder %s466, %s469
    %p478 = scmp.eq.s32.totalorder %s31, 1
    %p479 = por %p477, %p478
    %p480 = scmp.ne.s32.totalorder %s469, %s470
    %p481 = scmp.eq.s32.totalorder %s31, 0
    %p482 = por %p480, %p481
    %p483 = scmp.ne.s32.totalorder %s469, %s470
    %p484 = scmp.eq.s32.totalorder %s32, 1
    %p485 = por %p483, %p484
    %p487 = scmp.ne.s32.totalorder %s470, %s486
    %p488 = scmp.eq.s32.totalorder %s32, 0
    %p489 = por %p487, %p488
    %p490 = scmp.le.s32.totalorder 1, %s26
    %p491 = scmp.lt.s32.totalorder %s26, 3
    %p492 = pnand %p490, %p491
    %p493 = pneg %p492
    // Predicated region
    $region9: #{transformer_forward.7} parent=5 // pred_check
      _
    $region10: #{transformer_forward.7} parent=5 // pred_check_branch
      %495 = sbr.rel (%p492) target = $region12
    $region11: #{transformer_forward.7} parent=5 // pred_region
      %s496 = ssub.s32 %s26, 1
      // Predicated region
      $region13: #{transformer_forward.7} parent=11 // pred_check
        %p497 = pneg %p99
      $region14: #{transformer_forward.7} parent=11 // pred_check_branch
        %499 = sbr.rel (%p497) target = $region16
      $region15: #{transformer_forward.7} parent=11 // pred_region
        _
      $region16: #{transformer_forward.7} parent=11 // pred_fallthru
        _
      // Predicated region
      $region17: #{transformer_forward.7} parent=11 // pred_check
        %p500 = pneg %p120
      $region18: #{transformer_forward.7} parent=11 // pred_check_branch
        %502 = sbr.rel (%p500) target = $region20
      $region19: #{transformer_forward.7} parent=11 // pred_region
        _
      $region20: #{transformer_forward.7} parent=11 // pred_fallthru
        _
      // Predicated region
      $region21: #{transformer_forward.7} parent=11 // pred_check
        %p503 = pneg %p141
      $region22: #{transformer_forward.7} parent=11 // pred_check_branch
        %505 = sbr.rel (%p503) target = $region24
      $region23: #{transformer_forward.7} parent=11 // pred_region
        _
      $region24: #{transformer_forward.7} parent=11 // pred_fallthru
        _
      // Predicated region
      $region25: #{transformer_forward.7} parent=11 // pred_check
        %p506 = pneg %p162
      $region26: #{transformer_forward.7} parent=11 // pred_check_branch
        %508 = sbr.rel (%p506) target = $region28
      $region27: #{transformer_forward.7} parent=11 // pred_region
        _
      $region28: #{transformer_forward.7} parent=11 // pred_fallthru
        _
      // Predicated region
      $region29: #{transformer_forward.7} parent=11 // pred_check
        %p509 = pneg %p183
      $region30: #{transformer_forward.7} parent=11 // pred_check_branch
        %511 = sbr.rel (%p509) target = $region32
      $region31: #{transformer_forward.7} parent=11 // pred_region
        _
      $region32: #{transformer_forward.7} parent=11 // pred_fallthru
        _
      // Predicated region
      $region33: #{transformer_forward.7} parent=11 // pred_check
        %p512 = pneg %p204
      $region34: #{transformer_forward.7} parent=11 // pred_check_branch
        %514 = sbr.rel (%p512) target = $region36
      $region35: #{transformer_forward.7} parent=11 // pred_region
        _
      $region36: #{transformer_forward.7} parent=11 // pred_fallthru
        _
      // Predicated region
      $region37: #{transformer_forward.7} parent=11 // pred_check
        %p515 = pneg %p225
      $region38: #{transformer_forward.7} parent=11 // pred_check_branch
        %517 = sbr.rel (%p515) target = $region40
      $region39: #{transformer_forward.7} parent=11 // pred_region
        _
      $region40: #{transformer_forward.7} parent=11 // pred_fallthru
        _
      // Predicated region
      $region41: #{transformer_forward.7} parent=11 // pred_check
        %p518 = pneg %p246
      $region42: #{transformer_forward.7} parent=11 // pred_check_branch
        %520 = sbr.rel (%p518) target = $region44
      $region43: #{transformer_forward.7} parent=11 // pred_region
        _
      $region44: #{transformer_forward.7} parent=11 // pred_fallthru
        _
      // Predicated region
      $region45: #{transformer_forward.7} parent=11 // pred_check
        %p521 = pneg %p267
      $region46: #{transformer_forward.7} parent=11 // pred_check_branch
        %523 = sbr.rel (%p521) target = $region48
      $region47: #{transformer_forward.7} parent=11 // pred_region
        _
      $region48: #{transformer_forward.7} parent=11 // pred_fallthru
        _
      // Predicated region
      $region49: #{transformer_forward.7} parent=11 // pred_check
        %p524 = pneg %p288
      $region50: #{transformer_forward.7} parent=11 // pred_check_branch
        %526 = sbr.rel (%p524) target = $region52
      $region51: #{transformer_forward.7} parent=11 // pred_region
        _
      $region52: #{transformer_forward.7} parent=11 // pred_fallthru
        _
      // Predicated region
      $region53: #{transformer_forward.7} parent=11 // pred_check
        %p527 = pneg %p309
      $region54: #{transformer_forward.7} parent=11 // pred_check_branch
        %529 = sbr.rel (%p527) target = $region56
      $region55: #{transformer_forward.7} parent=11 // pred_region
        _
      $region56: #{transformer_forward.7} parent=11 // pred_fallthru
        _
      // Predicated region
      $region57: #{transformer_forward.7} parent=11 // pred_check
        %p530 = pneg %p330
      $region58: #{transformer_forward.7} parent=11 // pred_check_branch
        %532 = sbr.rel (%p530) target = $region60
      $region59: #{transformer_forward.7} parent=11 // pred_region
        _
      $region60: #{transformer_forward.7} parent=11 // pred_fallthru
        _
      // Predicated region
      $region61: #{transformer_forward.7} parent=11 // pred_check
        %p533 = pneg %p351
      $region62: #{transformer_forward.7} parent=11 // pred_check_branch
        %535 = sbr.rel (%p533) target = $region64
      $region63: #{transformer_forward.7} parent=11 // pred_region
        _
      $region64: #{transformer_forward.7} parent=11 // pred_fallthru
        _
      // Predicated region
      $region65: #{transformer_forward.7} parent=11 // pred_check
        %p536 = pneg %p372
      $region66: #{transformer_forward.7} parent=11 // pred_check_branch
        %538 = sbr.rel (%p536) target = $region68
      $region67: #{transformer_forward.7} parent=11 // pred_region
        _
      $region68: #{transformer_forward.7} parent=11 // pred_fallthru
        _
      // Predicated region
      $region69: #{transformer_forward.7} parent=11 // pred_check
        %p539 = pneg %p393
      $region70: #{transformer_forward.7} parent=11 // pred_check_branch
        %541 = sbr.rel (%p539) target = $region72
      $region71: #{transformer_forward.7} parent=11 // pred_region
        _
      $region72: #{transformer_forward.7} parent=11 // pred_fallthru
        _
      // Predicated region
      $region73: #{transformer_forward.7} parent=11 // pred_check
        %p542 = pneg %p414
      $region74: #{transformer_forward.7} parent=11 // pred_check_branch
        %544 = sbr.rel (%p542) target = $region76
      $region75: #{transformer_forward.7} parent=11 // pred_region
        _
      $region76: #{transformer_forward.7} parent=11 // pred_fallthru
        _
      // Predicated region
      $region77: #{transformer_forward.7} parent=11 // pred_check
        %p545 = pneg %p435
      $region78: #{transformer_forward.7} parent=11 // pred_check_branch
        %547 = sbr.rel (%p545) target = $region80
      $region79: #{transformer_forward.7} parent=11 // pred_region
        _
      $region80: #{transformer_forward.7} parent=11 // pred_fallthru
        _
      // Predicated region
      $region81: #{transformer_forward.7} parent=11 // pred_check
        %p548 = pneg %p456
      $region82: #{transformer_forward.7} parent=11 // pred_check_branch
        %550 = sbr.rel (%p548) target = $region84
      $region83: #{transformer_forward.7} parent=11 // pred_region
        _
      $region84: #{transformer_forward.7} parent=11 // pred_fallthru
        _
    $region12: #{transformer_forward.7} parent=5 // pred_fallthru
      _
    %p551 = scmp.lt.s32.totalorder %s26, 2
    // Predicated region
    $region85: #{transformer_forward.7} parent=5 // pred_check
      %p552 = pneg %p551
    $region86: #{transformer_forward.7} parent=5 // pred_check_branch
      %554 = sbr.rel (%p552) target = $region88
    $region87: #{transformer_forward.7} parent=5 // pred_region
      // Predicated region
      $region89: #{transformer_forward.7} parent=87 // pred_check
        %p555 = pneg %p46
      $region90: #{transformer_forward.7} parent=87 // pred_check_branch
        %557 = sbr.rel (%p555) target = $region92
      $region91: #{transformer_forward.7} parent=87 // pred_region
        %p558 = scmp.lt.s32.totalorder %s26, 1
        %s559 = scalar_select %p558, %s26, 1
        %s560 = smul.addr %s559, 8
        %s561 = scalar_lea.vmem %s0, %s560
      $region92: #{transformer_forward.7} parent=87 // pred_fallthru
        _
      // Predicated region
      $region93: #{transformer_forward.7} parent=87 // pred_check
        %p562 = pneg %p72
      $region94: #{transformer_forward.7} parent=87 // pred_check_branch
        %564 = sbr.rel (%p562) target = $region96
      $region95: #{transformer_forward.7} parent=87 // pred_region
        %p565 = scmp.lt.s32.totalorder %s26, 1
        %s566 = scalar_select %p565, %s26, 1
        %s567 = smul.addr %s566, 8
        %s568 = scalar_lea.vmem %s1, %s567
      $region96: #{transformer_forward.7} parent=87 // pred_fallthru
        _
    $region88: #{transformer_forward.7} parent=5 // pred_fallthru
      _
    %p569 = scmp.le.s32.totalorder 1, %s26
    %p570 = scmp.lt.s32.totalorder %s26, 3
    %p571 = pnand %p569, %p570
    %p572 = pneg %p571
    // Predicated region
    $region97: #{transformer_forward.7} parent=5 // pred_check
      _
    $region98: #{transformer_forward.7} parent=5 // pred_check_branch
      %574 = sbr.rel (%p571) target = $region100
    $region99: #{transformer_forward.7} parent=5 // pred_region
      %s575 = ssub.s32 %s26, 1
      %p576 = scmp.lt.s32.totalorder %s31, 1
      %s577 = scalar_select %p576, %s31, 1
      %s578 = smul.addr %s577, 8
      %s579 = scalar_lea.vmem %s0, %s578
      %p580 = pneg %p52
      %p581 = pneg %p49
      %p582 = scmp.lt.s32.totalorder %s31, 1
      %s583 = scalar_select %p582, %s31, 1
      %s584 = smul.addr %s583, 8
      %s585 = scalar_lea.vmem %s1, %s584
      %p586 = pneg %p78
      %p587 = pneg %p75
      %p588 = pneg %p99
      %p589 = pneg %p96
      %p590 = pneg %p120
      %p591 = pneg %p117
      %p592 = pneg %p141
      %p593 = pneg %p138
      %p594 = pneg %p162
      %p595 = pneg %p159
      %p596 = pneg %p183
      %p597 = pneg %p180
      %p598 = pneg %p204
      %p599 = pneg %p201
      %p600 = pneg %p225
      %p601 = pneg %p222
      %p602 = pneg %p246
      %p603 = pneg %p243
      %p604 = pneg %p267
      %p605 = pneg %p264
      %p606 = pneg %p288
      %p607 = pneg %p285
      %p608 = pneg %p309
      %p609 = pneg %p306
      %p610 = pneg %p330
      %p611 = pneg %p327
      %p612 = pneg %p351
      %p613 = pneg %p348
      %p614 = pneg %p372
      %p615 = pneg %p369
      %p616 = pneg %p393
      %p617 = pneg %p390
      %p618 = pneg %p414
      %p619 = pneg %p411
      %p620 = pneg %p435
      %p621 = pneg %p432
      %p622 = pneg %p456
      %p623 = pneg %p453
      %p624 = pneg %p482
      %p625 = pneg %p479
      %p626 = scmp.lt.s32.totalorder %s31, 1
      %s627 = scalar_select %p626, %s31, 1
      %s628 = smul.addr %s627, 8
      %s629 = scalar_lea.vmem %s20, %s628
      %p630 = scmp.lt.s32.totalorder %s31, 1
      %s631 = scalar_select %p630, %s31, 1
      %s632 = smul.addr %s631, 8
      %s633 = scalar_lea.vmem %s0, %s632
      %p634 = scmp.lt.s32.totalorder %s31, 1
      %s635 = scalar_select %p634, %s31, 1
      %s636 = smul.addr %s635, 8
      %s637 = scalar_lea.vmem %s1, %s636
      %p638 = scmp.lt.s32.totalorder %s31, 1
      %s639 = scalar_select %p638, %s31, 1
      %s640 = smul.addr %s639, 8
      %s641 = scalar_lea.vmem %s20, %s640
      %v643 = vld [vmem:[%s633] sm:$0xff]
      %v644 = vld [vmem:[%s637] sm:$0xff]
      %v645 = vpack.c.bf16 %v643, %v643
      %v646 = vld [vmem:[%s2] sm:$0xf]
      %v647 = vld [vmem:[%s2 + $0x4] sm:$0xf]
      %v648 = vld [vmem:[%s2 + $0x8] sm:$0xf]
      %v649 = vld [vmem:[%s2 + $0xc] sm:$0xf]
      %v650 = vld [vmem:[%s3] sm:$0x1]
      %v652 = vlaneseq
      %v653 = vshrl.u32 %v652, 7
      %v654 = vsub.s32 0, %v653
      %v655 = vrot.slane %v650, %v654
      %v661 = vunpack.c.l.b16 %v646
      %v662 = vunpack.c.l.b16 %v647
      %v663 = vunpack.c.l.b16 %v648
      %v664 = vunpack.c.l.b16 %v649
      %v665 = vpack.c.b16 %v662, %v661
      %v666 = vpack.c.b16 %v664, %v663
      %vm669 = vcmask 261120
      %v671 = vsel %vm669, %v645, 0
      %673 = vmatprep.subr.bf16.mxu0 0
      %674 = vmatpush1.bf16.msra.mxu0 0
      %675 = vmatprep.subr.bf16.mxu0 0
      %676 = vmatpush1.bf16.msra.mxu0 0
      %677 = vmatprep.subr.bf16.mxu0 0
      %678 = vmatpush1.bf16.msra.mxu0 0
      %679 = vmatprep.subr.bf16.mxu0 0
      %680 = vmatpush1.bf16.msra.mxu0 0
      %681 = vmatprep.subr.bf16.mxu0 0
      %682 = vmatpush1.bf16.msra.mxu0 0
      %683 = vmatprep.subr.bf16.mxu0 0
      %684 = vmatpush1.bf16.msra.mxu0 0
      %685 = vmatprep.subr.bf16.mxu0 0
      %686 = vmatpush1.bf16.msra.mxu0 %v666
      %687 = vmatprep.subr.bf16.mxu0 0
      %688 = vmatpush1.bf16.msra.mxu0 %v665
      %689 = vmatprep.subr.bf16.mxu0 0
      %690 = vmatpush2.bf16.msra.mxu0 0
      %691 = vmatprep.subr.bf16.mxu0 0
      %692 = vmatpush2.bf16.msra.mxu0 0
      %693 = vmatprep.subr.bf16.mxu0 0
      %694 = vmatpush2.bf16.msra.mxu0 0
      %695 = vmatprep.subr.bf16.mxu0 0
      %696 = vmatpush2.bf16.msra.mxu0 0
      %697 = vmatprep.subr.bf16.mxu0 0
      %698 = vmatpush2.bf16.msra.mxu0 0
      %699 = vmatprep.subr.bf16.mxu0 0
      %700 = vmatpush2.bf16.msra.mxu0 0
      %701 = vmatprep.subr.bf16.mxu0 0
      %702 = vmatpush2.bf16.msra.mxu0 0
      %703 = vmatprep.subr.bf16.mxu0 0
      %704 = vmatpush2.bf16.msra.mxu0 0
      %705 = vmatprep.mubr.bf16.mxu0 0
      %706 = vmatmul.mubr.bf16.gmra.mxu0 %v671
      %v707 = vpop.f32.mrf.mxu0
      %v708 = vadd.f32 %v655, %v707
      %v709 = vpop.f32.mrf.mxu0
      %v710 = vpop.f32.mrf.mxu0
      %v711 = vpop.f32.mrf.mxu0
      %712 = vdwg.mxu0
      %v713 = vlaneseq
      %v714 = vshrl.u32 %v713, 7
      %v715 = vlaneseq
      %v716 = vand.u32 %v715, 127
      %vm717 = vcmp.le.s32.totalorder %v716, %v714
      %v718 = vpack.c.bf16 %v708, %v708
      %720 = vrot.lane.b32.xlu0 %v718, 96
      %v721 = vpop.permute.xlu0 %720
      %vm722 = vcmask 64512
      %v724 = vsel %vm722, %v718, 0
      %v727 = vsel %vm722, %v721, 0
      %729 = vmatprep.subr.bf16.mxu0 0
      %730 = vmatpush1.bf16.xpose.msra.mxu0 0
      %731 = vmatprep.subr.bf16.mxu0 0
      %732 = vmatpush1.bf16.xpose.msra.mxu0 0
      %733 = vmatprep.subr.bf16.mxu0 0
      %734 = vmatpush1.bf16.xpose.msra.mxu0 0
      %735 = vmatprep.subr.bf16.mxu0 0
      %736 = vmatpush1.bf16.xpose.msra.mxu0 0
      %737 = vmatprep.subr.bf16.mxu0 0
      %738 = vmatpush1.bf16.xpose.msra.mxu0 0
      %739 = vmatprep.subr.bf16.mxu0 0
      %740 = vmatpush1.bf16.xpose.msra.mxu0 0
      %741 = vmatprep.subr.bf16.mxu0 0
      %742 = vmatpush1.bf16.xpose.msra.mxu0 0
      %743 = vmatprep.subr.bf16.mxu0 0
      %744 = vmatpush1.bf16.xpose.msra.mxu0 %v727
      %745 = vmatprep.subr.bf16.mxu0 0
      %746 = vmatpush2.bf16.xpose.msra.mxu0 0
      %747 = vmatprep.subr.bf16.mxu0 0
      %748 = vmatpush2.bf16.xpose.msra.mxu0 0
      %749 = vmatprep.subr.bf16.mxu0 0
      %750 = vmatpush2.bf16.xpose.msra.mxu0 0
      %751 = vmatprep.subr.bf16.mxu0 0
      %752 = vmatpush2.bf16.xpose.msra.mxu0 0
      %753 = vmatprep.subr.bf16.mxu0 0
      %754 = vmatpush2.bf16.xpose.msra.mxu0 0
      %755 = vmatprep.subr.bf16.mxu0 0
      %756 = vmatpush2.bf16.xpose.msra.mxu0 0
      %757 = vmatprep.subr.bf16.mxu0 0
      %758 = vmatpush2.bf16.xpose.msra.mxu0 0
      %759 = vmatprep.subr.bf16.mxu0 0
      %760 = vmatpush2.bf16.xpose.msra.mxu0 0
      %761 = vmatprep.mubr.bf16.mxu0 0
      %762 = vmatmul.mubr.bf16.gmra.mxu0 %v724
      %v763 = vpop.f32.mrf.mxu0
      %v764 = vadd.f32 0.0, %v763
      %v765 = vpop.f32.mrf.mxu0
      %v766 = vpop.f32.mrf.mxu0
      %v767 = vpop.f32.mrf.mxu0
      %768 = vdwg.mxu0
      %v769 = vsel %vm717, %v764, -1e+30
      %v770 = vsel %vm722, %v769, -inf
      %771 = vmax.xlane.f32.xlu0 %v770
      %v772 = vpop.xlane.xlu0 %771
      %v773 = vsub.f32 %v769, %v772
      %v774 = vmul.f32 %v773, 1.442695
      %v775 = vpow.pop %v774
      %v776 = vsel %vm722, %v775, 0.0
      %777 = vadd.xlane.f32.xlu0 %v776
      %v778 = vpop.xlane.xlu0 %777
      %v779 = vrcp.pop %v778
      %v780 = vmul.f32 %v775, %v779
      %v781 = vpack.c.bf16 %v780, %v780
      %782 = vrot.lane.b32.xlu0 %v718, 64
      %v783 = vpop.permute.xlu0 %782
      %v785 = vsel %vm722, %v781, 0
      %vm787 = vcmask 1043456
      %v789 = vsel %vm787, %v783, 0
      %791 = vmatprep.subr.bf16.mxu0 0
      %792 = vmatpush1.bf16.msra.mxu0 0
      %793 = vmatprep.subr.bf16.mxu0 0
      %794 = vmatpush1.bf16.msra.mxu0 0
      %795 = vmatprep.subr.bf16.mxu0 0
      %796 = vmatpush1.bf16.msra.mxu0 0
      %797 = vmatprep.subr.bf16.mxu0 0
      %798 = vmatpush1.bf16.msra.mxu0 0
      %799 = vmatprep.subr.bf16.mxu0 0
      %800 = vmatpush1.bf16.msra.mxu0 0
      %801 = vmatprep.subr.bf16.mxu0 0
      %802 = vmatpush1.bf16.msra.mxu0 0
      %803 = vmatprep.subr.bf16.mxu0 0
      %804 = vmatpush1.bf16.msra.mxu0 0
      %805 = vmatprep.subr.bf16.mxu0 0
      %806 = vmatpush1.bf16.msra.mxu0 %v789
      %807 = vmatprep.subr.bf16.mxu0 0
      %808 = vmatpush2.bf16.msra.mxu0 0
      %809 = vmatprep.subr.bf16.mxu0 0
      %810 = vmatpush2.bf16.msra.mxu0 0
      %811 = vmatprep.subr.bf16.mxu0 0
      %812 = vmatpush2.bf16.msra.mxu0 0
      %813 = vmatprep.subr.bf16.mxu0 0
      %814 = vmatpush2.bf16.msra.mxu0 0
      %815 = vmatprep.subr.bf16.mxu0 0
      %816 = vmatpush2.bf16.msra.mxu0 0
      %817 = vmatprep.subr.bf16.mxu0 0
      %818 = vmatpush2.bf16.msra.mxu0 0
      %819 = vmatprep.subr.bf16.mxu0 0
      %820 = vmatpush2.bf16.msra.mxu0 0
      %821 = vmatprep.subr.bf16.mxu0 0
      %822 = vmatpush2.bf16.msra.mxu0 0
      %823 = vmatprep.mubr.bf16.mxu0 0
      %824 = vmatmul.mubr.bf16.gmra.mxu0 %v785
      %v825 = vpop.f32.mrf.mxu0
      %v826 = vadd.f32 0.0, %v825
      %v827 = vpop.f32.mrf.mxu0
      %v828 = vpop.f32.mrf.mxu0
      %v829 = vpop.f32.mrf.mxu0
      %830 = vdwg.mxu0
      %831 = vrot.lane.b32.xlu0 %v718, 120
      %v832 = vpop.permute.xlu0 %831
      %833 = vrot.lane.b32.xlu0 %v718, 88
      %v834 = vpop.permute.xlu0 %833
      %v836 = vsel %vm722, %v832, 0
      %v839 = vsel %vm722, %v834, 0
      %841 = vmatprep.subr.bf16.mxu0 0
      %842 = vmatpush1.bf16.xpose.msra.mxu0 0
      %843 = vmatprep.subr.bf16.mxu0 0
      %844 = vmatpush1.bf16.xpose.msra.mxu0 0
      %845 = vmatprep.subr.bf16.mxu0 0
      %846 = vmatpush1.bf16.xpose.msra.mxu0 0
      %847 = vmatprep.subr.bf16.mxu0 0
      %848 = vmatpush1.bf16.xpose.msra.mxu0 0
      %849 = vmatprep.subr.bf16.mxu0 0
      %850 = vmatpush1.bf16.xpose.msra.mxu0 0
      %851 = vmatprep.subr.bf16.mxu0 0
      %852 = vmatpush1.bf16.xpose.msra.mxu0 0
      %853 = vmatprep.subr.bf16.mxu0 0
      %854 = vmatpush1.bf16.xpose.msra.mxu0 0
      %855 = vmatprep.subr.bf16.mxu0 0
      %856 = vmatpush1.bf16.xpose.msra.mxu0 %v839
      %857 = vmatprep.subr.bf16.mxu0 0
      %858 = vmatpush2.bf16.xpose.msra.mxu0 0
      %859 = vmatprep.subr.bf16.mxu0 0
      %860 = vmatpush2.bf16.xpose.msra.mxu0 0
      %861 = vmatprep.subr.bf16.mxu0 0
      %862 = vmatpush2.bf16.xpose.msra.mxu0 0
      %863 = vmatprep.subr.bf16.mxu0 0
      %864 = vmatpush2.bf16.xpose.msra.mxu0 0
      %865 = vmatprep.subr.bf16.mxu0 0
      %866 = vmatpush2.bf16.xpose.msra.mxu0 0
      %867 = vmatprep.subr.bf16.mxu0 0
      %868 = vmatpush2.bf16.xpose.msra.mxu0 0
      %869 = vmatprep.subr.bf16.mxu0 0
      %870 = vmatpush2.bf16.xpose.msra.mxu0 0
      %871 = vmatprep.subr.bf16.mxu0 0
      %872 = vmatpush2.bf16.xpose.msra.mxu0 0
      %873 = vmatprep.mubr.bf16.mxu0 0
      %874 = vmatmul.mubr.bf16.gmra.mxu0 %v836
      %v875 = vpop.f32.mrf.mxu0
      %v876 = vadd.f32 0.0, %v875
      %v877 = vpop.f32.mrf.mxu0
      %v878 = vpop.f32.mrf.mxu0
      %v879 = vpop.f32.mrf.mxu0
      %880 = vdwg.mxu0
      %v881 = vsel %vm717, %v876, -1e+30
      %v882 = vsel %vm722, %v881, -inf
      %883 = vmax.xlane.f32.xlu0 %v882
      %v884 = vpop.xlane.xlu0 %883
      %v885 = vsub.f32 %v881, %v884
      %v886 = vmul.f32 %v885, 1.442695
      %v887 = vpow.pop %v886
      %v888 = vsel %vm722, %v887, 0.0
      %889 = vadd.xlane.f32.xlu0 %v888
      %v890 = vpop.xlane.xlu0 %889
      %v891 = vrcp.pop %v890
      %v892 = vmul.f32 %v887, %v891
      %v893 = vpack.c.bf16 %v892, %v892
      %894 = vrot.lane.b32.xlu0 %v718, 56
      %v895 = vpop.permute.xlu0 %894
      %v897 = vsel %vm722, %v893, 0
      %v900 = vsel %vm787, %v895, 0
      %902 = vmatprep.subr.bf16.mxu0 0
      %903 = vmatpush1.bf16.msra.mxu0 0
      %904 = vmatprep.subr.bf16.mxu0 0
      %905 = vmatpush1.bf16.msra.mxu0 0
      %906 = vmatprep.subr.bf16.mxu0 0
      %907 = vmatpush1.bf16.msra.mxu0 0
      %908 = vmatprep.subr.bf16.mxu0 0
      %909 = vmatpush1.bf16.msra.mxu0 0
      %910 = vmatprep.subr.bf16.mxu0 0
      %911 = vmatpush1.bf16.msra.mxu0 0
      %912 = vmatprep.subr.bf16.mxu0 0
      %913 = vmatpush1.bf16.msra.mxu0 0
      %914 = vmatprep.subr.bf16.mxu0 0
      %915 = vmatpush1.bf16.msra.mxu0 0
      %916 = vmatprep.subr.bf16.mxu0 0
      %917 = vmatpush1.bf16.msra.mxu0 %v900
      %918 = vmatprep.subr.bf16.mxu0 0
      %919 = vmatpush2.bf16.msra.mxu0 0
      %920 = vmatprep.subr.bf16.mxu0 0
      %921 = vmatpush2.bf16.msra.mxu0 0
      %922 = vmatprep.subr.bf16.mxu0 0
      %923 = vmatpush2.bf16.msra.mxu0 0
      %924 = vmatprep.subr.bf16.mxu0 0
      %925 = vmatpush2.bf16.msra.mxu0 0
      %926 = vmatprep.subr.bf16.mxu0 0
      %927 = vmatpush2.bf16.msra.mxu0 0
      %928 = vmatprep.subr.bf16.mxu0 0
      %929 = vmatpush2.bf16.msra.mxu0 0
      %930 = vmatprep.subr.bf16.mxu0 0
      %931 = vmatpush2.bf16.msra.mxu0 0
      %932 = vmatprep.subr.bf16.mxu0 0
      %933 = vmatpush2.bf16.msra.mxu0 0
      %934 = vmatprep.mubr.bf16.mxu0 0
      %935 = vmatmul.mubr.bf16.gmra.mxu0 %v897
      %v936 = vpop.f32.mrf.mxu0
      %v937 = vadd.f32 0.0, %v936
      %v938 = vpop.f32.mrf.mxu0
      %v939 = vpop.f32.mrf.mxu0
      %v940 = vpop.f32.mrf.mxu0
      %941 = vdwg.mxu0
      %942 = vrot.lane.b32.xlu0 %v718, 112
      %v943 = vpop.permute.xlu0 %942
      %944 = vrot.lane.b32.xlu0 %v718, 80
      %v945 = vpop.permute.xlu0 %944
      %v947 = vsel %vm722, %v943, 0
      %v950 = vsel %vm722, %v945, 0
      %952 = vmatprep.subr.bf16.mxu0 0
      %953 = vmatpush1.bf16.xpose.msra.mxu0 0
      %954 = vmatprep.subr.bf16.mxu0 0
      %955 = vmatpush1.bf16.xpose.msra.mxu0 0
      %956 = vmatprep.subr.bf16.mxu0 0
      %957 = vmatpush1.bf16.xpose.msra.mxu0 0
      %958 = vmatprep.subr.bf16.mxu0 0
      %959 = vmatpush1.bf16.xpose.msra.mxu0 0
      %960 = vmatprep.subr.bf16.mxu0 0
      %961 = vmatpush1.bf16.xpose.msra.mxu0 0
      %962 = vmatprep.subr.bf16.mxu0 0
      %963 = vmatpush1.bf16.xpose.msra.mxu0 0
      %964 = vmatprep.subr.bf16.mxu0 0
      %965 = vmatpush1.bf16.xpose.msra.mxu0 0
      %966 = vmatprep.subr.bf16.mxu0 0
      %967 = vmatpush1.bf16.xpose.msra.mxu0 %v950
      %968 = vmatprep.subr.bf16.mxu0 0
      %969 = vmatpush2.bf16.xpose.msra.mxu0 0
      %970 = vmatprep.subr.bf16.mxu0 0
      %971 = vmatpush2.bf16.xpose.msra.mxu0 0
      %972 = vmatprep.subr.bf16.mxu0 0
      %973 = vmatpush2.bf16.xpose.msra.mxu0 0
      %974 = vmatprep.subr.bf16.mxu0 0
      %975 = vmatpush2.bf16.xpose.msra.mxu0 0
      %976 = vmatprep.subr.bf16.mxu0 0
      %977 = vmatpush2.bf16.xpose.msra.mxu0 0
      %978 = vmatprep.subr.bf16.mxu0 0
      %979 = vmatpush2.bf16.xpose.msra.mxu0 0
      %980 = vmatprep.subr.bf16.mxu0 0
      %981 = vmatpush2.bf16.xpose.msra.mxu0 0
      %982 = vmatprep.subr.bf16.mxu0 0
      %983 = vmatpush2.bf16.xpose.msra.mxu0 0
      %984 = vmatprep.mubr.bf16.mxu0 0
      %985 = vmatmul.mubr.bf16.gmra.mxu0 %v947
      %v986 = vpop.f32.mrf.mxu0
      %v987 = vadd.f32 0.0, %v986
      %v988 = vpop.f32.mrf.mxu0
      %v989 = vpop.f32.mrf.mxu0
      %v990 = vpop.f32.mrf.mxu0
      %991 = vdwg.mxu0
      %v992 = vsel %vm717, %v987, -1e+30
      %v993 = vsel %vm722, %v992, -inf
      %994 = vmax.xlane.f32.xlu0 %v993
      %v995 = vpop.xlane.xlu0 %994
      %v996 = vsub.f32 %v992, %v995
      %v997 = vmul.f32 %v996, 1.442695
      %v998 = vpow.pop %v997
      %v999 = vsel %vm722, %v998, 0.0
      %1000 = vadd.xlane.f32.xlu0 %v999
      %v1001 = vpop.xlane.xlu0 %1000
      %v1002 = vrcp.pop %v1001
      %v1003 = vmul.f32 %v998, %v1002
      %v1004 = vpack.c.bf16 %v1003, %v1003
      %1005 = vrot.lane.b32.xlu0 %v718, 48
      %v1006 = vpop.permute.xlu0 %1005
      %v1008 = vsel %vm722, %v1004, 0
      %v1011 = vsel %vm787, %v1006, 0
      %1013 = vmatprep.subr.bf16.mxu0 0
      %1014 = vmatpush1.bf16.msra.mxu0 0
      %1015 = vmatprep.subr.bf16.mxu0 0
      %1016 = vmatpush1.bf16.msra.mxu0 0
      %1017 = vmatprep.subr.bf16.mxu0 0
      %1018 = vmatpush1.bf16.msra.mxu0 0
      %1019 = vmatprep.subr.bf16.mxu0 0
      %1020 = vmatpush1.bf16.msra.mxu0 0
      %1021 = vmatprep.subr.bf16.mxu0 0
      %1022 = vmatpush1.bf16.msra.mxu0 0
      %1023 = vmatprep.subr.bf16.mxu0 0
      %1024 = vmatpush1.bf16.msra.mxu0 0
      %1025 = vmatprep.subr.bf16.mxu0 0
      %1026 = vmatpush1.bf16.msra.mxu0 0
      %1027 = vmatprep.subr.bf16.mxu0 0
      %1028 = vmatpush1.bf16.msra.mxu0 %v1011
      %1029 = vmatprep.subr.bf16.mxu0 0
      %1030 = vmatpush2.bf16.msra.mxu0 0
      %1031 = vmatprep.subr.bf16.mxu0 0
      %1032 = vmatpush2.bf16.msra.mxu0 0
      %1033 = vmatprep.subr.bf16.mxu0 0
      %1034 = vmatpush2.bf16.msra.mxu0 0
      %1035 = vmatprep.subr.bf16.mxu0 0
      %1036 = vmatpush2.bf16.msra.mxu0 0
      %1037 = vmatprep.subr.bf16.mxu0 0
      %1038 = vmatpush2.bf16.msra.mxu0 0
      %1039 = vmatprep.subr.bf16.mxu0 0
      %1040 = vmatpush2.bf16.msra.mxu0 0
      %1041 = vmatprep.subr.bf16.mxu0 0
      %1042 = vmatpush2.bf16.msra.mxu0 0
      %1043 = vmatprep.subr.bf16.mxu0 0
      %1044 = vmatpush2.bf16.msra.mxu0 0
      %1045 = vmatprep.mubr.bf16.mxu0 0
      %1046 = vmatmul.mubr.bf16.gmra.mxu0 %v1008
      %v1047 = vpop.f32.mrf.mxu0
      %v1048 = vadd.f32 0.0, %v1047
      %v1049 = vpop.f32.mrf.mxu0
      %v1050 = vpop.f32.mrf.mxu0
      %v1051 = vpop.f32.mrf.mxu0
      %1052 = vdwg.mxu0
      %1053 = vrot.lane.b32.xlu0 %v718, 104
      %v1054 = vpop.permute.xlu0 %1053
      %1055 = vrot.lane.b32.xlu0 %v718, 72
      %v1056 = vpop.permute.xlu0 %1055
      %v1058 = vsel %vm722, %v1054, 0
      %v1061 = vsel %vm722, %v1056, 0
      %1063 = vmatprep.subr.bf16.mxu0 0
      %1064 = vmatpush1.bf16.xpose.msra.mxu0 0
      %1065 = vmatprep.subr.bf16.mxu0 0
      %1066 = vmatpush1.bf16.xpose.msra.mxu0 0
      %1067 = vmatprep.subr.bf16.mxu0 0
      %1068 = vmatpush1.bf16.xpose.msra.mxu0 0
      %1069 = vmatprep.subr.bf16.mxu0 0
      %1070 = vmatpush1.bf16.xpose.msra.mxu0 0
      %1071 = vmatprep.subr.bf16.mxu0 0
      %1072 = vmatpush1.bf16.xpose.msra.mxu0 0
      %1073 = vmatprep.subr.bf16.mxu0 0
      %1074 = vmatpush1.bf16.xpose.msra.mxu0 0
      %1075 = vmatprep.subr.bf16.mxu0 0
      %1076 = vmatpush1.bf16.xpose.msra.mxu0 0
      %1077 = vmatprep.subr.bf16.mxu0 0
      %1078 = vmatpush1.bf16.xpose.msra.mxu0 %v1061
      %1079 = vmatprep.subr.bf16.mxu0 0
      %1080 = vmatpush2.bf16.xpose.msra.mxu0 0
      %1081 = vmatprep.subr.bf16.mxu0 0
      %1082 = vmatpush2.bf16.xpose.msra.mxu0 0
      %1083 = vmatprep.subr.bf16.mxu0 0
      %1084 = vmatpush2.bf16.xpose.msra.mxu0 0
      %1085 = vmatprep.subr.bf16.mxu0 0
      %1086 = vmatpush2.bf16.xpose.msra.mxu0 0
      %1087 = vmatprep.subr.bf16.mxu0 0
      %1088 = vmatpush2.bf16.xpose.msra.mxu0 0
      %1089 = vmatprep.subr.bf16.mxu0 0
      %1090 = vmatpush2.bf16.xpose.msra.mxu0 0
      %1091 = vmatprep.subr.bf16.mxu0 0
      %1092 = vmatpush2.bf16.xpose.msra.mxu0 0
      %1093 = vmatprep.subr.bf16.mxu0 0
      %1094 = vmatpush2.bf16.xpose.msra.mxu0 0
      %1095 = vmatprep.mubr.bf16.mxu0 0
      %1096 = vmatmul.mubr.bf16.gmra.mxu0 %v1058
      %v1097 = vpop.f32.mrf.mxu0
      %v1098 = vadd.f32 0.0, %v1097
      %v1099 = vpop.f32.mrf.mxu0
      %v1100 = vpop.f32.mrf.mxu0
      %v1101 = vpop.f32.mrf.mxu0
      %1102 = vdwg.mxu0
      %v1103 = vsel %vm717, %v1098, -1e+30
      %v1104 = vsel %vm722, %v1103, -inf
      %1105 = vmax.xlane.f32.xlu0 %v1104
      %v1106 = vpop.xlane.xlu0 %1105
      %v1107 = vsub.f32 %v1103, %v1106
      %v1108 = vmul.f32 %v1107, 1.442695
      %v1109 = vpow.pop %v1108
      %v1110 = vsel %vm722, %v1109, 0.0
      %1111 = vadd.xlane.f32.xlu0 %v1110
      %v1112 = vpop.xlane.xlu0 %1111
      %v1113 = vrcp.pop %v1112
      %v1114 = vmul.f32 %v1109, %v1113
      %v1115 = vpack.c.bf16 %v1114, %v1114
      %1116 = vrot.lane.b32.xlu0 %v718, 40
      %v1117 = vpop.permute.xlu0 %1116
      %v1119 = vsel %vm722, %v1115, 0
      %v1122 = vsel %vm787, %v1117, 0
      %1124 = vmatprep.subr.bf16.mxu0 0
      %1125 = vmatpush1.bf16.msra.mxu0 0
      %1126 = vmatprep.subr.bf16.mxu0 0
      %1127 = vmatpush1.bf16.msra.mxu0 0
      %1128 = vmatprep.subr.bf16.mxu0 0
      %1129 = vmatpush1.bf16.msra.mxu0 0
      %1130 = vmatprep.subr.bf16.mxu0 0
      %1131 = vmatpush1.bf16.msra.mxu0 0
      %1132 = vmatprep.subr.bf16.mxu0 0
      %1133 = vmatpush1.bf16.msra.mxu0 0
      %1134 = vmatprep.subr.bf16.mxu0 0
      %1135 = vmatpush1.bf16.msra.mxu0 0
      %1136 = vmatprep.subr.bf16.mxu0 0
      %1137 = vmatpush1.bf16.msra.mxu0 0
      %1138 = vmatprep.subr.bf16.mxu0 0
      %1139 = vmatpush1.bf16.msra.mxu0 %v1122
      %1140 = vmatprep.subr.bf16.mxu0 0
      %1141 = vmatpush2.bf16.msra.mxu0 0
      %1142 = vmatprep.subr.bf16.mxu0 0
      %1143 = vmatpush2.bf16.msra.mxu0 0
      %1144 = vmatprep.subr.bf16.mxu0 0
      %1145 = vmatpush2.bf16.msra.mxu0 0
      %1146 = vmatprep.subr.bf16.mxu0 0
      %1147 = vmatpush2.bf16.msra.mxu0 0
      %1148 = vmatprep.subr.bf16.mxu0 0
      %1149 = vmatpush2.bf16.msra.mxu0 0
      %1150 = vmatprep.subr.bf16.mxu0 0
      %1151 = vmatpush2.bf16.msra.mxu0 0
      %1152 = vmatprep.subr.bf16.mxu0 0
      %1153 = vmatpush2.bf16.msra.mxu0 0
      %1154 = vmatprep.subr.bf16.mxu0 0
      %1155 = vmatpush2.bf16.msra.mxu0 0
      %1156 = vmatprep.mubr.bf16.mxu0 0
      %1157 = vmatmul.mubr.bf16.gmra.mxu0 %v1119
      %v1158 = vpop.f32.mrf.mxu0
      %v1159 = vadd.f32 0.0, %v1158
      %v1160 = vpop.f32.mrf.mxu0
      %v1161 = vpop.f32.mrf.mxu0
      %v1162 = vpop.f32.mrf.mxu0
      %1163 = vdwg.mxu0
      %1165 = vrot.lane.b32.xlu0 %v937, 8
      %v1166 = vpop.permute.xlu0 %1165
      %1169 = vrot.lane.b32.xlu0 %v1048, 16
      %v1170 = vpop.permute.xlu0 %1169
      %1173 = vrot.lane.b32.xlu0 %v1159, 24
      %v1174 = vpop.permute.xlu0 %1173
      %v1176 = vsel %vm722, %v826, %v1166
      %vm1177 = vcmask 130048
      %v1178 = vsel %vm1177, %v1176, %v1170
      %vm1179 = vcmask 195584
      %v1180 = vsel %vm1179, %v1178, %v1174
      %v1181 = vpack.c.bf16 %v1180, %v1180
      %v1182 = vld [vmem:[%s4] sm:$0xf]
      %v1183 = vld [vmem:[%s4 + $0x4] sm:$0xf]
      %v1184 = vld [vmem:[%s4 + $0x8] sm:$0xf]
      %v1185 = vld [vmem:[%s4 + $0xc] sm:$0xf]
      %v1186 = vld [vmem:[%s5] sm:$0x1]
      %v1188 = vlaneseq
      %v1189 = vshrl.u32 %v1188, 7
      %v1190 = vsub.s32 0, %v1189
      %v1191 = vrot.slane %v1186, %v1190
      %v1197 = vunpack.c.l.b16 %v1182
      %v1198 = vunpack.c.l.b16 %v1183
      %v1199 = vunpack.c.l.b16 %v1184
      %v1200 = vunpack.c.l.b16 %v1185
      %v1201 = vpack.c.b16 %v1198, %v1197
      %v1202 = vpack.c.b16 %v1200, %v1199
      %v1206 = vsel %vm669, %v1181, 0
      %1208 = vmatprep.subr.bf16.mxu0 0
      %1209 = vmatpush1.bf16.msra.mxu0 0
      %1210 = vmatprep.subr.bf16.mxu0 0
      %1211 = vmatpush1.bf16.msra.mxu0 0
      %1212 = vmatprep.subr.bf16.mxu0 0
      %1213 = vmatpush1.bf16.msra.mxu0 0
      %1214 = vmatprep.subr.bf16.mxu0 0
      %1215 = vmatpush1.bf16.msra.mxu0 0
      %1216 = vmatprep.subr.bf16.mxu0 0
      %1217 = vmatpush1.bf16.msra.mxu0 0
      %1218 = vmatprep.subr.bf16.mxu0 0
      %1219 = vmatpush1.bf16.msra.mxu0 0
      %1220 = vmatprep.subr.bf16.mxu0 0
      %1221 = vmatpush1.bf16.msra.mxu0 %v1202
      %1222 = vmatprep.subr.bf16.mxu0 0
      %1223 = vmatpush1.bf16.msra.mxu0 %v1201
      %1224 = vmatprep.subr.bf16.mxu0 0
      %1225 = vmatpush2.bf16.msra.mxu0 0
      %1226 = vmatprep.subr.bf16.mxu0 0
      %1227 = vmatpush2.bf16.msra.mxu0 0
      %1228 = vmatprep.subr.bf16.mxu0 0
      %1229 = vmatpush2.bf16.msra.mxu0 0
      %1230 = vmatprep.subr.bf16.mxu0 0
      %1231 = vmatpush2.bf16.msra.mxu0 0
      %1232 = vmatprep.subr.bf16.mxu0 0
      %1233 = vmatpush2.bf16.msra.mxu0 0
      %1234 = vmatprep.subr.bf16.mxu0 0
      %1235 = vmatpush2.bf16.msra.mxu0 0
      %1236 = vmatprep.subr.bf16.mxu0 0
      %1237 = vmatpush2.bf16.msra.mxu0 0
      %1238 = vmatprep.subr.bf16.mxu0 0
      %1239 = vmatpush2.bf16.msra.mxu0 0
      %1240 = vmatprep.mubr.bf16.mxu0 0
      %1241 = vmatmul.mubr.bf16.gmra.mxu0 %v1206
      %v1242 = vpop.f32.mrf.mxu0
      %v1243 = vadd.f32 %v1191, %v1242
      %v1244 = vpop.f32.mrf.mxu0
      %v1245 = vpop.f32.mrf.mxu0
      %v1246 = vpop.f32.mrf.mxu0
      %1247 = vdwg.mxu0
      %v1248 = vadd.f32 %v643, %v1243
      %v1249 = vld [vmem:[%s6] sm:$0x1]
      %v1250 = vld [vmem:[%s7] sm:$0x1]
      %v1251 = vsel %vm669, %v1248, 0.0
      %1252 = vadd.xlane.f32.xlu0 %v1251
      %v1253 = vpop.xlane.xlu0 %1252
      %v1254 = vrcp.pop 32.0
      %v1255 = vmul.f32 %v1253, %v1254
      %v1256 = vsub.f32 %v1248, %v1255
      %v1257 = vmul.f32 %v1256, %v1256
      %v1258 = vsel %vm669, %v1257, 0.0
      %1259 = vadd.xlane.f32.xlu0 %v1258
      %v1260 = vpop.xlane.xlu0 %1259
      %v1261 = vmul.f32 %v1260, %v1254
      %v1262 = vadd.f32 %v1261, 1e-05
      %v1263 = vrsqrt.pop %v1262
      %v1264 = vmul.f32 %v1256, %v1263
      %v1266 = vlaneseq
      %v1267 = vshrl.u32 %v1266, 7
      %v1268 = vsub.s32 0, %v1267
      %v1269 = vrot.slane %v1249, %v1268
      %v1271 = vmul.f32 %v1264, %v1269
      %v1273 = vlaneseq
      %v1274 = vshrl.u32 %v1273, 7
      %v1275 = vsub.s32 0, %v1274
      %v1276 = vrot.slane %v1250, %v1275
      %v1278 = vadd.f32 %v1271, %v1276
      %v1279 = vpack.c.bf16 %v1278, %v1278
      %v1280 = vld [vmem:[%s8] sm:$0xf]
      %v1281 = vld [vmem:[%s8 + $0x4] sm:$0xf]
      %v1282 = vld [vmem:[%s8 + $0x8] sm:$0xf]
      %v1283 = vld [vmem:[%s8 + $0xc] sm:$0xf]
      %v1284 = vld [vmem:[%s9] sm:$0x1]
      %v1286 = vlaneseq
      %v1287 = vshrl.u32 %v1286, 7
      %v1288 = vsub.s32 0, %v1287
      %v1289 = vrot.slane %v1284, %v1288
      %v1295 = vunpack.c.l.b16 %v1280
      %v1296 = vunpack.c.l.b16 %v1281
      %v1297 = vunpack.c.l.b16 %v1282
      %v1298 = vunpack.c.l.b16 %v1283
      %v1299 = vpack.c.b16 %v1296, %v1295
      %v1300 = vpack.c.b16 %v1298, %v1297
      %v1304 = vsel %vm669, %v1279, 0
      %1306 = vmatprep.subr.bf16.mxu0 0
      %1307 = vmatpush1.bf16.msra.mxu0 0
      %1308 = vmatprep.subr.bf16.mxu0 0
      %1309 = vmatpush1.bf16.msra.mxu0 0
      %1310 = vmatprep.subr.bf16.mxu0 0
      %1311 = vmatpush1.bf16.msra.mxu0 0
      %1312 = vmatprep.subr.bf16.mxu0 0
      %1313 = vmatpush1.bf16.msra.mxu0 0
      %1314 = vmatprep.subr.bf16.mxu0 0
      %1315 = vmatpush1.bf16.msra.mxu0 0
      %1316 = vmatprep.subr.bf16.mxu0 0
      %1317 = vmatpush1.bf16.msra.mxu0 0
      %1318 = vmatprep.subr.bf16.mxu0 0
      %1319 = vmatpush1.bf16.msra.mxu0 %v1300
      %1320 = vmatprep.subr.bf16.mxu0 0
      %1321 = vmatpush1.bf16.msra.mxu0 %v1299
      %1322 = vmatprep.subr.bf16.mxu0 0
      %1323 = vmatpush2.bf16.msra.mxu0 0
      %1324 = vmatprep.subr.bf16.mxu0 0
      %1325 = vmatpush2.bf16.msra.mxu0 0
      %1326 = vmatprep.subr.bf16.mxu0 0
      %1327 = vmatpush2.bf16.msra.mxu0 0
      %1328 = vmatprep.subr.bf16.mxu0 0
      %1329 = vmatpush2.bf16.msra.mxu0 0
      %1330 = vmatprep.subr.bf16.mxu0 0
      %1331 = vmatpush2.bf16.msra.mxu0 0
      %1332 = vmatprep.subr.bf16.mxu0 0
      %1333 = vmatpush2.bf16.msra.mxu0 0
      %1334 = vmatprep.subr.bf16.mxu0 0
      %1335 = vmatpush2.bf16.msra.mxu0 0
      %1336 = vmatprep.subr.bf16.mxu0 0
      %1337 = vmatpush2.bf16.msra.mxu0 0
      %1338 = vmatprep.mubr.bf16.mxu0 0
      %1339 = vmatmul.mubr.bf16.gmra.mxu0 %v1304
      %v1340 = vpop.f32.mrf.mxu0
      %v1341 = vadd.f32 %v1289, %v1340
      %v1342 = vpop.f32.mrf.mxu0
      %v1343 = vpop.f32.mrf.mxu0
      %v1344 = vpop.f32.mrf.mxu0
      %1345 = vdwg.mxu0
      %v1346 = vpack.c.bf16 %v644, %v644
      %1347 = vrot.lane.b32.xlu0 %v1299, 96
      %v1348 = vpop.permute.xlu0 %1347
      %1349 = vrot.lane.b32.xlu0 %v1300, 96
      %v1350 = vpop.permute.xlu0 %1349
      %1353 = vrot.lane.b32.xlu0 %v1289, 96
      %v1354 = vpop.permute.xlu0 %1353
      %v1357 = vsel %vm669, %v1346, 0
      %1359 = vmatprep.subr.bf16.mxu0 0
      %1360 = vmatpush1.bf16.msra.mxu0 0
      %1361 = vmatprep.subr.bf16.mxu0 0
      %1362 = vmatpush1.bf16.msra.mxu0 0
      %1363 = vmatprep.subr.bf16.mxu0 0
      %1364 = vmatpush1.bf16.msra.mxu0 0
      %1365 = vmatprep.subr.bf16.mxu0 0
      %1366 = vmatpush1.bf16.msra.mxu0 0
      %1367 = vmatprep.subr.bf16.mxu0 0
      %1368 = vmatpush1.bf16.msra.mxu0 0
      %1369 = vmatprep.subr.bf16.mxu0 0
      %1370 = vmatpush1.bf16.msra.mxu0 0
      %1371 = vmatprep.subr.bf16.mxu0 0
      %1372 = vmatpush1.bf16.msra.mxu0 %v1350
      %1373 = vmatprep.subr.bf16.mxu0 0
      %1374 = vmatpush1.bf16.msra.mxu0 %v1348
      %1375 = vmatprep.subr.bf16.mxu0 0
      %1376 = vmatpush2.bf16.msra.mxu0 0
      %1377 = vmatprep.subr.bf16.mxu0 0
      %1378 = vmatpush2.bf16.msra.mxu0 0
      %1379 = vmatprep.subr.bf16.mxu0 0
      %1380 = vmatpush2.bf16.msra.mxu0 0
      %1381 = vmatprep.subr.bf16.mxu0 0
      %1382 = vmatpush2.bf16.msra.mxu0 0
      %1383 = vmatprep.subr.bf16.mxu0 0
      %1384 = vmatpush2.bf16.msra.mxu0 0
      %1385 = vmatprep.subr.bf16.mxu0 0
      %1386 = vmatpush2.bf16.msra.mxu0 0
      %1387 = vmatprep.subr.bf16.mxu0 0
      %1388 = vmatpush2.bf16.msra.mxu0 0
      %1389 = vmatprep.subr.bf16.mxu0 0
      %1390 = vmatpush2.bf16.msra.mxu0 0
      %1391 = vmatprep.mubr.bf16.mxu0 0
      %1392 = vmatmul.mubr.bf16.gmra.mxu0 %v1357
      %v1393 = vpop.f32.mrf.mxu0
      %v1394 = vadd.f32 %v1354, %v1393
      %v1395 = vpop.f32.mrf.mxu0
      %v1396 = vpop.f32.mrf.mxu0
      %v1397 = vpop.f32.mrf.mxu0
      %1398 = vdwg.mxu0
      %v1399 = vpack.c.bf16 %v1341, %v1341
      %v1400 = vpack.c.bf16 %v1394, %v1394
      %v1402 = vsel %vm722, %v1399, 0
      %v1405 = vsel %vm722, %v1400, 0
      %1407 = vmatprep.subr.bf16.mxu0 0
      %1408 = vmatpush1.bf16.xpose.msra.mxu0 0
      %1409 = vmatprep.subr.bf16.mxu0 0
      %1410 = vmatpush1.bf16.xpose.msra.mxu0 0
      %1411 = vmatprep.subr.bf16.mxu0 0
      %1412 = vmatpush1.bf16.xpose.msra.mxu0 0
      %1413 = vmatprep.subr.bf16.mxu0 0
      %1414 = vmatpush1.bf16.xpose.msra.mxu0 0
      %1415 = vmatprep.subr.bf16.mxu0 0
      %1416 = vmatpush1.bf16.xpose.msra.mxu0 0
      %1417 = vmatprep.subr.bf16.mxu0 0
      %1418 = vmatpush1.bf16.xpose.msra.mxu0 0
      %1419 = vmatprep.subr.bf16.mxu0 0
      %1420 = vmatpush1.bf16.xpose.msra.mxu0 0
      %1421 = vmatprep.subr.bf16.mxu0 0
      %1422 = vmatpush1.bf16.xpose.msra.mxu0 %v1405
      %1423 = vmatprep.subr.bf16.mxu0 0
      %1424 = vmatpush2.bf16.xpose.msra.mxu0 0
      %1425 = vmatprep.subr.bf16.mxu0 0
      %1426 = vmatpush2.bf16.xpose.msra.mxu0 0
      %1427 = vmatprep.subr.bf16.mxu0 0
      %1428 = vmatpush2.bf16.xpose.msra.mxu0 0
      %1429 = vmatprep.subr.bf16.mxu0 0
      %1430 = vmatpush2.bf16.xpose.msra.mxu0 0
      %1431 = vmatprep.subr.bf16.mxu0 0
      %1432 = vmatpush2.bf16.xpose.msra.mxu0 0
      %1433 = vmatprep.subr.bf16.mxu0 0
      %1434 = vmatpush2.bf16.xpose.msra.mxu0 0
      %1435 = vmatprep.subr.bf16.mxu0 0
      %1436 = vmatpush2.bf16.xpose.msra.mxu0 0
      %1437 = vmatprep.subr.bf16.mxu0 0
      %1438 = vmatpush2.bf16.xpose.msra.mxu0 0
      %1439 = vmatprep.mubr.bf16.mxu0 0
      %1440 = vmatmul.mubr.bf16.gmra.mxu0 %v1402
      %v1441 = vpop.f32.mrf.mxu0
      %v1442 = vadd.f32 0.0, %v1441
      %v1443 = vpop.f32.mrf.mxu0
      %v1444 = vpop.f32.mrf.mxu0
      %v1445 = vpop.f32.mrf.mxu0
      %1446 = vdwg.mxu0
      %v1447 = vsel %vm722, %v1442, -inf
      %1448 = vmax.xlane.f32.xlu0 %v1447
      %v1449 = vpop.xlane.xlu0 %1448
      %v1450 = vsub.f32 %v1442, %v1449
      %v1451 = vmul.f32 %v1450, 1.442695
      %v1452 = vpow.pop %v1451
      %v1453 = vsel %vm722, %v1452, 0.0
      %1454 = vadd.xlane.f32.xlu0 %v1453
      %v1455 = vpop.xlane.xlu0 %1454
      %v1456 = vrcp.pop %v1455
      %v1457 = vmul.f32 %v1452, %v1456
      %v1458 = vpack.c.bf16 %v1457, %v1457
      %1460 = vrot.lane.b32.xlu0 %v1400, 96
      %v1461 = vpop.permute.xlu0 %1460
      %v1463 = vsel %vm722, %v1458, 0
      %v1466 = vsel %vm787, %v1461, 0
      %1468 = vmatprep.subr.bf16.mxu0 0
      %1469 = vmatpush1.bf16.msra.mxu0 0
      %1470 = vmatprep.subr.bf16.mxu0 0
      %1471 = vmatpush1.bf16.msra.mxu0 0
      %1472 = vmatprep.subr.bf16.mxu0 0
      %1473 = vmatpush1.bf16.msra.mxu0 0
      %1474 = vmatprep.subr.bf16.mxu0 0
      %1475 = vmatpush1.bf16.msra.mxu0 0
      %1476 = vmatprep.subr.bf16.mxu0 0
      %1477 = vmatpush1.bf16.msra.mxu0 0
      %1478 = vmatprep.subr.bf16.mxu0 0
      %1479 = vmatpush1.bf16.msra.mxu0 0
      %1480 = vmatprep.subr.bf16.mxu0 0
      %1481 = vmatpush1.bf16.msra.mxu0 0
      %1482 = vmatprep.subr.bf16.mxu0 0
      %1483 = vmatpush1.bf16.msra.mxu0 %v1466
      %1484 = vmatprep.subr.bf16.mxu0 0
      %1485 = vmatpush2.bf16.msra.mxu0 0
      %1486 = vmatprep.subr.bf16.mxu0 0
      %1487 = vmatpush2.bf16.msra.mxu0 0
      %1488 = vmatprep.subr.bf16.mxu0 0
      %1489 = vmatpush2.bf16.msra.mxu0 0
      %1490 = vmatprep.subr.bf16.mxu0 0
      %1491 = vmatpush2.bf16.msra.mxu0 0
      %1492 = vmatprep.subr.bf16.mxu0 0
      %1493 = vmatpush2.bf16.msra.mxu0 0
      %1494 = vmatprep.subr.bf16.mxu0 0
      %1495 = vmatpush2.bf16.msra.mxu0 0
      %1496 = vmatprep.subr.bf16.mxu0 0
      %1497 = vmatpush2.bf16.msra.mxu0 0
      %1498 = vmatprep.subr.bf16.mxu0 0
      %1499 = vmatpush2.bf16.msra.mxu0 0
      %1500 = vmatprep.mubr.bf16.mxu0 0
      %1501 = vmatmul.mubr.bf16.gmra.mxu0 %v1463
      %v1502 = vpop.f32.mrf.mxu0
      %v1503 = vadd.f32 0.0, %v1502
      %v1504 = vpop.f32.mrf.mxu0
      %v1505 = vpop.f32.mrf.mxu0
      %v1506 = vpop.f32.mrf.mxu0
      %1507 = vdwg.mxu0
      %1509 = vrot.lane.b32.xlu0 %v1399, 120
      %v1510 = vpop.permute.xlu0 %1509
      %1511 = vrot.lane.b32.xlu0 %v1400, 120
      %v1512 = vpop.permute.xlu0 %1511
      %v1514 = vsel %vm722, %v1510, 0
      %v1517 = vsel %vm722, %v1512, 0
      %1519 = vmatprep.subr.bf16.mxu0 0
      %1520 = vmatpush1.bf16.xpose.msra.mxu0 0
      %1521 = vmatprep.subr.bf16.mxu0 0
      %1522 = vmatpush1.bf16.xpose.msra.mxu0 0
      %1523 = vmatprep.subr.bf16.mxu0 0
      %1524 = vmatpush1.bf16.xpose.msra.mxu0 0
      %1525 = vmatprep.subr.bf16.mxu0 0
      %1526 = vmatpush1.bf16.xpose.msra.mxu0 0
      %1527 = vmatprep.subr.bf16.mxu0 0
      %1528 = vmatpush1.bf16.xpose.msra.mxu0 0
      %1529 = vmatprep.subr.bf16.mxu0 0
      %1530 = vmatpush1.bf16.xpose.msra.mxu0 0
      %1531 = vmatprep.subr.bf16.mxu0 0
      %1532 = vmatpush1.bf16.xpose.msra.mxu0 0
      %1533 = vmatprep.subr.bf16.mxu0 0
      %1534 = vmatpush1.bf16.xpose.msra.mxu0 %v1517
      %1535 = vmatprep.subr.bf16.mxu0 0
      %1536 = vmatpush2.bf16.xpose.msra.mxu0 0
      %1537 = vmatprep.subr.bf16.mxu0 0
      %1538 = vmatpush2.bf16.xpose.msra.mxu0 0
      %1539 = vmatprep.subr.bf16.mxu0 0
      %1540 = vmatpush2.bf16.xpose.msra.mxu0 0
      %1541 = vmatprep.subr.bf16.mxu0 0
      %1542 = vmatpush2.bf16.xpose.msra.mxu0 0
      %1543 = vmatprep.subr.bf16.mxu0 0
      %1544 = vmatpush2.bf16.xpose.msra.mxu0 0
      %1545 = vmatprep.subr.bf16.mxu0 0
      %1546 = vmatpush2.bf16.xpose.msra.mxu0 0
      %1547 = vmatprep.subr.bf16.mxu0 0
      %1548 = vmatpush2.bf16.xpose.msra.mxu0 0
      %1549 = vmatprep.subr.bf16.mxu0 0
      %1550 = vmatpush2.bf16.xpose.msra.mxu0 0
      %1551 = vmatprep.mubr.bf16.mxu0 0
      %1552 = vmatmul.mubr.bf16.gmra.mxu0 %v1514
      %v1553 = vpop.f32.mrf.mxu0
      %v1554 = vadd.f32 0.0, %v1553
      %v1555 = vpop.f32.mrf.mxu0
      %v1556 = vpop.f32.mrf.mxu0
      %v1557 = vpop.f32.mrf.mxu0
      %1558 = vdwg.mxu0
      %v1559 = vsel %vm722, %v1554, -inf
      %1560 = vmax.xlane.f32.xlu0 %v1559
      %v1561 = vpop.xlane.xlu0 %1560
      %v1562 = vsub.f32 %v1554, %v1561
      %v1563 = vmul.f32 %v1562, 1.442695
      %v1564 = vpow.pop %v1563
      %v1565 = vsel %vm722, %v1564, 0.0
      %1566 = vadd.xlane.f32.xlu0 %v1565
      %v1567 = vpop.xlane.xlu0 %1566
      %v1568 = vrcp.pop %v1567
      %v1569 = vmul.f32 %v1564, %v1568
      %v1570 = vpack.c.bf16 %v1569, %v1569
      %1571 = vrot.lane.b32.xlu0 %v1400, 88
      %v1572 = vpop.permute.xlu0 %1571
      %v1574 = vsel %vm722, %v1570, 0
      %v1577 = vsel %vm787, %v1572, 0
      %1579 = vmatprep.subr.bf16.mxu0 0
      %1580 = vmatpush1.bf16.msra.mxu0 0
      %1581 = vmatprep.subr.bf16.mxu0 0
      %1582 = vmatpush1.bf16.msra.mxu0 0
      %1583 = vmatprep.subr.bf16.mxu0 0
      %1584 = vmatpush1.bf16.msra.mxu0 0
      %1585 = vmatprep.subr.bf16.mxu0 0
      %1586 = vmatpush1.bf16.msra.mxu0 0
      %1587 = vmatprep.subr.bf16.mxu0 0
      %1588 = vmatpush1.bf16.msra.mxu0 0
      %1589 = vmatprep.subr.bf16.mxu0 0
      %1590 = vmatpush1.bf16.msra.mxu0 0
      %1591 = vmatprep.subr.bf16.mxu0 0
      %1592 = vmatpush1.bf16.msra.mxu0 0
      %1593 = vmatprep.subr.bf16.mxu0 0
      %1594 = vmatpush1.bf16.msra.mxu0 %v1577
      %1595 = vmatprep.subr.bf16.mxu0 0
      %1596 = vmatpush2.bf16.msra.mxu0 0
      %1597 = vmatprep.subr.bf16.mxu0 0
      %1598 = vmatpush2.bf16.msra.mxu0 0
      %1599 = vmatprep.subr.bf16.mxu0 0
      %1600 = vmatpush2.bf16.msra.mxu0 0
      %1601 = vmatprep.subr.bf16.mxu0 0
      %1602 = vmatpush2.bf16.msra.mxu0 0
      %1603 = vmatprep.subr.bf16.mxu0 0
      %1604 = vmatpush2.bf16.msra.mxu0 0
      %1605 = vmatprep.subr.bf16.mxu0 0
      %1606 = vmatpush2.bf16.msra.mxu0 0
      %1607 = vmatprep.subr.bf16.mxu0 0
      %1608 = vmatpush2.bf16.msra.mxu0 0
      %1609 = vmatprep.subr.bf16.mxu0 0
      %1610 = vmatpush2.bf16.msra.mxu0 0
      %1611 = vmatprep.mubr.bf16.mxu0 0
      %1612 = vmatmul.mubr.bf16.gmra.mxu0 %v1574
      %v1613 = vpop.f32.mrf.mxu0
      %v1614 = vadd.f32 0.0, %v1613
      %v1615 = vpop.f32.mrf.mxu0
      %v1616 = vpop.f32.mrf.mxu0
      %v1617 = vpop.f32.mrf.mxu0
      %1618 = vdwg.mxu0
      %1619 = vrot.lane.b32.xlu0 %v1399, 112
      %v1620 = vpop.permute.xlu0 %1619
      %1621 = vrot.lane.b32.xlu0 %v1400, 112
      %v1622 = vpop.permute.xlu0 %1621
      %v1624 = vsel %vm722, %v1620, 0
      %v1627 = vsel %vm722, %v1622, 0
      %1629 = vmatprep.subr.bf16.mxu0 0
      %1630 = vmatpush1.bf16.xpose.msra.mxu0 0
      %1631 = vmatprep.subr.bf16.mxu0 0
      %1632 = vmatpush1.bf16.xpose.msra.mxu0 0
      %1633 = vmatprep.subr.bf16.mxu0 0
      %1634 = vmatpush1.bf16.xpose.msra.mxu0 0
      %1635 = vmatprep.subr.bf16.mxu0 0
      %1636 = vmatpush1.bf16.xpose.msra.mxu0 0
      %1637 = vmatprep.subr.bf16.mxu0 0
      %1638 = vmatpush1.bf16.xpose.msra.mxu0 0
      %1639 = vmatprep.subr.bf16.mxu0 0
      %1640 = vmatpush1.bf16.xpose.msra.mxu0 0
      %1641 = vmatprep.subr.bf16.mxu0 0
      %1642 = vmatpush1.bf16.xpose.msra.mxu0 0
      %1643 = vmatprep.subr.bf16.mxu0 0
      %1644 = vmatpush1.bf16.xpose.msra.mxu0 %v1627
      %1645 = vmatprep.subr.bf16.mxu0 0
      %1646 = vmatpush2.bf16.xpose.msra.mxu0 0
      %1647 = vmatprep.subr.bf16.mxu0 0
      %1648 = vmatpush2.bf16.xpose.msra.mxu0 0
      %1649 = vmatprep.subr.bf16.mxu0 0
      %1650 = vmatpush2.bf16.xpose.msra.mxu0 0
      %1651 = vmatprep.subr.bf16.mxu0 0
      %1652 = vmatpush2.bf16.xpose.msra.mxu0 0
      %1653 = vmatprep.subr.bf16.mxu0 0
      %1654 = vmatpush2.bf16.xpose.msra.mxu0 0
      %1655 = vmatprep.subr.bf16.mxu0 0
      %1656 = vmatpush2.bf16.xpose.msra.mxu0 0
      %1657 = vmatprep.subr.bf16.mxu0 0
      %1658 = vmatpush2.bf16.xpose.msra.mxu0 0
      %1659 = vmatprep.subr.bf16.mxu0 0
      %1660 = vmatpush2.bf16.xpose.msra.mxu0 0
      %1661 = vmatprep.mubr.bf16.mxu0 0
      %1662 = vmatmul.mubr.bf16.gmra.mxu0 %v1624
      %v1663 = vpop.f32.mrf.mxu0
      %v1664 = vadd.f32 0.0, %v1663
      %v1665 = vpop.f32.mrf.mxu0
      %v1666 = vpop.f32.mrf.mxu0
      %v1667 = vpop.f32.mrf.mxu0
      %1668 = vdwg.mxu0
      %v1669 = vsel %vm722, %v1664, -inf
      %1670 = vmax.xlane.f32.xlu0 %v1669
      %v1671 = vpop.xlane.xlu0 %1670
      %v1672 = vsub.f32 %v1664, %v1671
      %v1673 = vmul.f32 %v1672, 1.442695
      %v1674 = vpow.pop %v1673
      %v1675 = vsel %vm722, %v1674, 0.0
      %1676 = vadd.xlane.f32.xlu0 %v1675
      %v1677 = vpop.xlane.xlu0 %1676
      %v1678 = vrcp.pop %v1677
      %v1679 = vmul.f32 %v1674, %v1678
      %v1680 = vpack.c.bf16 %v1679, %v1679
      %1681 = vrot.lane.b32.xlu0 %v1400, 80
      %v1682 = vpop.permute.xlu0 %1681
      %v1684 = vsel %vm722, %v1680, 0
      %v1687 = vsel %vm787, %v1682, 0
      %1689 = vmatprep.subr.bf16.mxu0 0
      %1690 = vmatpush1.bf16.msra.mxu0 0
      %1691 = vmatprep.subr.bf16.mxu0 0
      %1692 = vmatpush1.bf16.msra.mxu0 0
      %1693 = vmatprep.subr.bf16.mxu0 0
      %1694 = vmatpush1.bf16.msra.mxu0 0
      %1695 = vmatprep.subr.bf16.mxu0 0
      %1696 = vmatpush1.bf16.msra.mxu0 0
      %1697 = vmatprep.subr.bf16.mxu0 0
      %1698 = vmatpush1.bf16.msra.mxu0 0
      %1699 = vmatprep.subr.bf16.mxu0 0
      %1700 = vmatpush1.bf16.msra.mxu0 0
      %1701 = vmatprep.subr.bf16.mxu0 0
      %1702 = vmatpush1.bf16.msra.mxu0 0
      %1703 = vmatprep.subr.bf16.mxu0 0
      %1704 = vmatpush1.bf16.msra.mxu0 %v1687
      %1705 = vmatprep.subr.bf16.mxu0 0
      %1706 = vmatpush2.bf16.msra.mxu0 0
      %1707 = vmatprep.subr.bf16.mxu0 0
      %1708 = vmatpush2.bf16.msra.mxu0 0
      %1709 = vmatprep.subr.bf16.mxu0 0
      %1710 = vmatpush2.bf16.msra.mxu0 0
      %1711 = vmatprep.subr.bf16.mxu0 0
      %1712 = vmatpush2.bf16.msra.mxu0 0
      %1713 = vmatprep.subr.bf16.mxu0 0
      %1714 = vmatpush2.bf16.msra.mxu0 0
      %1715 = vmatprep.subr.bf16.mxu0 0
      %1716 = vmatpush2.bf16.msra.mxu0 0
      %1717 = vmatprep.subr.bf16.mxu0 0
      %1718 = vmatpush2.bf16.msra.mxu0 0
      %1719 = vmatprep.subr.bf16.mxu0 0
      %1720 = vmatpush2.bf16.msra.mxu0 0
      %1721 = vmatprep.mubr.bf16.mxu0 0
      %1722 = vmatmul.mubr.bf16.gmra.mxu0 %v1684
      %v1723 = vpop.f32.mrf.mxu0
      %v1724 = vadd.f32 0.0, %v1723
      %v1725 = vpop.f32.mrf.mxu0
      %v1726 = vpop.f32.mrf.mxu0
      %v1727 = vpop.f32.mrf.mxu0
      %1728 = vdwg.mxu0
      %1729 = vrot.lane.b32.xlu0 %v1399, 104
      %v1730 = vpop.permute.xlu0 %1729
      %1731 = vrot.lane.b32.xlu0 %v1400, 104
      %v1732 = vpop.permute.xlu0 %1731
      %v1734 = vsel %vm722, %v1730, 0
      %v1737 = vsel %vm722, %v1732, 0
      %1739 = vmatprep.subr.bf16.mxu0 0
      %1740 = vmatpush1.bf16.xpose.msra.mxu0 0
      %1741 = vmatprep.subr.bf16.mxu0 0
      %1742 = vmatpush1.bf16.xpose.msra.mxu0 0
      %1743 = vmatprep.subr.bf16.mxu0 0
      %1744 = vmatpush1.bf16.xpose.msra.mxu0 0
      %1745 = vmatprep.subr.bf16.mxu0 0
      %1746 = vmatpush1.bf16.xpose.msra.mxu0 0
      %1747 = vmatprep.subr.bf16.mxu0 0
      %1748 = vmatpush1.bf16.xpose.msra.mxu0 0
      %1749 = vmatprep.subr.bf16.mxu0 0
      %1750 = vmatpush1.bf16.xpose.msra.mxu0 0
      %1751 = vmatprep.subr.bf16.mxu0 0
      %1752 = vmatpush1.bf16.xpose.msra.mxu0 0
      %1753 = vmatprep.subr.bf16.mxu0 0
      %1754 = vmatpush1.bf16.xpose.msra.mxu0 %v1737
      %1755 = vmatprep.subr.bf16.mxu0 0
      %1756 = vmatpush2.bf16.xpose.msra.mxu0 0
      %1757 = vmatprep.subr.bf16.mxu0 0
      %1758 = vmatpush2.bf16.xpose.msra.mxu0 0
      %1759 = vmatprep.subr.bf16.mxu0 0
      %1760 = vmatpush2.bf16.xpose.msra.mxu0 0
      %1761 = vmatprep.subr.bf16.mxu0 0
      %1762 = vmatpush2.bf16.xpose.msra.mxu0 0
      %1763 = vmatprep.subr.bf16.mxu0 0
      %1764 = vmatpush2.bf16.xpose.msra.mxu0 0
      %1765 = vmatprep.subr.bf16.mxu0 0
      %1766 = vmatpush2.bf16.xpose.msra.mxu0 0
      %1767 = vmatprep.subr.bf16.mxu0 0
      %1768 = vmatpush2.bf16.xpose.msra.mxu0 0
      %1769 = vmatprep.subr.bf16.mxu0 0
      %1770 = vmatpush2.bf16.xpose.msra.mxu0 0
      %1771 = vmatprep.mubr.bf16.mxu0 0
      %1772 = vmatmul.mubr.bf16.gmra.mxu0 %v1734
      %v1773 = vpop.f32.mrf.mxu0
      %v1774 = vadd.f32 0.0, %v1773
      %v1775 = vpop.f32.mrf.mxu0
      %v1776 = vpop.f32.mrf.mxu0
      %v1777 = vpop.f32.mrf.mxu0
      %1778 = vdwg.mxu0
      %v1779 = vsel %vm722, %v1774, -inf
      %1780 = vmax.xlane.f32.xlu0 %v1779
      %v1781 = vpop.xlane.xlu0 %1780
      %v1782 = vsub.f32 %v1774, %v1781
      %v1783 = vmul.f32 %v1782, 1.442695
      %v1784 = vpow.pop %v1783
      %v1785 = vsel %vm722, %v1784, 0.0
      %1786 = vadd.xlane.f32.xlu0 %v1785
      %v1787 = vpop.xlane.xlu0 %1786
      %v1788 = vrcp.pop %v1787
      %v1789 = vmul.f32 %v1784, %v1788
      %v1790 = vpack.c.bf16 %v1789, %v1789
      %1791 = vrot.lane.b32.xlu0 %v1400, 72
      %v1792 = vpop.permute.xlu0 %1791
      %v1794 = vsel %vm722, %v1790, 0
      %v1797 = vsel %vm787, %v1792, 0
      %1799 = vmatprep.subr.bf16.mxu0 0
      %1800 = vmatpush1.bf16.msra.mxu0 0
      %1801 = vmatprep.subr.bf16.mxu0 0
      %1802 = vmatpush1.bf16.msra.mxu0 0
      %1803 = vmatprep.subr.bf16.mxu0 0
      %1804 = vmatpush1.bf16.msra.mxu0 0
      %1805 = vmatprep.subr.bf16.mxu0 0
      %1806 = vmatpush1.bf16.msra.mxu0 0
      %1807 = vmatprep.subr.bf16.mxu0 0
      %1808 = vmatpush1.bf16.msra.mxu0 0
      %1809 = vmatprep.subr.bf16.mxu0 0
      %1810 = vmatpush1.bf16.msra.mxu0 0
      %1811 = vmatprep.subr.bf16.mxu0 0
      %1812 = vmatpush1.bf16.msra.mxu0 0
      %1813 = vmatprep.subr.bf16.mxu0 0
      %1814 = vmatpush1.bf16.msra.mxu0 %v1797
      %1815 = vmatprep.subr.bf16.mxu0 0
      %1816 = vmatpush2.bf16.msra.mxu0 0
      %1817 = vmatprep.subr.bf16.mxu0 0
      %1818 = vmatpush2.bf16.msra.mxu0 0
      %1819 = vmatprep.subr.bf16.mxu0 0
      %1820 = vmatpush2.bf16.msra.mxu0 0
      %1821 = vmatprep.subr.bf16.mxu0 0
      %1822 = vmatpush2.bf16.msra.mxu0 0
      %1823 = vmatprep.subr.bf16.mxu0 0
      %1824 = vmatpush2.bf16.msra.mxu0 0
      %1825 = vmatprep.subr.bf16.mxu0 0
      %1826 = vmatpush2.bf16.msra.mxu0 0
      %1827 = vmatprep.subr.bf16.mxu0 0
      %1828 = vmatpush2.bf16.msra.mxu0 0
      %1829 = vmatprep.subr.bf16.mxu0 0
      %1830 = vmatpush2.bf16.msra.mxu0 0
      %1831 = vmatprep.mubr.bf16.mxu0 0
      %1832 = vmatmul.mubr.bf16.gmra.mxu0 %v1794
      %v1833 = vpop.f32.mrf.mxu0
      %v1834 = vadd.f32 0.0, %v1833
      %v1835 = vpop.f32.mrf.mxu0
      %v1836 = vpop.f32.mrf.mxu0
      %v1837 = vpop.f32.mrf.mxu0
      %1838 = vdwg.mxu0
      %1840 = vrot.lane.b32.xlu0 %v1614, 8
      %v1841 = vpop.permute.xlu0 %1840
      %1844 = vrot.lane.b32.xlu0 %v1724, 16
      %v1845 = vpop.permute.xlu0 %1844
      %1848 = vrot.lane.b32.xlu0 %v1834, 24
      %v1849 = vpop.permute.xlu0 %1848
      %v1851 = vsel %vm722, %v1503, %v1841
      %v1852 = vsel %vm1177, %v1851, %v1845
      %v1853 = vsel %vm1179, %v1852, %v1849
      %v1854 = vpack.c.bf16 %v1853, %v1853
      %v1855 = vld [vmem:[%s10] sm:$0xf]
      %v1856 = vld [vmem:[%s10 + $0x4] sm:$0xf]
      %v1857 = vld [vmem:[%s10 + $0x8] sm:$0xf]
      %v1858 = vld [vmem:[%s10 + $0xc] sm:$0xf]
      %v1859 = vld [vmem:[%s11] sm:$0x1]
      %v1861 = vlaneseq
      %v1862 = vshrl.u32 %v1861, 7
      %v1863 = vsub.s32 0, %v1862
      %v1864 = vrot.slane %v1859, %v1863
      %v1870 = vunpack.c.l.b16 %v1855
      %v1871 = vunpack.c.l.b16 %v1856
      %v1872 = vunpack.c.l.b16 %v1857
      %v1873 = vunpack.c.l.b16 %v1858
      %v1874 = vpack.c.b16 %v1871, %v1870
      %v1875 = vpack.c.b16 %v1873, %v1872
      %v1879 = vsel %vm669, %v1854, 0
      %1881 = vmatprep.subr.bf16.mxu0 0
      %1882 = vmatpush1.bf16.msra.mxu0 0
      %1883 = vmatprep.subr.bf16.mxu0 0
      %1884 = vmatpush1.bf16.msra.mxu0 0
      %1885 = vmatprep.subr.bf16.mxu0 0
      %1886 = vmatpush1.bf16.msra.mxu0 0
      %1887 = vmatprep.subr.bf16.mxu0 0
      %1888 = vmatpush1.bf16.msra.mxu0 0
      %1889 = vmatprep.subr.bf16.mxu0 0
      %1890 = vmatpush1.bf16.msra.mxu0 0
      %1891 = vmatprep.subr.bf16.mxu0 0
      %1892 = vmatpush1.bf16.msra.mxu0 0
      %1893 = vmatprep.subr.bf16.mxu0 0
      %1894 = vmatpush1.bf16.msra.mxu0 %v1875
      %1895 = vmatprep.subr.bf16.mxu0 0
      %1896 = vmatpush1.bf16.msra.mxu0 %v1874
      %1897 = vmatprep.subr.bf16.mxu0 0
      %1898 = vmatpush2.bf16.msra.mxu0 0
      %1899 = vmatprep.subr.bf16.mxu0 0
      %1900 = vmatpush2.bf16.msra.mxu0 0
      %1901 = vmatprep.subr.bf16.mxu0 0
      %1902 = vmatpush2.bf16.msra.mxu0 0
      %1903 = vmatprep.subr.bf16.mxu0 0
      %1904 = vmatpush2.bf16.msra.mxu0 0
      %1905 = vmatprep.subr.bf16.mxu0 0
      %1906 = vmatpush2.bf16.msra.mxu0 0
      %1907 = vmatprep.subr.bf16.mxu0 0
      %1908 = vmatpush2.bf16.msra.mxu0 0
      %1909 = vmatprep.subr.bf16.mxu0 0
      %1910 = vmatpush2.bf16.msra.mxu0 0
      %1911 = vmatprep.subr.bf16.mxu0 0
      %1912 = vmatpush2.bf16.msra.mxu0 0
      %1913 = vmatprep.mubr.bf16.mxu0 0
      %1914 = vmatmul.mubr.bf16.gmra.mxu0 %v1879
      %v1915 = vpop.f32.mrf.mxu0
      %v1916 = vadd.f32 %v1864, %v1915
      %v1917 = vpop.f32.mrf.mxu0
      %v1918 = vpop.f32.mrf.mxu0
      %v1919 = vpop.f32.mrf.mxu0
      %1920 = vdwg.mxu0
      %v1921 = vadd.f32 %v1278, %v1916
      %v1922 = vld [vmem:[%s12] sm:$0x1]
      %v1923 = vld [vmem:[%s13] sm:$0x1]
      %v1924 = vsel %vm669, %v1921, 0.0
      %1925 = vadd.xlane.f32.xlu0 %v1924
      %v1926 = vpop.xlane.xlu0 %1925
      %v1927 = vmul.f32 %v1926, %v1254
      %v1928 = vsub.f32 %v1921, %v1927
      %v1929 = vmul.f32 %v1928, %v1928
      %v1930 = vsel %vm669, %v1929, 0.0
      %1931 = vadd.xlane.f32.xlu0 %v1930
      %v1932 = vpop.xlane.xlu0 %1931
      %v1933 = vmul.f32 %v1932, %v1254
      %v1934 = vadd.f32 %v1933, 1e-05
      %v1935 = vrsqrt.pop %v1934
      %v1936 = vmul.f32 %v1928, %v1935
      %v1938 = vlaneseq
      %v1939 = vshrl.u32 %v1938, 7
      %v1940 = vsub.s32 0, %v1939
      %v1941 = vrot.slane %v1922, %v1940
      %v1943 = vmul.f32 %v1936, %v1941
      %v1945 = vlaneseq
      %v1946 = vshrl.u32 %v1945, 7
      %v1947 = vsub.s32 0, %v1946
      %v1948 = vrot.slane %v1923, %v1947
      %v1950 = vadd.f32 %v1943, %v1948
      %v1951 = vpack.c.bf16 %v1950, %v1950
      %v1952 = vld [vmem:[%s14] sm:$0xf]
      %v1953 = vld [vmem:[%s14 + $0x4] sm:$0xf]
      %v1954 = vld [vmem:[%s14 + $0x8] sm:$0xf]
      %v1955 = vld [vmem:[%s14 + $0xc] sm:$0xf]
      %v1956 = vld [vmem:[%s15] sm:$0x1]
      %v1958 = vlaneseq
      %v1959 = vshrl.u32 %v1958, 7
      %v1960 = vsub.s32 0, %v1959
      %v1961 = vrot.slane %v1956, %v1960
      %v1967 = vunpack.c.l.b16 %v1952
      %v1968 = vunpack.c.l.b16 %v1953
      %v1969 = vunpack.c.l.b16 %v1954
      %v1970 = vunpack.c.l.b16 %v1955
      %v1971 = vpack.c.b16 %v1968, %v1967
      %v1972 = vpack.c.b16 %v1970, %v1969
      %v1976 = vsel %vm669, %v1951, 0
      %1978 = vmatprep.subr.bf16.mxu0 0
      %1979 = vmatpush1.bf16.msra.mxu0 0
      %1980 = vmatprep.subr.bf16.mxu0 0
      %1981 = vmatpush1.bf16.msra.mxu0 0
      %1982 = vmatprep.subr.bf16.mxu0 0
      %1983 = vmatpush1.bf16.msra.mxu0 0
      %1984 = vmatprep.subr.bf16.mxu0 0
      %1985 = vmatpush1.bf16.msra.mxu0 0
      %1986 = vmatprep.subr.bf16.mxu0 0
      %1987 = vmatpush1.bf16.msra.mxu0 0
      %1988 = vmatprep.subr.bf16.mxu0 0
      %1989 = vmatpush1.bf16.msra.mxu0 0
      %1990 = vmatprep.subr.bf16.mxu0 0
      %1991 = vmatpush1.bf16.msra.mxu0 %v1972
      %1992 = vmatprep.subr.bf16.mxu0 0
      %1993 = vmatpush1.bf16.msra.mxu0 %v1971
      %1994 = vmatprep.subr.bf16.mxu0 0
      %1995 = vmatpush2.bf16.msra.mxu0 0
      %1996 = vmatprep.subr.bf16.mxu0 0
      %1997 = vmatpush2.bf16.msra.mxu0 0
      %1998 = vmatprep.subr.bf16.mxu0 0
      %1999 = vmatpush2.bf16.msra.mxu0 0
      %2000 = vmatprep.subr.bf16.mxu0 0
      %2001 = vmatpush2.bf16.msra.mxu0 0
      %2002 = vmatprep.subr.bf16.mxu0 0
      %2003 = vmatpush2.bf16.msra.mxu0 0
      %2004 = vmatprep.subr.bf16.mxu0 0
      %2005 = vmatpush2.bf16.msra.mxu0 0
      %2006 = vmatprep.subr.bf16.mxu0 0
      %2007 = vmatpush2.bf16.msra.mxu0 0
      %2008 = vmatprep.subr.bf16.mxu0 0
      %2009 = vmatpush2.bf16.msra.mxu0 0
      %2010 = vmatprep.mubr.bf16.mxu0 0
      %2011 = vmatmul.mubr.bf16.gmra.mxu0 %v1976
      %v2012 = vpop.f32.mrf.mxu0
      %v2013 = vadd.f32 %v1961, %v2012
      %v2014 = vpop.f32.mrf.mxu0
      %v2015 = vpop.f32.mrf.mxu0
      %v2016 = vpop.f32.mrf.mxu0
      %2017 = vdwg.mxu0
      %v2018 = vmax.f32 %v2013, 0.0
      %v2019 = vpack.c.bf16 %v2018, %v2018
      %v2020 = vld [vmem:[%s16] sm:$0xf]
      %v2021 = vld [vmem:[%s16 + $0x4] sm:$0xf]
      %v2022 = vld [vmem:[%s16 + $0x8] sm:$0xf]
      %v2023 = vld [vmem:[%s16 + $0xc] sm:$0xf]
      %v2024 = vld [vmem:[%s16 + $0x10] sm:$0xf]
      %v2025 = vld [vmem:[%s16 + $0x14] sm:$0xf]
      %v2026 = vld [vmem:[%s16 + $0x18] sm:$0xf]
      %v2027 = vld [vmem:[%s16 + $0x1c] sm:$0xf]
      %v2028 = vld [vmem:[%s17] sm:$0x1]
      %v2030 = vlaneseq
      %v2031 = vshrl.u32 %v2030, 7
      %v2032 = vsub.s32 0, %v2031
      %v2033 = vrot.slane %v2028, %v2032
      %v2043 = vunpack.c.l.b16 %v2020
      %v2044 = vunpack.c.l.b16 %v2021
      %v2045 = vunpack.c.l.b16 %v2022
      %v2046 = vunpack.c.l.b16 %v2023
      %v2047 = vunpack.c.l.b16 %v2024
      %v2048 = vunpack.c.l.b16 %v2025
      %v2049 = vunpack.c.l.b16 %v2026
      %v2050 = vunpack.c.l.b16 %v2027
      %v2051 = vpack.c.b16 %v2044, %v2043
      %v2052 = vpack.c.b16 %v2046, %v2045
      %v2053 = vpack.c.b16 %v2048, %v2047
      %v2054 = vpack.c.b16 %v2050, %v2049
      %vm2059 = vcmask 523264
      %v2061 = vsel %vm2059, %v2019, 0
      %2063 = vmatprep.subr.bf16.mxu0 0
      %2064 = vmatpush1.bf16.msra.mxu0 0
      %2065 = vmatprep.subr.bf16.mxu0 0
      %2066 = vmatpush1.bf16.msra.mxu0 0
      %2067 = vmatprep.subr.bf16.mxu0 0
      %2068 = vmatpush1.bf16.msra.mxu0 0
      %2069 = vmatprep.subr.bf16.mxu0 0
      %2070 = vmatpush1.bf16.msra.mxu0 0
      %2071 = vmatprep.subr.bf16.mxu0 0
      %2072 = vmatpush1.bf16.msra.mxu0 %v2054
      %2073 = vmatprep.subr.bf16.mxu0 0
      %2074 = vmatpush1.bf16.msra.mxu0 %v2053
      %2075 = vmatprep.subr.bf16.mxu0 0
      %2076 = vmatpush1.bf16.msra.mxu0 %v2052
      %2077 = vmatprep.subr.bf16.mxu0 0
      %2078 = vmatpush1.bf16.msra.mxu0 %v2051
      %2079 = vmatprep.subr.bf16.mxu0 0
      %2080 = vmatpush2.bf16.msra.mxu0 0
      %2081 = vmatprep.subr.bf16.mxu0 0
      %2082 = vmatpush2.bf16.msra.mxu0 0
      %2083 = vmatprep.subr.bf16.mxu0 0
      %2084 = vmatpush2.bf16.msra.mxu0 0
      %2085 = vmatprep.subr.bf16.mxu0 0
      %2086 = vmatpush2.bf16.msra.mxu0 0
      %2087 = vmatprep.subr.bf16.mxu0 0
      %2088 = vmatpush2.bf16.msra.mxu0 0
      %2089 = vmatprep.subr.bf16.mxu0 0
      %2090 = vmatpush2.bf16.msra.mxu0 0
      %2091 = vmatprep.subr.bf16.mxu0 0
      %2092 = vmatpush2.bf16.msra.mxu0 0
      %2093 = vmatprep.subr.bf16.mxu0 0
      %2094 = vmatpush2.bf16.msra.mxu0 0
      %2095 = vmatprep.mubr.bf16.mxu0 0
      %2096 = vmatmul.mubr.bf16.gmra.mxu0 %v2061
      %v2097 = vpop.f32.mrf.mxu0
      %v2098 = vadd.f32 %v2033, %v2097
      %v2099 = vpop.f32.mrf.mxu0
      %v2100 = vpop.f32.mrf.mxu0
      %v2101 = vpop.f32.mrf.mxu0
      %2102 = vdwg.mxu0
      %v2103 = vadd.f32 %v1950, %v2098
      %v2104 = vld [vmem:[%s18] sm:$0x1]
      %v2105 = vld [vmem:[%s19] sm:$0x1]
      %v2106 = vsel %vm669, %v2103, 0.0
      %2107 = vadd.xlane.f32.xlu0 %v2106
      %v2108 = vpop.xlane.xlu0 %2107
      %v2109 = vmul.f32 %v2108, %v1254
      %v2110 = vsub.f32 %v2103, %v2109
      %v2111 = vmul.f32 %v2110, %v2110
      %v2112 = vsel %vm669, %v2111, 0.0
      %2113 = vadd.xlane.f32.xlu0 %v2112
      %v2114 = vpop.xlane.xlu0 %2113
      %v2115 = vmul.f32 %v2114, %v1254
      %v2116 = vadd.f32 %v2115, 1e-05
      %v2117 = vrsqrt.pop %v2116
      %v2118 = vmul.f32 %v2110, %v2117
      %v2120 = vlaneseq
      %v2121 = vshrl.u32 %v2120, 7
      %v2122 = vsub.s32 0, %v2121
      %v2123 = vrot.slane %v2104, %v2122
      %v2125 = vmul.f32 %v2118, %v2123
      %v2127 = vlaneseq
      %v2128 = vshrl.u32 %v2127, 7
      %v2129 = vsub.s32 0, %v2128
      %v2130 = vrot.slane %v2105, %v2129
      %v2132 = vadd.f32 %v2125, %v2130
      %2133 = vst.msk [vmem:[%s641] sm:$0xff] %vm669, %v2132
      %p2134 = scmp.lt.s32.totalorder %s31, 1
      %s2135 = scalar_select %p2134, %s31, 1
      %s2136 = smul.addr %s2135, 8
      %s2137 = scalar_lea.vmem %s20, %s2136
      // Predicated region
      $region101: #{transformer_forward.7} parent=99 // pred_check
        %p2138 = pneg %p479
      $region102: #{transformer_forward.7} parent=99 // pred_check_branch
        %2140 = sbr.rel (%p2138) target = $region104
      $region103: #{transformer_forward.7} parent=99 // pred_region
        _
      $region104: #{transformer_forward.7} parent=99 // pred_fallthru
        _
    $region100: #{transformer_forward.7} parent=5 // pred_fallthru
      _
    %p2141 = scmp.le.s32.totalorder 2, %s26
    // Predicated region
    $region105: #{transformer_forward.7} parent=5 // pred_check
      %p2142 = pneg %p2141
    $region106: #{transformer_forward.7} parent=5 // pred_check_branch
      %2144 = sbr.rel (%p2142) target = $region108
    $region107: #{transformer_forward.7} parent=5 // pred_region
      %s2145 = ssub.s32 %s26, 2
      // Predicated region
      $region109: #{transformer_forward.7} parent=107 // pred_check
        %p2146 = pneg %p485
      $region110: #{transformer_forward.7} parent=107 // pred_check_branch
        %2148 = sbr.rel (%p2146) target = $region112
      $region111: #{transformer_forward.7} parent=107 // pred_region
        %p2149 = scmp.lt.s32.totalorder %s32, 1
        %s2150 = scalar_select %p2149, %s32, 1
        %s2151 = smul.addr %s2150, 8
        %s2152 = scalar_lea.vmem %s20, %s2151
      $region112: #{transformer_forward.7} parent=107 // pred_fallthru
        _
    $region108: #{transformer_forward.7} parent=5 // pred_fallthru
      _
  $region6: #{transformer_forward.7} parent=0 // loop_footer
    %s30 = sadd.s32 1, %s26
  $region7: #{transformer_forward.7} parent=0 // loop_footer_branch
    %25 = sbr.rel target = $region3
  $region8: #{transformer_forward.7} parent=0 // loop_exit
    _

</llo_original>
